<compile_context>
chip_gen: v7x
topology: tpu7x:2x2x1
jax: 0.10.0
libtpu: 0.0.40
codegen_flags: <defaults>
</compile_context>

<pallas_src>
import jax
import jax.numpy as jnp
from jax import lax
from jax.experimental import pallas as pl
from jax.experimental.pallas import tpu as pltpu


def _tree_sum(xs):
    xs = list(xs)
    while len(xs) > 1:
        nxt = [xs[i] + xs[i + 1] for i in range(0, len(xs) - 1, 2)]
        if len(xs) % 2:
            nxt.append(xs[-1])
        xs = nxt
    return xs[0]


# -----------------------------------------------------------------------------
# Fused kernel: conv1+pool+relu -> conv2+pool+relu -> fc1 -> fc2 -> fc3.
# One grid step processes tb images; all intermediates stay on-chip.
# -----------------------------------------------------------------------------
def _lenet_kernel(p1_ref, w1_ref, w2_ref, wf1_ref, wf2_ref, wf3_ref, bf_ref,
                  out_ref, qs_ref):
    f32 = jnp.float32
    bf16 = jnp.bfloat16
    tb = out_ref.shape[0]
    R = tb * 144                       # rows per pool-tap slab: b*144 + r*12 + c

    # ---- conv1 (5x5) + bias + 2x2 max-pool + ReLU: ONE batched matmul -------
    # p1 rows = (tap, b*144 + r*12 + c); bias folded in via a ones column.
    p1 = p1_ref[...].reshape(4 * R, 26)                                    # bf16
    z1 = jnp.dot(p1, w1_ref[...], preferred_element_type=f32)             # (4R, 6)
    m1 = jnp.maximum(jnp.maximum(z1[0:R], z1[R:2 * R]),
                     jnp.maximum(z1[2 * R:3 * R], z1[3 * R:4 * R]))
    h1 = jnp.maximum(m1, 0.0)                                              # (R, 6)

    # ---- conv2 (3x3): 9 shifted-row matmuls, batch folded into M ------------
    # z2[b*144 + r*12 + c, co] = sum_ij h1[b*144 + (r+i)*12 + (c+j), ci] * W2[ij, ci, co]
    # A row shift by d = i*12 + j stays inside image b for all valid outputs
    # (r < 10, c < 10); the zero tail only feeds rows fc1 never reads.
    h1p = jnp.concatenate([h1, jnp.zeros((32, 6), f32)], axis=0)           # (R+32, 6)
    parts2 = []
    for ij in range(9):
        i, j = divmod(ij, 3)
        d = i * 12 + j
        piece = h1p[d:d + R].astype(bf16)                                  # (R, 6)
        parts2.append(jnp.dot(piece, w2_ref[ij], preferred_element_type=f32))
    z2 = _tree_sum(parts2)                                                 # (R, 16)

    # conv2 bias + ReLU (both commute with the max-pool that follows).
    b2 = bf_ref[3:4, :][:, 0:16]                                           # (1, 16)
    z2 = jnp.maximum(z2 + b2, 0.0)

    # ---- 2x2 max-pool over the 10x10 conv2 output (row offsets 0,1,12,13) ---
    z2p = jnp.concatenate([z2, jnp.zeros((16, 16), f32)], axis=0)          # (R+16, 16)
    q = jnp.maximum(jnp.maximum(z2p[0:R], z2p[1:R + 1]),
                    jnp.maximum(z2p[12:R + 12], z2p[13:R + 13]))           # (R, 16)
    # valid pooled rows: b*144 + 24*p + 2*qq, p,qq in [0,5)
    qs_ref[...] = q

    # ---- fc1 (400 -> 120, padded to 128): 25 per-position MXU matmuls -------
    # out1[b, o] = sum_{v, co} q[b*144 + row_v, co] * fc1_w[o, co*25 + v]
    parts1 = []
    for v in range(25):
        p, qq = divmod(v, 5)
        row0 = 24 * p + 2 * qq
        qv = qs_ref[pl.ds(row0, tb, 144), :].astype(bf16)                  # (tb, 16)
        parts1.append(jnp.dot(qv, wf1_ref[v], preferred_element_type=f32))
    a1 = jnp.maximum(_tree_sum(parts1) + bf_ref[0:1, :], 0.0)              # (tb, 128)

    # ---- fc2 / fc3: lane-dense (tb,128)@(128,128) matmuls -------------------
    a2 = jnp.maximum(
        jnp.dot(a1.astype(bf16), wf2_ref[...], preferred_element_type=f32)
        + bf_ref[1:2, :], 0.0)                                             # (tb, 128)
    logits = (jnp.dot(a2.astype(bf16), wf3_ref[...], preferred_element_type=f32)
              + bf_ref[2:3, :])
    out_ref[...] = logits                      # single dense (tb, 128) store


# -----------------------------------------------------------------------------
# Host-side glue: conv1 im2col patches + parameter re-layouts (cheap XLA ops).
# -----------------------------------------------------------------------------
def _conv1_patches(x):
    """(B,1,28,28) -> (4, B*144, 26) bf16: pool-tap-major patches + ones col."""
    B = x.shape[0]
    xf = x.astype(jnp.float32)
    eye_k = jnp.eye(25, dtype=jnp.float32).reshape(25, 1, 5, 5)
    dense = lax.conv_general_dilated(
        xf, eye_k, window_strides=(1, 1), padding="VALID",
        dimension_numbers=("NCHW", "OIHW", "NCHW"))           # (B, 25, 24, 24)
    taps = [dense[:, :, ph::2, pw::2] for ph in (0, 1) for pw in (0, 1)]
    p = jnp.stack(taps, axis=0)                               # (4, B, 25, 12, 12)
    p = p.transpose(0, 1, 3, 4, 2).reshape(4, B * 144, 25)    # row = b*144 + r*12 + c
    ones = jnp.ones((4, B * 144, 1), jnp.float32)
    return jnp.concatenate([p, ones], axis=-1).astype(jnp.bfloat16)


def _prepare_params(params):
    f32, bf16 = jnp.float32, jnp.bfloat16
    w1 = jnp.concatenate(
        [params["conv1_w"].reshape(6, 25).T, params["conv1_b"].reshape(1, 6)],
        axis=0).astype(bf16)                                            # (26, 6)
    w2 = jnp.transpose(params["conv2_w"], (2, 3, 1, 0)).reshape(9, 6, 16).astype(bf16)
    wf1 = (jnp.zeros((25, 16, 128), f32)
           .at[:, :, :120]
           .set(jnp.transpose(params["fc1_w"].reshape(120, 16, 25), (2, 1, 0)))
           ).astype(bf16)                                               # (25, 16, 128)
    wf2 = jnp.zeros((128, 128), f32).at[:120, :84].set(params["fc2_w"].T).astype(bf16)
    wf3 = jnp.zeros((128, 128), f32).at[:84, :10].set(params["fc3_w"].T).astype(bf16)
    bf = (jnp.zeros((4, 128), f32)
          .at[0, :120].set(params["fc1_b"])
          .at[1, :84].set(params["fc2_b"])
          .at[2, :10].set(params["fc3_b"])
          .at[3, :16].set(params["conv2_b"]))
    return w1, w2, wf1, wf2, wf3, bf


_TB_CAP = 16  # lane-padded p1 block is ~0.3 MiB/image, double-buffered


def _pick_tb(B):
    # Split across two TensorCores (v7x) only when each core gets >= 8 images;
    # otherwise a single grid step (v5e/v6e have one core: extra steps are
    # pure per-step pipeline overhead for a few-microsecond network).
    if B >= 16 and B % 2 == 0 and (B // 2) % 8 == 0 and (B // 2) <= _TB_CAP:
        return B // 2
    if B <= _TB_CAP:
        return B
    for cand in range(_TB_CAP, 7, -1):
        if B % cand == 0 and cand % 8 == 0:
            return cand
    return B


# -----------------------------------------------------------------------------
# Forward pass (single fused pallas_call)
# -----------------------------------------------------------------------------
def forward(params, x):
    B = x.shape[0]
    tb = _pick_tb(B)
    R = tb * 144

    p1 = _conv1_patches(x)
    w1, w2, wf1, wf2, wf3, bf = _prepare_params(params)

    out = pl.pallas_call(
        _lenet_kernel,
        out_shape=jax.ShapeDtypeStruct((B, 128), jnp.float32),
        grid=(B // tb,),
        in_specs=[
            pl.BlockSpec((4, R, 26), lambda g: (0, g, 0)),     # conv1 patches
            pl.BlockSpec((26, 6), lambda g: (0, 0)),           # conv1 W (+bias row)
            pl.BlockSpec((9, 6, 16), lambda g: (0, 0, 0)),     # conv2 W per (i,j)
            pl.BlockSpec((25, 16, 128), lambda g: (0, 0, 0)),  # fc1 W per position
            pl.BlockSpec((128, 128), lambda g: (0, 0)),        # fc2 W (padded)
            pl.BlockSpec((128, 128), lambda g: (0, 0)),        # fc3 W (padded)
            pl.BlockSpec((4, 128), lambda g: (0, 0)),          # biases (fc1/2/3 + conv2)
        ],
        out_specs=pl.BlockSpec((tb, 128), lambda g: (g, 0)),
        scratch_shapes=[pltpu.VMEM((R, 16), jnp.float32)],     # pooled conv2 activations
        compiler_params=pltpu.CompilerParams(dimension_semantics=("parallel",)),
    )(p1, w1, w2, wf1, wf2, wf3, bf)
    return out[:, :10]                                         # (B, 10)


# -----------------------------------------------------------------------------
# Parameters (deterministic init, PyTorch-native layouts)
# -----------------------------------------------------------------------------
def init_params(key):
    ks = jax.random.split(key, 10)

    def u(k, shape, fan_in):
        bound = 1.0 / jnp.sqrt(jnp.float32(fan_in))
        return jax.random.uniform(k, shape, jnp.float32, -bound, bound)

    return {
        "conv1_w": u(ks[0], (6, 1, 5, 5), 25),
        "conv1_b": u(ks[1], (6,), 25),
        "conv2_w": u(ks[2], (16, 6, 3, 3), 54),
        "conv2_b": u(ks[3], (16,), 54),
        "fc1_w": u(ks[4], (120, 400), 400),
        "fc1_b": u(ks[5], (120,), 400),
        "fc2_w": u(ks[6], (84, 120), 120),
        "fc2_b": u(ks[7], (84,), 120),
        "fc3_w": u(ks[8], (10, 84), 84),
        "fc3_b": u(ks[9], (10,), 84),
    }


# -----------------------------------------------------------------------------
# Pure-JAX reference (correctness check)
# -----------------------------------------------------------------------------
def reference_forward(params, x):
    dn = ("NCHW", "OIHW", "NCHW")

    def conv_relu_pool_ref(h, w, b):
        h = lax.conv_general_dilated(h, w, (1, 1), "VALID", dimension_numbers=dn)
        h = jnp.maximum(h + b.reshape(1, -1, 1, 1), 0.0)
        return lax.reduce_window(h, -jnp.inf, lax.max, (1, 1, 2, 2), (1, 1, 2, 2), "VALID")

    h = conv_relu_pool_ref(x, params["conv1_w"], params["conv1_b"])
    h = conv_relu_pool_ref(h, params["conv2_w"], params["conv2_b"])
    h = h.reshape(x.shape[0], 16 * 5 * 5)
    h = jnp.maximum(h @ params["fc1_w"].T + params["fc1_b"], 0.0)
    h = jnp.maximum(h @ params["fc2_w"].T + params["fc2_b"], 0.0)
    return h @ params["fc3_w"].T + params["fc3_b"]


# TODO(synk): train_net (SGD training loop / CrossEntropyLoss) is host-side
# training logic, not part of the forward kernel, and is intentionally omitted.

if __name__ == "__main__":
    key = jax.random.PRNGKey(0)
    pkey, xkey = jax.random.split(key)
    params = init_params(pkey)
    x = jax.random.normal(xkey, (2, 1, 28, 28), dtype=jnp.float32)

    out = jax.jit(forward)(params, x)
    out = jax.block_until_ready(out)
    assert out.shape == (2, 10) and out.dtype == jnp.float32

    ref = reference_forward(params, x)
    err = float(jnp.max(jnp.abs(out - ref)))
    assert jnp.allclose(out, ref, rtol=5e-3, atol=5e-3), (err, out, ref)

    print("KERNEL_OK")
</pallas_src>

<mosaic_0001>
module attributes {stable_mosaic.version = 11 : i64} {
  func.func @_lenet_kernel(%arg0: i32, %arg1: memref<4x288x26xbf16, #tpu.memory_space<vmem>>, %arg2: memref<26x6xbf16, #tpu.memory_space<vmem>>, %arg3: memref<9x6x16xbf16, #tpu.memory_space<vmem>>, %arg4: memref<25x16x128xbf16, #tpu.memory_space<vmem>>, %arg5: memref<128x128xbf16, #tpu.memory_space<vmem>>, %arg6: memref<128x128xbf16, #tpu.memory_space<vmem>>, %arg7: memref<4x128xf32, #tpu.memory_space<vmem>>, %arg8: memref<2x128xf32, #tpu.memory_space<vmem>>, %arg9: memref<288x16xf32, #tpu.memory_space<vmem>>) attributes {dimension_semantics = [#tpu.dimension_semantics<parallel>], iteration_bounds = array<i64: 1>, scalar_prefetch = 0 : i64, scratch_operands = 1 : i64, tpu.core_type = #tpu.core_type<tc>, window_params = [{transform_indices = @transform_0, window_bounds = array<i64: 4, 288, 26>}, {pipeline_mode = #tpu.pipeline_mode<synchronous>, transform_indices = @transform_1, window_bounds = array<i64: 26, 6>}, {pipeline_mode = #tpu.pipeline_mode<synchronous>, transform_indices = @transform_2, window_bounds = array<i64: 9, 6, 16>}, {pipeline_mode = #tpu.pipeline_mode<synchronous>, transform_indices = @transform_3, window_bounds = array<i64: 25, 16, 128>}, {pipeline_mode = #tpu.pipeline_mode<synchronous>, transform_indices = @transform_4, window_bounds = array<i64: 128, 128>}, {pipeline_mode = #tpu.pipeline_mode<synchronous>, transform_indices = @transform_5, window_bounds = array<i64: 128, 128>}, {pipeline_mode = #tpu.pipeline_mode<synchronous>, transform_indices = @transform_6, window_bounds = array<i64: 4, 128>}, {transform_indices = @transform_7, window_bounds = array<i64: 2, 128>}]} {
    %c0 = arith.constant 0 : index
    %c0_0 = arith.constant 0 : index
    %c0_1 = arith.constant 0 : index
    %0 = vector.load %arg1[%c0, %c0_0, %c0_1] : memref<4x288x26xbf16, #tpu.memory_space<vmem>>, vector<4x288x26xbf16>
    %1 = vector.shape_cast %0 : vector<4x288x26xbf16> to vector<1152x26xbf16>
    %c0_2 = arith.constant 0 : index
    %c0_3 = arith.constant 0 : index
    %2 = vector.load %arg2[%c0_2, %c0_3] : memref<26x6xbf16, #tpu.memory_space<vmem>>, vector<26x6xbf16>
    %cst = arith.constant dense<0.000000e+00> : vector<1152x6xf32>
    %3 = tpu.matmul %1, %2, %cst {dimension_numbers = #tpu.dot_dimension_numbers<[1], [0], [0], [1], [0, 0, 1, 1], [], []>} : vector<1152x26xbf16>, vector<26x6xbf16>, vector<1152x6xf32> -> vector<1152x6xf32>
    %4 = vector.extract_strided_slice %3 {offsets = [0, 0], sizes = [288, 6], strides = [1, 1]} : vector<1152x6xf32> to vector<288x6xf32>
    %5 = vector.extract_strided_slice %3 {offsets = [288, 0], sizes = [288, 6], strides = [1, 1]} : vector<1152x6xf32> to vector<288x6xf32>
    %6 = arith.maximumf %4, %5 : vector<288x6xf32>
    %7 = vector.extract_strided_slice %3 {offsets = [576, 0], sizes = [288, 6], strides = [1, 1]} : vector<1152x6xf32> to vector<288x6xf32>
    %8 = vector.extract_strided_slice %3 {offsets = [864, 0], sizes = [288, 6], strides = [1, 1]} : vector<1152x6xf32> to vector<288x6xf32>
    %9 = arith.maximumf %7, %8 : vector<288x6xf32>
    %10 = arith.maximumf %6, %9 : vector<288x6xf32>
    %cst_4 = arith.constant 0.000000e+00 : f32
    %11 = vector.broadcast %cst_4 : f32 to vector<288x6xf32>
    %12 = arith.maximumf %10, %11 : vector<288x6xf32>
    %cst_5 = arith.constant 0.000000e+00 : f32
    %13 = vector.broadcast %cst_5 : f32 to vector<32x6xf32>
    %14 = tpu.concatenate %12, %13 in 0 : vector<288x6xf32>, vector<32x6xf32> -> vector<320x6xf32>
    %15 = vector.extract_strided_slice %14 {offsets = [0, 0], sizes = [288, 6], strides = [1, 1]} : vector<320x6xf32> to vector<288x6xf32>
    %16 = arith.truncf %15 : vector<288x6xf32> to vector<288x6xbf16>
    %c0_6 = arith.constant 0 : index
    %c0_7 = arith.constant 0 : index
    %c0_8 = arith.constant 0 : index
    %17 = vector.load %arg3[%c0_6, %c0_7, %c0_8] : memref<9x6x16xbf16, #tpu.memory_space<vmem>>, vector<1x6x16xbf16>
    %18 = vector.shape_cast %17 : vector<1x6x16xbf16> to vector<6x16xbf16>
    %cst_9 = arith.constant dense<0.000000e+00> : vector<288x16xf32>
    %19 = tpu.matmul %16, %18, %cst_9 {dimension_numbers = #tpu.dot_dimension_numbers<[1], [0], [0], [1], [0, 0, 1, 1], [], []>} : vector<288x6xbf16>, vector<6x16xbf16>, vector<288x16xf32> -> vector<288x16xf32>
    %20 = vector.extract_strided_slice %14 {offsets = [1, 0], sizes = [288, 6], strides = [1, 1]} : vector<320x6xf32> to vector<288x6xf32>
    %21 = arith.truncf %20 : vector<288x6xf32> to vector<288x6xbf16>
    %c1 = arith.constant 1 : index
    %c0_10 = arith.constant 0 : index
    %c0_11 = arith.constant 0 : index
    %22 = vector.load %arg3[%c1, %c0_10, %c0_11] : memref<9x6x16xbf16, #tpu.memory_space<vmem>>, vector<1x6x16xbf16>
    %23 = vector.shape_cast %22 : vector<1x6x16xbf16> to vector<6x16xbf16>
    %cst_12 = arith.constant dense<0.000000e+00> : vector<288x16xf32>
    %24 = tpu.matmul %21, %23, %cst_12 {dimension_numbers = #tpu.dot_dimension_numbers<[1], [0], [0], [1], [0, 0, 1, 1], [], []>} : vector<288x6xbf16>, vector<6x16xbf16>, vector<288x16xf32> -> vector<288x16xf32>
    %25 = vector.extract_strided_slice %14 {offsets = [2, 0], sizes = [288, 6], strides = [1, 1]} : vector<320x6xf32> to vector<288x6xf32>
    %26 = arith.truncf %25 : vector<288x6xf32> to vector<288x6xbf16>
    %c2 = arith.constant 2 : index
    %c0_13 = arith.constant 0 : index
    %c0_14 = arith.constant 0 : index
    %27 = vector.load %arg3[%c2, %c0_13, %c0_14] : memref<9x6x16xbf16, #tpu.memory_space<vmem>>, vector<1x6x16xbf16>
    %28 = vector.shape_cast %27 : vector<1x6x16xbf16> to vector<6x16xbf16>
    %cst_15 = arith.constant dense<0.000000e+00> : vector<288x16xf32>
    %29 = tpu.matmul %26, %28, %cst_15 {dimension_numbers = #tpu.dot_dimension_numbers<[1], [0], [0], [1], [0, 0, 1, 1], [], []>} : vector<288x6xbf16>, vector<6x16xbf16>, vector<288x16xf32> -> vector<288x16xf32>
    %30 = vector.extract_strided_slice %14 {offsets = [12, 0], sizes = [288, 6], strides = [1, 1]} : vector<320x6xf32> to vector<288x6xf32>
    %31 = arith.truncf %30 : vector<288x6xf32> to vector<288x6xbf16>
    %c3 = arith.constant 3 : index
    %c0_16 = arith.constant 0 : index
    %c0_17 = arith.constant 0 : index
    %32 = vector.load %arg3[%c3, %c0_16, %c0_17] : memref<9x6x16xbf16, #tpu.memory_space<vmem>>, vector<1x6x16xbf16>
    %33 = vector.shape_cast %32 : vector<1x6x16xbf16> to vector<6x16xbf16>
    %cst_18 = arith.constant dense<0.000000e+00> : vector<288x16xf32>
    %34 = tpu.matmul %31, %33, %cst_18 {dimension_numbers = #tpu.dot_dimension_numbers<[1], [0], [0], [1], [0, 0, 1, 1], [], []>} : vector<288x6xbf16>, vector<6x16xbf16>, vector<288x16xf32> -> vector<288x16xf32>
    %35 = vector.extract_strided_slice %14 {offsets = [13, 0], sizes = [288, 6], strides = [1, 1]} : vector<320x6xf32> to vector<288x6xf32>
    %36 = arith.truncf %35 : vector<288x6xf32> to vector<288x6xbf16>
    %c4 = arith.constant 4 : index
    %c0_19 = arith.constant 0 : index
    %c0_20 = arith.constant 0 : index
    %37 = vector.load %arg3[%c4, %c0_19, %c0_20] : memref<9x6x16xbf16, #tpu.memory_space<vmem>>, vector<1x6x16xbf16>
    %38 = vector.shape_cast %37 : vector<1x6x16xbf16> to vector<6x16xbf16>
    %cst_21 = arith.constant dense<0.000000e+00> : vector<288x16xf32>
    %39 = tpu.matmul %36, %38, %cst_21 {dimension_numbers = #tpu.dot_dimension_numbers<[1], [0], [0], [1], [0, 0, 1, 1], [], []>} : vector<288x6xbf16>, vector<6x16xbf16>, vector<288x16xf32> -> vector<288x16xf32>
    %40 = vector.extract_strided_slice %14 {offsets = [14, 0], sizes = [288, 6], strides = [1, 1]} : vector<320x6xf32> to vector<288x6xf32>
    %41 = arith.truncf %40 : vector<288x6xf32> to vector<288x6xbf16>
    %c5 = arith.constant 5 : index
    %c0_22 = arith.constant 0 : index
    %c0_23 = arith.constant 0 : index
    %42 = vector.load %arg3[%c5, %c0_22, %c0_23] : memref<9x6x16xbf16, #tpu.memory_space<vmem>>, vector<1x6x16xbf16>
    %43 = vector.shape_cast %42 : vector<1x6x16xbf16> to vector<6x16xbf16>
    %cst_24 = arith.constant dense<0.000000e+00> : vector<288x16xf32>
    %44 = tpu.matmul %41, %43, %cst_24 {dimension_numbers = #tpu.dot_dimension_numbers<[1], [0], [0], [1], [0, 0, 1, 1], [], []>} : vector<288x6xbf16>, vector<6x16xbf16>, vector<288x16xf32> -> vector<288x16xf32>
    %45 = vector.extract_strided_slice %14 {offsets = [24, 0], sizes = [288, 6], strides = [1, 1]} : vector<320x6xf32> to vector<288x6xf32>
    %46 = arith.truncf %45 : vector<288x6xf32> to vector<288x6xbf16>
    %c6 = arith.constant 6 : index
    %c0_25 = arith.constant 0 : index
    %c0_26 = arith.constant 0 : index
    %47 = vector.load %arg3[%c6, %c0_25, %c0_26] : memref<9x6x16xbf16, #tpu.memory_space<vmem>>, vector<1x6x16xbf16>
    %48 = vector.shape_cast %47 : vector<1x6x16xbf16> to vector<6x16xbf16>
    %cst_27 = arith.constant dense<0.000000e+00> : vector<288x16xf32>
    %49 = tpu.matmul %46, %48, %cst_27 {dimension_numbers = #tpu.dot_dimension_numbers<[1], [0], [0], [1], [0, 0, 1, 1], [], []>} : vector<288x6xbf16>, vector<6x16xbf16>, vector<288x16xf32> -> vector<288x16xf32>
    %50 = vector.extract_strided_slice %14 {offsets = [25, 0], sizes = [288, 6], strides = [1, 1]} : vector<320x6xf32> to vector<288x6xf32>
    %51 = arith.truncf %50 : vector<288x6xf32> to vector<288x6xbf16>
    %c7 = arith.constant 7 : index
    %c0_28 = arith.constant 0 : index
    %c0_29 = arith.constant 0 : index
    %52 = vector.load %arg3[%c7, %c0_28, %c0_29] : memref<9x6x16xbf16, #tpu.memory_space<vmem>>, vector<1x6x16xbf16>
    %53 = vector.shape_cast %52 : vector<1x6x16xbf16> to vector<6x16xbf16>
    %cst_30 = arith.constant dense<0.000000e+00> : vector<288x16xf32>
    %54 = tpu.matmul %51, %53, %cst_30 {dimension_numbers = #tpu.dot_dimension_numbers<[1], [0], [0], [1], [0, 0, 1, 1], [], []>} : vector<288x6xbf16>, vector<6x16xbf16>, vector<288x16xf32> -> vector<288x16xf32>
    %55 = vector.extract_strided_slice %14 {offsets = [26, 0], sizes = [288, 6], strides = [1, 1]} : vector<320x6xf32> to vector<288x6xf32>
    %56 = arith.truncf %55 : vector<288x6xf32> to vector<288x6xbf16>
    %c8 = arith.constant 8 : index
    %c0_31 = arith.constant 0 : index
    %c0_32 = arith.constant 0 : index
    %57 = vector.load %arg3[%c8, %c0_31, %c0_32] : memref<9x6x16xbf16, #tpu.memory_space<vmem>>, vector<1x6x16xbf16>
    %58 = vector.shape_cast %57 : vector<1x6x16xbf16> to vector<6x16xbf16>
    %cst_33 = arith.constant dense<0.000000e+00> : vector<288x16xf32>
    %59 = tpu.matmul %56, %58, %cst_33 {dimension_numbers = #tpu.dot_dimension_numbers<[1], [0], [0], [1], [0, 0, 1, 1], [], []>} : vector<288x6xbf16>, vector<6x16xbf16>, vector<288x16xf32> -> vector<288x16xf32>
    %60 = arith.addf %19, %24 : vector<288x16xf32>
    %61 = arith.addf %29, %34 : vector<288x16xf32>
    %62 = arith.addf %39, %44 : vector<288x16xf32>
    %63 = arith.addf %49, %54 : vector<288x16xf32>
    %64 = arith.addf %60, %61 : vector<288x16xf32>
    %65 = arith.addf %62, %63 : vector<288x16xf32>
    %66 = arith.addf %64, %65 : vector<288x16xf32>
    %67 = arith.addf %66, %59 : vector<288x16xf32>
    %c3_34 = arith.constant 3 : index
    %c0_35 = arith.constant 0 : index
    %68 = vector.load %arg7[%c3_34, %c0_35] : memref<4x128xf32, #tpu.memory_space<vmem>>, vector<1x128xf32>
    %69 = vector.extract_strided_slice %68 {offsets = [0, 0], sizes = [1, 16], strides = [1, 1]} : vector<1x128xf32> to vector<1x16xf32>
    %70 = vector.broadcast %69 : vector<1x16xf32> to vector<288x16xf32>
    %71 = arith.addf %67, %70 : vector<288x16xf32>
    %cst_36 = arith.constant 0.000000e+00 : f32
    %72 = vector.broadcast %cst_36 : f32 to vector<288x16xf32>
    %73 = arith.maximumf %71, %72 : vector<288x16xf32>
    %cst_37 = arith.constant 0.000000e+00 : f32
    %74 = vector.broadcast %cst_37 : f32 to vector<16x16xf32>
    %75 = tpu.concatenate %73, %74 in 0 : vector<288x16xf32>, vector<16x16xf32> -> vector<304x16xf32>
    %76 = vector.extract_strided_slice %75 {offsets = [0, 0], sizes = [288, 16], strides = [1, 1]} : vector<304x16xf32> to vector<288x16xf32>
    %77 = vector.extract_strided_slice %75 {offsets = [1, 0], sizes = [288, 16], strides = [1, 1]} : vector<304x16xf32> to vector<288x16xf32>
    %78 = arith.maximumf %76, %77 : vector<288x16xf32>
    %79 = vector.extract_strided_slice %75 {offsets = [12, 0], sizes = [288, 16], strides = [1, 1]} : vector<304x16xf32> to vector<288x16xf32>
    %80 = vector.extract_strided_slice %75 {offsets = [13, 0], sizes = [288, 16], strides = [1, 1]} : vector<304x16xf32> to vector<288x16xf32>
    %81 = arith.maximumf %79, %80 : vector<288x16xf32>
    %82 = arith.maximumf %78, %81 : vector<288x16xf32>
    %c0_38 = arith.constant 0 : index
    %c0_39 = arith.constant 0 : index
    %83 = vector.load %arg9[%c0_38, %c0_39] : memref<288x16xf32, #tpu.memory_space<vmem>>, vector<288x16xf32>
    tpu.vector_store %arg9[%c0_38, %c0_39], %82 {strides = array<i32>} : memref<288x16xf32, #tpu.memory_space<vmem>>, vector<288x16xf32>,
    %c0_40 = arith.constant 0 : index
    %c0_41 = arith.constant 0 : index
    %84 = tpu.strided_load %arg9[%c0_40, %c0_41] {strides = array<i32: 144, 1>} : memref<288x16xf32, #tpu.memory_space<vmem>>, vector<2x16xf32>
    %85 = arith.truncf %84 : vector<2x16xf32> to vector<2x16xbf16>
    %c0_42 = arith.constant 0 : index
    %c0_43 = arith.constant 0 : index
    %c0_44 = arith.constant 0 : index
    %86 = vector.load %arg4[%c0_42, %c0_43, %c0_44] : memref<25x16x128xbf16, #tpu.memory_space<vmem>>, vector<1x16x128xbf16>
    %87 = vector.shape_cast %86 : vector<1x16x128xbf16> to vector<16x128xbf16>
    %cst_45 = arith.constant dense<0.000000e+00> : vector<2x128xf32>
    %88 = tpu.matmul %85, %87, %cst_45 {dimension_numbers = #tpu.dot_dimension_numbers<[1], [0], [0], [1], [0, 0, 1, 1], [], []>} : vector<2x16xbf16>, vector<16x128xbf16>, vector<2x128xf32> -> vector<2x128xf32>
    %c2_46 = arith.constant 2 : index
    %c0_47 = arith.constant 0 : index
    %89 = tpu.strided_load %arg9[%c2_46, %c0_47] {strides = array<i32: 144, 1>} : memref<288x16xf32, #tpu.memory_space<vmem>>, vector<2x16xf32>
    %90 = arith.truncf %89 : vector<2x16xf32> to vector<2x16xbf16>
    %c1_48 = arith.constant 1 : index
    %c0_49 = arith.constant 0 : index
    %c0_50 = arith.constant 0 : index
    %91 = vector.load %arg4[%c1_48, %c0_49, %c0_50] : memref<25x16x128xbf16, #tpu.memory_space<vmem>>, vector<1x16x128xbf16>
    %92 = vector.shape_cast %91 : vector<1x16x128xbf16> to vector<16x128xbf16>
    %cst_51 = arith.constant dense<0.000000e+00> : vector<2x128xf32>
    %93 = tpu.matmul %90, %92, %cst_51 {dimension_numbers = #tpu.dot_dimension_numbers<[1], [0], [0], [1], [0, 0, 1, 1], [], []>} : vector<2x16xbf16>, vector<16x128xbf16>, vector<2x128xf32> -> vector<2x128xf32>
    %c4_52 = arith.constant 4 : index
    %c0_53 = arith.constant 0 : index
    %94 = tpu.strided_load %arg9[%c4_52, %c0_53] {strides = array<i32: 144, 1>} : memref<288x16xf32, #tpu.memory_space<vmem>>, vector<2x16xf32>
    %95 = arith.truncf %94 : vector<2x16xf32> to vector<2x16xbf16>
    %c2_54 = arith.constant 2 : index
    %c0_55 = arith.constant 0 : index
    %c0_56 = arith.constant 0 : index
    %96 = vector.load %arg4[%c2_54, %c0_55, %c0_56] : memref<25x16x128xbf16, #tpu.memory_space<vmem>>, vector<1x16x128xbf16>
    %97 = vector.shape_cast %96 : vector<1x16x128xbf16> to vector<16x128xbf16>
    %cst_57 = arith.constant dense<0.000000e+00> : vector<2x128xf32>
    %98 = tpu.matmul %95, %97, %cst_57 {dimension_numbers = #tpu.dot_dimension_numbers<[1], [0], [0], [1], [0, 0, 1, 1], [], []>} : vector<2x16xbf16>, vector<16x128xbf16>, vector<2x128xf32> -> vector<2x128xf32>
    %c6_58 = arith.constant 6 : index
    %c0_59 = arith.constant 0 : index
    %99 = tpu.strided_load %arg9[%c6_58, %c0_59] {strides = array<i32: 144, 1>} : memref<288x16xf32, #tpu.memory_space<vmem>>, vector<2x16xf32>
    %100 = arith.truncf %99 : vector<2x16xf32> to vector<2x16xbf16>
    %c3_60 = arith.constant 3 : index
    %c0_61 = arith.constant 0 : index
    %c0_62 = arith.constant 0 : index
    %101 = vector.load %arg4[%c3_60, %c0_61, %c0_62] : memref<25x16x128xbf16, #tpu.memory_space<vmem>>, vector<1x16x128xbf16>
    %102 = vector.shape_cast %101 : vector<1x16x128xbf16> to vector<16x128xbf16>
    %cst_63 = arith.constant dense<0.000000e+00> : vector<2x128xf32>
    %103 = tpu.matmul %100, %102, %cst_63 {dimension_numbers = #tpu.dot_dimension_numbers<[1], [0], [0], [1], [0, 0, 1, 1], [], []>} : vector<2x16xbf16>, vector<16x128xbf16>, vector<2x128xf32> -> vector<2x128xf32>
    %c8_64 = arith.constant 8 : index
    %c0_65 = arith.constant 0 : index
    %104 = tpu.strided_load %arg9[%c8_64, %c0_65] {strides = array<i32: 144, 1>} : memref<288x16xf32, #tpu.memory_space<vmem>>, vector<2x16xf32>
    %105 = arith.truncf %104 : vector<2x16xf32> to vector<2x16xbf16>
    %c4_66 = arith.constant 4 : index
    %c0_67 = arith.constant 0 : index
    %c0_68 = arith.constant 0 : index
    %106 = vector.load %arg4[%c4_66, %c0_67, %c0_68] : memref<25x16x128xbf16, #tpu.memory_space<vmem>>, vector<1x16x128xbf16>
    %107 = vector.shape_cast %106 : vector<1x16x128xbf16> to vector<16x128xbf16>
    %cst_69 = arith.constant dense<0.000000e+00> : vector<2x128xf32>
    %108 = tpu.matmul %105, %107, %cst_69 {dimension_numbers = #tpu.dot_dimension_numbers<[1], [0], [0], [1], [0, 0, 1, 1], [], []>} : vector<2x16xbf16>, vector<16x128xbf16>, vector<2x128xf32> -> vector<2x128xf32>
    %c24 = arith.constant 24 : index
    %c0_70 = arith.constant 0 : index
    %109 = tpu.strided_load %arg9[%c24, %c0_70] {strides = array<i32: 144, 1>} : memref<288x16xf32, #tpu.memory_space<vmem>>, vector<2x16xf32>
    %110 = arith.truncf %109 : vector<2x16xf32> to vector<2x16xbf16>
    %c5_71 = arith.constant 5 : index
    %c0_72 = arith.constant 0 : index
    %c0_73 = arith.constant 0 : index
    %111 = vector.load %arg4[%c5_71, %c0_72, %c0_73] : memref<25x16x128xbf16, #tpu.memory_space<vmem>>, vector<1x16x128xbf16>
    %112 = vector.shape_cast %111 : vector<1x16x128xbf16> to vector<16x128xbf16>
    %cst_74 = arith.constant dense<0.000000e+00> : vector<2x128xf32>
    %113 = tpu.matmul %110, %112, %cst_74 {dimension_numbers = #tpu.dot_dimension_numbers<[1], [0], [0], [1], [0, 0, 1, 1], [], []>} : vector<2x16xbf16>, vector<16x128xbf16>, vector<2x128xf32> -> vector<2x128xf32>
    %c26 = arith.constant 26 : index
    %c0_75 = arith.constant 0 : index
    %114 = tpu.strided_load %arg9[%c26, %c0_75] {strides = array<i32: 144, 1>} : memref<288x16xf32, #tpu.memory_space<vmem>>, vector<2x16xf32>
    %115 = arith.truncf %114 : vector<2x16xf32> to vector<2x16xbf16>
    %c6_76 = arith.constant 6 : index
    %c0_77 = arith.constant 0 : index
    %c0_78 = arith.constant 0 : index
    %116 = vector.load %arg4[%c6_76, %c0_77, %c0_78] : memref<25x16x128xbf16, #tpu.memory_space<vmem>>, vector<1x16x128xbf16>
    %117 = vector.shape_cast %116 : vector<1x16x128xbf16> to vector<16x128xbf16>
    %cst_79 = arith.constant dense<0.000000e+00> : vector<2x128xf32>
    %118 = tpu.matmul %115, %117, %cst_79 {dimension_numbers = #tpu.dot_dimension_numbers<[1], [0], [0], [1], [0, 0, 1, 1], [], []>} : vector<2x16xbf16>, vector<16x128xbf16>, vector<2x128xf32> -> vector<2x128xf32>
    %c28 = arith.constant 28 : index
    %c0_80 = arith.constant 0 : index
    %119 = tpu.strided_load %arg9[%c28, %c0_80] {strides = array<i32: 144, 1>} : memref<288x16xf32, #tpu.memory_space<vmem>>, vector<2x16xf32>
    %120 = arith.truncf %119 : vector<2x16xf32> to vector<2x16xbf16>
    %c7_81 = arith.constant 7 : index
    %c0_82 = arith.constant 0 : index
    %c0_83 = arith.constant 0 : index
    %121 = vector.load %arg4[%c7_81, %c0_82, %c0_83] : memref<25x16x128xbf16, #tpu.memory_space<vmem>>, vector<1x16x128xbf16>
    %122 = vector.shape_cast %121 : vector<1x16x128xbf16> to vector<16x128xbf16>
    %cst_84 = arith.constant dense<0.000000e+00> : vector<2x128xf32>
    %123 = tpu.matmul %120, %122, %cst_84 {dimension_numbers = #tpu.dot_dimension_numbers<[1], [0], [0], [1], [0, 0, 1, 1], [], []>} : vector<2x16xbf16>, vector<16x128xbf16>, vector<2x128xf32> -> vector<2x128xf32>
    %c30 = arith.constant 30 : index
    %c0_85 = arith.constant 0 : index
    %124 = tpu.strided_load %arg9[%c30, %c0_85] {strides = array<i32: 144, 1>} : memref<288x16xf32, #tpu.memory_space<vmem>>, vector<2x16xf32>
    %125 = arith.truncf %124 : vector<2x16xf32> to vector<2x16xbf16>
    %c8_86 = arith.constant 8 : index
    %c0_87 = arith.constant 0 : index
    %c0_88 = arith.constant 0 : index
    %126 = vector.load %arg4[%c8_86, %c0_87, %c0_88] : memref<25x16x128xbf16, #tpu.memory_space<vmem>>, vector<1x16x128xbf16>
    %127 = vector.shape_cast %126 : vector<1x16x128xbf16> to vector<16x128xbf16>
    %cst_89 = arith.constant dense<0.000000e+00> : vector<2x128xf32>
    %128 = tpu.matmul %125, %127, %cst_89 {dimension_numbers = #tpu.dot_dimension_numbers<[1], [0], [0], [1], [0, 0, 1, 1], [], []>} : vector<2x16xbf16>, vector<16x128xbf16>, vector<2x128xf32> -> vector<2x128xf32>
    %c32 = arith.constant 32 : index
    %c0_90 = arith.constant 0 : index
    %129 = tpu.strided_load %arg9[%c32, %c0_90] {strides = array<i32: 144, 1>} : memref<288x16xf32, #tpu.memory_space<vmem>>, vector<2x16xf32>
    %130 = arith.truncf %129 : vector<2x16xf32> to vector<2x16xbf16>
    %c9 = arith.constant 9 : index
    %c0_91 = arith.constant 0 : index
    %c0_92 = arith.constant 0 : index
    %131 = vector.load %arg4[%c9, %c0_91, %c0_92] : memref<25x16x128xbf16, #tpu.memory_space<vmem>>, vector<1x16x128xbf16>
    %132 = vector.shape_cast %131 : vector<1x16x128xbf16> to vector<16x128xbf16>
    %cst_93 = arith.constant dense<0.000000e+00> : vector<2x128xf32>
    %133 = tpu.matmul %130, %132, %cst_93 {dimension_numbers = #tpu.dot_dimension_numbers<[1], [0], [0], [1], [0, 0, 1, 1], [], []>} : vector<2x16xbf16>, vector<16x128xbf16>, vector<2x128xf32> -> vector<2x128xf32>
    %c48 = arith.constant 48 : index
    %c0_94 = arith.constant 0 : index
    %134 = tpu.strided_load %arg9[%c48, %c0_94] {strides = array<i32: 144, 1>} : memref<288x16xf32, #tpu.memory_space<vmem>>, vector<2x16xf32>
    %135 = arith.truncf %134 : vector<2x16xf32> to vector<2x16xbf16>
    %c10 = arith.constant 10 : index
    %c0_95 = arith.constant 0 : index
    %c0_96 = arith.constant 0 : index
    %136 = vector.load %arg4[%c10, %c0_95, %c0_96] : memref<25x16x128xbf16, #tpu.memory_space<vmem>>, vector<1x16x128xbf16>
    %137 = vector.shape_cast %136 : vector<1x16x128xbf16> to vector<16x128xbf16>
    %cst_97 = arith.constant dense<0.000000e+00> : vector<2x128xf32>
    %138 = tpu.matmul %135, %137, %cst_97 {dimension_numbers = #tpu.dot_dimension_numbers<[1], [0], [0], [1], [0, 0, 1, 1], [], []>} : vector<2x16xbf16>, vector<16x128xbf16>, vector<2x128xf32> -> vector<2x128xf32>
    %c50 = arith.constant 50 : index
    %c0_98 = arith.constant 0 : index
    %139 = tpu.strided_load %arg9[%c50, %c0_98] {strides = array<i32: 144, 1>} : memref<288x16xf32, #tpu.memory_space<vmem>>, vector<2x16xf32>
    %140 = arith.truncf %139 : vector<2x16xf32> to vector<2x16xbf16>
    %c11 = arith.constant 11 : index
    %c0_99 = arith.constant 0 : index
    %c0_100 = arith.constant 0 : index
    %141 = vector.load %arg4[%c11, %c0_99, %c0_100] : memref<25x16x128xbf16, #tpu.memory_space<vmem>>, vector<1x16x128xbf16>
    %142 = vector.shape_cast %141 : vector<1x16x128xbf16> to vector<16x128xbf16>
    %cst_101 = arith.constant dense<0.000000e+00> : vector<2x128xf32>
    %143 = tpu.matmul %140, %142, %cst_101 {dimension_numbers = #tpu.dot_dimension_numbers<[1], [0], [0], [1], [0, 0, 1, 1], [], []>} : vector<2x16xbf16>, vector<16x128xbf16>, vector<2x128xf32> -> vector<2x128xf32>
    %c52 = arith.constant 52 : index
    %c0_102 = arith.constant 0 : index
    %144 = tpu.strided_load %arg9[%c52, %c0_102] {strides = array<i32: 144, 1>} : memref<288x16xf32, #tpu.memory_space<vmem>>, vector<2x16xf32>
    %145 = arith.truncf %144 : vector<2x16xf32> to vector<2x16xbf16>
    %c12 = arith.constant 12 : index
    %c0_103 = arith.constant 0 : index
    %c0_104 = arith.constant 0 : index
    %146 = vector.load %arg4[%c12, %c0_103, %c0_104] : memref<25x16x128xbf16, #tpu.memory_space<vmem>>, vector<1x16x128xbf16>
    %147 = vector.shape_cast %146 : vector<1x16x128xbf16> to vector<16x128xbf16>
    %cst_105 = arith.constant dense<0.000000e+00> : vector<2x128xf32>
    %148 = tpu.matmul %145, %147, %cst_105 {dimension_numbers = #tpu.dot_dimension_numbers<[1], [0], [0], [1], [0, 0, 1, 1], [], []>} : vector<2x16xbf16>, vector<16x128xbf16>, vector<2x128xf32> -> vector<2x128xf32>
    %c54 = arith.constant 54 : index
    %c0_106 = arith.constant 0 : index
    %149 = tpu.strided_load %arg9[%c54, %c0_106] {strides = array<i32: 144, 1>} : memref<288x16xf32, #tpu.memory_space<vmem>>, vector<2x16xf32>
    %150 = arith.truncf %149 : vector<2x16xf32> to vector<2x16xbf16>
    %c13 = arith.constant 13 : index
    %c0_107 = arith.constant 0 : index
    %c0_108 = arith.constant 0 : index
    %151 = vector.load %arg4[%c13, %c0_107, %c0_108] : memref<25x16x128xbf16, #tpu.memory_space<vmem>>, vector<1x16x128xbf16>
    %152 = vector.shape_cast %151 : vector<1x16x128xbf16> to vector<16x128xbf16>
    %cst_109 = arith.constant dense<0.000000e+00> : vector<2x128xf32>
    %153 = tpu.matmul %150, %152, %cst_109 {dimension_numbers = #tpu.dot_dimension_numbers<[1], [0], [0], [1], [0, 0, 1, 1], [], []>} : vector<2x16xbf16>, vector<16x128xbf16>, vector<2x128xf32> -> vector<2x128xf32>
    %c56 = arith.constant 56 : index
    %c0_110 = arith.constant 0 : index
    %154 = tpu.strided_load %arg9[%c56, %c0_110] {strides = array<i32: 144, 1>} : memref<288x16xf32, #tpu.memory_space<vmem>>, vector<2x16xf32>
    %155 = arith.truncf %154 : vector<2x16xf32> to vector<2x16xbf16>
    %c14 = arith.constant 14 : index
    %c0_111 = arith.constant 0 : index
    %c0_112 = arith.constant 0 : index
    %156 = vector.load %arg4[%c14, %c0_111, %c0_112] : memref<25x16x128xbf16, #tpu.memory_space<vmem>>, vector<1x16x128xbf16>
    %157 = vector.shape_cast %156 : vector<1x16x128xbf16> to vector<16x128xbf16>
    %cst_113 = arith.constant dense<0.000000e+00> : vector<2x128xf32>
    %158 = tpu.matmul %155, %157, %cst_113 {dimension_numbers = #tpu.dot_dimension_numbers<[1], [0], [0], [1], [0, 0, 1, 1], [], []>} : vector<2x16xbf16>, vector<16x128xbf16>, vector<2x128xf32> -> vector<2x128xf32>
    %c72 = arith.constant 72 : index
    %c0_114 = arith.constant 0 : index
    %159 = tpu.strided_load %arg9[%c72, %c0_114] {strides = array<i32: 144, 1>} : memref<288x16xf32, #tpu.memory_space<vmem>>, vector<2x16xf32>
    %160 = arith.truncf %159 : vector<2x16xf32> to vector<2x16xbf16>
    %c15 = arith.constant 15 : index
    %c0_115 = arith.constant 0 : index
    %c0_116 = arith.constant 0 : index
    %161 = vector.load %arg4[%c15, %c0_115, %c0_116] : memref<25x16x128xbf16, #tpu.memory_space<vmem>>, vector<1x16x128xbf16>
    %162 = vector.shape_cast %161 : vector<1x16x128xbf16> to vector<16x128xbf16>
    %cst_117 = arith.constant dense<0.000000e+00> : vector<2x128xf32>
    %163 = tpu.matmul %160, %162, %cst_117 {dimension_numbers = #tpu.dot_dimension_numbers<[1], [0], [0], [1], [0, 0, 1, 1], [], []>} : vector<2x16xbf16>, vector<16x128xbf16>, vector<2x128xf32> -> vector<2x128xf32>
    %c74 = arith.constant 74 : index
    %c0_118 = arith.constant 0 : index
    %164 = tpu.strided_load %arg9[%c74, %c0_118] {strides = array<i32: 144, 1>} : memref<288x16xf32, #tpu.memory_space<vmem>>, vector<2x16xf32>
    %165 = arith.truncf %164 : vector<2x16xf32> to vector<2x16xbf16>
    %c16 = arith.constant 16 : index
    %c0_119 = arith.constant 0 : index
    %c0_120 = arith.constant 0 : index
    %166 = vector.load %arg4[%c16, %c0_119, %c0_120] : memref<25x16x128xbf16, #tpu.memory_space<vmem>>, vector<1x16x128xbf16>
    %167 = vector.shape_cast %166 : vector<1x16x128xbf16> to vector<16x128xbf16>
    %cst_121 = arith.constant dense<0.000000e+00> : vector<2x128xf32>
    %168 = tpu.matmul %165, %167, %cst_121 {dimension_numbers = #tpu.dot_dimension_numbers<[1], [0], [0], [1], [0, 0, 1, 1], [], []>} : vector<2x16xbf16>, vector<16x128xbf16>, vector<2x128xf32> -> vector<2x128xf32>
    %c76 = arith.constant 76 : index
    %c0_122 = arith.constant 0 : index
    %169 = tpu.strided_load %arg9[%c76, %c0_122] {strides = array<i32: 144, 1>} : memref<288x16xf32, #tpu.memory_space<vmem>>, vector<2x16xf32>
    %170 = arith.truncf %169 : vector<2x16xf32> to vector<2x16xbf16>
    %c17 = arith.constant 17 : index
    %c0_123 = arith.constant 0 : index
    %c0_124 = arith.constant 0 : index
    %171 = vector.load %arg4[%c17, %c0_123, %c0_124] : memref<25x16x128xbf16, #tpu.memory_space<vmem>>, vector<1x16x128xbf16>
    %172 = vector.shape_cast %171 : vector<1x16x128xbf16> to vector<16x128xbf16>
    %cst_125 = arith.constant dense<0.000000e+00> : vector<2x128xf32>
    %173 = tpu.matmul %170, %172, %cst_125 {dimension_numbers = #tpu.dot_dimension_numbers<[1], [0], [0], [1], [0, 0, 1, 1], [], []>} : vector<2x16xbf16>, vector<16x128xbf16>, vector<2x128xf32> -> vector<2x128xf32>
    %c78 = arith.constant 78 : index
    %c0_126 = arith.constant 0 : index
    %174 = tpu.strided_load %arg9[%c78, %c0_126] {strides = array<i32: 144, 1>} : memref<288x16xf32, #tpu.memory_space<vmem>>, vector<2x16xf32>
    %175 = arith.truncf %174 : vector<2x16xf32> to vector<2x16xbf16>
    %c18 = arith.constant 18 : index
    %c0_127 = arith.constant 0 : index
    %c0_128 = arith.constant 0 : index
    %176 = vector.load %arg4[%c18, %c0_127, %c0_128] : memref<25x16x128xbf16, #tpu.memory_space<vmem>>, vector<1x16x128xbf16>
    %177 = vector.shape_cast %176 : vector<1x16x128xbf16> to vector<16x128xbf16>
    %cst_129 = arith.constant dense<0.000000e+00> : vector<2x128xf32>
    %178 = tpu.matmul %175, %177, %cst_129 {dimension_numbers = #tpu.dot_dimension_numbers<[1], [0], [0], [1], [0, 0, 1, 1], [], []>} : vector<2x16xbf16>, vector<16x128xbf16>, vector<2x128xf32> -> vector<2x128xf32>
    %c80 = arith.constant 80 : index
    %c0_130 = arith.constant 0 : index
    %179 = tpu.strided_load %arg9[%c80, %c0_130] {strides = array<i32: 144, 1>} : memref<288x16xf32, #tpu.memory_space<vmem>>, vector<2x16xf32>
    %180 = arith.truncf %179 : vector<2x16xf32> to vector<2x16xbf16>
    %c19 = arith.constant 19 : index
    %c0_131 = arith.constant 0 : index
    %c0_132 = arith.constant 0 : index
    %181 = vector.load %arg4[%c19, %c0_131, %c0_132] : memref<25x16x128xbf16, #tpu.memory_space<vmem>>, vector<1x16x128xbf16>
    %182 = vector.shape_cast %181 : vector<1x16x128xbf16> to vector<16x128xbf16>
    %cst_133 = arith.constant dense<0.000000e+00> : vector<2x128xf32>
    %183 = tpu.matmul %180, %182, %cst_133 {dimension_numbers = #tpu.dot_dimension_numbers<[1], [0], [0], [1], [0, 0, 1, 1], [], []>} : vector<2x16xbf16>, vector<16x128xbf16>, vector<2x128xf32> -> vector<2x128xf32>
    %c96 = arith.constant 96 : index
    %c0_134 = arith.constant 0 : index
    %184 = tpu.strided_load %arg9[%c96, %c0_134] {strides = array<i32: 144, 1>} : memref<288x16xf32, #tpu.memory_space<vmem>>, vector<2x16xf32>
    %185 = arith.truncf %184 : vector<2x16xf32> to vector<2x16xbf16>
    %c20 = arith.constant 20 : index
    %c0_135 = arith.constant 0 : index
    %c0_136 = arith.constant 0 : index
    %186 = vector.load %arg4[%c20, %c0_135, %c0_136] : memref<25x16x128xbf16, #tpu.memory_space<vmem>>, vector<1x16x128xbf16>
    %187 = vector.shape_cast %186 : vector<1x16x128xbf16> to vector<16x128xbf16>
    %cst_137 = arith.constant dense<0.000000e+00> : vector<2x128xf32>
    %188 = tpu.matmul %185, %187, %cst_137 {dimension_numbers = #tpu.dot_dimension_numbers<[1], [0], [0], [1], [0, 0, 1, 1], [], []>} : vector<2x16xbf16>, vector<16x128xbf16>, vector<2x128xf32> -> vector<2x128xf32>
    %c98 = arith.constant 98 : index
    %c0_138 = arith.constant 0 : index
    %189 = tpu.strided_load %arg9[%c98, %c0_138] {strides = array<i32: 144, 1>} : memref<288x16xf32, #tpu.memory_space<vmem>>, vector<2x16xf32>
    %190 = arith.truncf %189 : vector<2x16xf32> to vector<2x16xbf16>
    %c21 = arith.constant 21 : index
    %c0_139 = arith.constant 0 : index
    %c0_140 = arith.constant 0 : index
    %191 = vector.load %arg4[%c21, %c0_139, %c0_140] : memref<25x16x128xbf16, #tpu.memory_space<vmem>>, vector<1x16x128xbf16>
    %192 = vector.shape_cast %191 : vector<1x16x128xbf16> to vector<16x128xbf16>
    %cst_141 = arith.constant dense<0.000000e+00> : vector<2x128xf32>
    %193 = tpu.matmul %190, %192, %cst_141 {dimension_numbers = #tpu.dot_dimension_numbers<[1], [0], [0], [1], [0, 0, 1, 1], [], []>} : vector<2x16xbf16>, vector<16x128xbf16>, vector<2x128xf32> -> vector<2x128xf32>
    %c100 = arith.constant 100 : index
    %c0_142 = arith.constant 0 : index
    %194 = tpu.strided_load %arg9[%c100, %c0_142] {strides = array<i32: 144, 1>} : memref<288x16xf32, #tpu.memory_space<vmem>>, vector<2x16xf32>
    %195 = arith.truncf %194 : vector<2x16xf32> to vector<2x16xbf16>
    %c22 = arith.constant 22 : index
    %c0_143 = arith.constant 0 : index
    %c0_144 = arith.constant 0 : index
    %196 = vector.load %arg4[%c22, %c0_143, %c0_144] : memref<25x16x128xbf16, #tpu.memory_space<vmem>>, vector<1x16x128xbf16>
    %197 = vector.shape_cast %196 : vector<1x16x128xbf16> to vector<16x128xbf16>
    %cst_145 = arith.constant dense<0.000000e+00> : vector<2x128xf32>
    %198 = tpu.matmul %195, %197, %cst_145 {dimension_numbers = #tpu.dot_dimension_numbers<[1], [0], [0], [1], [0, 0, 1, 1], [], []>} : vector<2x16xbf16>, vector<16x128xbf16>, vector<2x128xf32> -> vector<2x128xf32>
    %c102 = arith.constant 102 : index
    %c0_146 = arith.constant 0 : index
    %199 = tpu.strided_load %arg9[%c102, %c0_146] {strides = array<i32: 144, 1>} : memref<288x16xf32, #tpu.memory_space<vmem>>, vector<2x16xf32>
    %200 = arith.truncf %199 : vector<2x16xf32> to vector<2x16xbf16>
    %c23 = arith.constant 23 : index
    %c0_147 = arith.constant 0 : index
    %c0_148 = arith.constant 0 : index
    %201 = vector.load %arg4[%c23, %c0_147, %c0_148] : memref<25x16x128xbf16, #tpu.memory_space<vmem>>, vector<1x16x128xbf16>
    %202 = vector.shape_cast %201 : vector<1x16x128xbf16> to vector<16x128xbf16>
    %cst_149 = arith.constant dense<0.000000e+00> : vector<2x128xf32>
    %203 = tpu.matmul %200, %202, %cst_149 {dimension_numbers = #tpu.dot_dimension_numbers<[1], [0], [0], [1], [0, 0, 1, 1], [], []>} : vector<2x16xbf16>, vector<16x128xbf16>, vector<2x128xf32> -> vector<2x128xf32>
    %c104 = arith.constant 104 : index
    %c0_150 = arith.constant 0 : index
    %204 = tpu.strided_load %arg9[%c104, %c0_150] {strides = array<i32: 144, 1>} : memref<288x16xf32, #tpu.memory_space<vmem>>, vector<2x16xf32>
    %205 = arith.truncf %204 : vector<2x16xf32> to vector<2x16xbf16>
    %c24_151 = arith.constant 24 : index
    %c0_152 = arith.constant 0 : index
    %c0_153 = arith.constant 0 : index
    %206 = vector.load %arg4[%c24_151, %c0_152, %c0_153] : memref<25x16x128xbf16, #tpu.memory_space<vmem>>, vector<1x16x128xbf16>
    %207 = vector.shape_cast %206 : vector<1x16x128xbf16> to vector<16x128xbf16>
    %cst_154 = arith.constant dense<0.000000e+00> : vector<2x128xf32>
    %208 = tpu.matmul %205, %207, %cst_154 {dimension_numbers = #tpu.dot_dimension_numbers<[1], [0], [0], [1], [0, 0, 1, 1], [], []>} : vector<2x16xbf16>, vector<16x128xbf16>, vector<2x128xf32> -> vector<2x128xf32>
    %209 = arith.addf %88, %93 : vector<2x128xf32>
    %210 = arith.addf %98, %103 : vector<2x128xf32>
    %211 = arith.addf %108, %113 : vector<2x128xf32>
    %212 = arith.addf %118, %123 : vector<2x128xf32>
    %213 = arith.addf %128, %133 : vector<2x128xf32>
    %214 = arith.addf %138, %143 : vector<2x128xf32>
    %215 = arith.addf %148, %153 : vector<2x128xf32>
    %216 = arith.addf %158, %163 : vector<2x128xf32>
    %217 = arith.addf %168, %173 : vector<2x128xf32>
    %218 = arith.addf %178, %183 : vector<2x128xf32>
    %219 = arith.addf %188, %193 : vector<2x128xf32>
    %220 = arith.addf %198, %203 : vector<2x128xf32>
    %221 = arith.addf %209, %210 : vector<2x128xf32>
    %222 = arith.addf %211, %212 : vector<2x128xf32>
    %223 = arith.addf %213, %214 : vector<2x128xf32>
    %224 = arith.addf %215, %216 : vector<2x128xf32>
    %225 = arith.addf %217, %218 : vector<2x128xf32>
    %226 = arith.addf %219, %220 : vector<2x128xf32>
    %227 = arith.addf %221, %222 : vector<2x128xf32>
    %228 = arith.addf %223, %224 : vector<2x128xf32>
    %229 = arith.addf %225, %226 : vector<2x128xf32>
    %230 = arith.addf %227, %228 : vector<2x128xf32>
    %231 = arith.addf %229, %208 : vector<2x128xf32>
    %232 = arith.addf %230, %231 : vector<2x128xf32>
    %c0_155 = arith.constant 0 : index
    %c0_156 = arith.constant 0 : index
    %233 = vector.load %arg7[%c0_155, %c0_156] : memref<4x128xf32, #tpu.memory_space<vmem>>, vector<1x128xf32>
    %234 = vector.broadcast %233 : vector<1x128xf32> to vector<2x128xf32>
    %235 = arith.addf %232, %234 : vector<2x128xf32>
    %cst_157 = arith.constant 0.000000e+00 : f32
    %236 = vector.broadcast %cst_157 : f32 to vector<2x128xf32>
    %237 = arith.maximumf %235, %236 : vector<2x128xf32>
    %238 = arith.truncf %237 : vector<2x128xf32> to vector<2x128xbf16>
    %c0_158 = arith.constant 0 : index
    %c0_159 = arith.constant 0 : index
    %239 = vector.load %arg5[%c0_158, %c0_159] : memref<128x128xbf16, #tpu.memory_space<vmem>>, vector<128x128xbf16>
    %cst_160 = arith.constant dense<0.000000e+00> : vector<2x128xf32>
    %240 = tpu.matmul %238, %239, %cst_160 {dimension_numbers = #tpu.dot_dimension_numbers<[1], [0], [0], [1], [0, 0, 1, 1], [], []>} : vector<2x128xbf16>, vector<128x128xbf16>, vector<2x128xf32> -> vector<2x128xf32>
    %c1_161 = arith.constant 1 : index
    %c0_162 = arith.constant 0 : index
    %241 = vector.load %arg7[%c1_161, %c0_162] : memref<4x128xf32, #tpu.memory_space<vmem>>, vector<1x128xf32>
    %242 = vector.broadcast %241 : vector<1x128xf32> to vector<2x128xf32>
    %243 = arith.addf %240, %242 : vector<2x128xf32>
    %cst_163 = arith.constant 0.000000e+00 : f32
    %244 = vector.broadcast %cst_163 : f32 to vector<2x128xf32>
    %245 = arith.maximumf %243, %244 : vector<2x128xf32>
    %246 = arith.truncf %245 : vector<2x128xf32> to vector<2x128xbf16>
    %c0_164 = arith.constant 0 : index
    %c0_165 = arith.constant 0 : index
    %247 = vector.load %arg6[%c0_164, %c0_165] : memref<128x128xbf16, #tpu.memory_space<vmem>>, vector<128x128xbf16>
    %cst_166 = arith.constant dense<0.000000e+00> : vector<2x128xf32>
    %248 = tpu.matmul %246, %247, %cst_166 {dimension_numbers = #tpu.dot_dimension_numbers<[1], [0], [0], [1], [0, 0, 1, 1], [], []>} : vector<2x128xbf16>, vector<128x128xbf16>, vector<2x128xf32> -> vector<2x128xf32>
    %c2_167 = arith.constant 2 : index
    %c0_168 = arith.constant 0 : index
    %249 = vector.load %arg7[%c2_167, %c0_168] : memref<4x128xf32, #tpu.memory_space<vmem>>, vector<1x128xf32>
    %250 = vector.broadcast %249 : vector<1x128xf32> to vector<2x128xf32>
    %251 = arith.addf %248, %250 : vector<2x128xf32>
    %c0_169 = arith.constant 0 : index
    %c0_170 = arith.constant 0 : index
    %252 = vector.load %arg8[%c0_169, %c0_170] : memref<2x128xf32, #tpu.memory_space<vmem>>, vector<2x128xf32>
    tpu.vector_store %arg8[%c0_169, %c0_170], %251 {strides = array<i32>} : memref<2x128xf32, #tpu.memory_space<vmem>>, vector<2x128xf32>,
    return
  }
  func.func @transform_0(%arg0: i32) -> (i32, i32, i32) {
    %c0_i32 = arith.constant 0 : i32
    %c0_i32_0 = arith.constant 0 : i32
    %c0_i32_1 = arith.constant 0 : i32
    return %c0_i32, %arg0, %c0_i32_0 : i32, i32, i32
  }
  func.func @transform_1(%arg0: i32) -> (i32, i32) {
    %c0_i32 = arith.constant 0 : i32
    %c0_i32_0 = arith.constant 0 : i32
    %c0_i32_1 = arith.constant 0 : i32
    return %c0_i32, %c0_i32_0 : i32, i32
  }
  func.func @transform_2(%arg0: i32) -> (i32, i32, i32) {
    %c0_i32 = arith.constant 0 : i32
    %c0_i32_0 = arith.constant 0 : i32
    %c0_i32_1 = arith.constant 0 : i32
    %c0_i32_2 = arith.constant 0 : i32
    return %c0_i32, %c0_i32_0, %c0_i32_1 : i32, i32, i32
  }
  func.func @transform_3(%arg0: i32) -> (i32, i32, i32) {
    %c0_i32 = arith.constant 0 : i32
    %c0_i32_0 = arith.constant 0 : i32
    %c0_i32_1 = arith.constant 0 : i32
    %c0_i32_2 = arith.constant 0 : i32
    return %c0_i32, %c0_i32_0, %c0_i32_1 : i32, i32, i32
  }
  func.func @transform_4(%arg0: i32) -> (i32, i32) {
    %c0_i32 = arith.constant 0 : i32
    %c0_i32_0 = arith.constant 0 : i32
    %c0_i32_1 = arith.constant 0 : i32
    return %c0_i32, %c0_i32_0 : i32, i32
  }
  func.func @transform_5(%arg0: i32) -> (i32, i32) {
    %c0_i32 = arith.constant 0 : i32
    %c0_i32_0 = arith.constant 0 : i32
    %c0_i32_1 = arith.constant 0 : i32
    return %c0_i32, %c0_i32_0 : i32, i32
  }
  func.func @transform_6(%arg0: i32) -> (i32, i32) {
    %c0_i32 = arith.constant 0 : i32
    %c0_i32_0 = arith.constant 0 : i32
    %c0_i32_1 = arith.constant 0 : i32
    return %c0_i32, %c0_i32_0 : i32, i32
  }
  func.func @transform_7(%arg0: i32) -> (i32, i32) {
    %c0_i32 = arith.constant 0 : i32
    %c0_i32_0 = arith.constant 0 : i32
    return %arg0, %c0_i32 : i32, i32
  }
}

</mosaic_0001>

<llo_original>
// kernel: forward.1
$region0: #{forward.1}
  #allocation0 [shape = 'u32[]', space=smem, size = 0x4, offset = 0x4, fixed_abs, tag = 'smem constant byte address 0x4 - core index']
  #allocation1 [shape = 'u32[144,128]{1,0:T(1,128)}', space=vmem, size = 0x12000, scoped, tag = 'internal scratch']
  #allocation2 [shape = 'f32[288,16]{1,0:T(8,128)}', space=vmem, size = 0x24000, scoped, tag = 'scratch operand']
  %s0 = inlined_call_operand.vmem [shape: bf16[4,288,26], index: 0, kind: input, shape index: {}]
  %s1 = inlined_call_operand.vmem [shape: bf16[26,6], index: 1, kind: input, shape index: {}]
  %s2 = inlined_call_operand.vmem [shape: bf16[9,6,16], index: 2, kind: input, shape index: {}]
  %s3 = inlined_call_operand.vmem [shape: bf16[25,16,128], index: 3, kind: input, shape index: {}]
  %s4 = inlined_call_operand.vmem [shape: bf16[128,128], index: 4, kind: input, shape index: {}]
  %s5 = inlined_call_operand.vmem [shape: bf16[128,128], index: 5, kind: input, shape index: {}]
  %s6 = inlined_call_operand.vmem [shape: f32[4,128], index: 6, kind: input, shape index: {}]
  %s7 = inlined_call_operand.hbm [shape: f32[2,128], index: 7, kind: output, shape index: {}]
  %s8 = sld [smem:[#allocation0]]
  $region38: #{forward.1} parent=0
    _
  %s10 = ssub.s32 1, %s8
  %s11 = scalar_select 0, %s10, %s8
  $region1: #{forward.1} parent=0
    #allocation3 [shape = 'u8[1024]{0}', space=vmem, size = 0x400, scoped, tag = 'output window, operand 0, single buffered']
    #allocation4 [shape = 's32[1]{0}', space=sflag, size = 0x4, scoped, tag = 'scoped memory for forward.1']
    %12 = vsyncpa [#allocation4], 0
    // Predicated region
    $region2: #{forward.1} parent=1 // pred_check
      _
    $region3: #{forward.1} parent=1 // pred_check_branch
      %14 = sbr.rel (0) target = $region5
    $region4: #{forward.1} parent=1 // pred_region
      _
    $region5: #{forward.1} parent=1 // pred_fallthru
      _
    // Predicated region
    $region6: #{forward.1} parent=1 // pred_check
      _
    $region7: #{forward.1} parent=1 // pred_check_branch
      %16 = sbr.rel (0) target = $region9
    $region8: #{forward.1} parent=1 // pred_region
      _
    $region9: #{forward.1} parent=1 // pred_fallthru
      _
    // Predicated region
    $region10: #{forward.1} parent=1 // pred_check
      _
    $region11: #{forward.1} parent=1 // pred_check_branch
      %18 = sbr.rel (0) target = $region13
    $region12: #{forward.1} parent=1 // pred_region
      _
    $region13: #{forward.1} parent=1 // pred_fallthru
      _
    // Predicated region
    $region14: #{forward.1} parent=1 // pred_check
      _
    $region15: #{forward.1} parent=1 // pred_check_branch
      %20 = sbr.rel (0) target = $region17
    $region16: #{forward.1} parent=1 // pred_region
      _
    $region17: #{forward.1} parent=1 // pred_fallthru
      _
    // Predicated region
    $region18: #{forward.1} parent=1 // pred_check
      _
    $region19: #{forward.1} parent=1 // pred_check_branch
      %22 = sbr.rel (0) target = $region21
    $region20: #{forward.1} parent=1 // pred_region
      _
    $region21: #{forward.1} parent=1 // pred_fallthru
      _
    // Predicated region
    $region22: #{forward.1} parent=1 // pred_check
      _
    $region23: #{forward.1} parent=1 // pred_check_branch
      %24 = sbr.rel (0) target = $region25
    $region24: #{forward.1} parent=1 // pred_region
      _
    $region25: #{forward.1} parent=1 // pred_fallthru
      _
    // Predicated region
    $region26: #{forward.1} parent=1 // pred_check
      _
    $region27: #{forward.1} parent=1 // pred_check_branch
      %26 = sbr.rel (0) target = $region29
    $region28: #{forward.1} parent=1 // pred_region
      _
    $region29: #{forward.1} parent=1 // pred_fallthru
      _
    %v28 = vld [vmem:[%s0] sm:$0xf]
    %v29 = vld [vmem:[%s0 + $0x4] sm:$0xf]
    %v30 = vld [vmem:[%s0 + $0x8] sm:$0xf]
    %v31 = vld [vmem:[%s0 + $0xc] sm:$0xf]
    %v32 = vld [vmem:[%s0 + $0x10] sm:$0xf]
    %v33 = vld [vmem:[%s0 + $0x14] sm:$0xf]
    %v34 = vld [vmem:[%s0 + $0x18] sm:$0xf]
    %v35 = vld [vmem:[%s0 + $0x1c] sm:$0xf]
    %v36 = vld [vmem:[%s0 + $0x20] sm:$0xf]
    %v37 = vld [vmem:[%s0 + $0x24] sm:$0xf]
    %v38 = vld [vmem:[%s0 + $0x28] sm:$0xf]
    %v39 = vld [vmem:[%s0 + $0x2c] sm:$0xf]
    %v40 = vld [vmem:[%s0 + $0x30] sm:$0xf]
    %v41 = vld [vmem:[%s0 + $0x34] sm:$0xf]
    %v42 = vld [vmem:[%s0 + $0x38] sm:$0xf]
    %v43 = vld [vmem:[%s0 + $0x3c] sm:$0xf]
    %v44 = vld [vmem:[%s0 + $0x40] sm:$0xf]
    %v45 = vld [vmem:[%s0 + $0x44] sm:$0xf]
    %v46 = vld [vmem:[%s0 + $0x48] sm:$0xf]
    %v47 = vld [vmem:[%s0 + $0x4c] sm:$0xf]
    %v48 = vld [vmem:[%s0 + $0x50] sm:$0xf]
    %v49 = vld [vmem:[%s0 + $0x54] sm:$0xf]
    %v50 = vld [vmem:[%s0 + $0x58] sm:$0xf]
    %v51 = vld [vmem:[%s0 + $0x5c] sm:$0xf]
    %v52 = vld [vmem:[%s0 + $0x60] sm:$0xf]
    %v53 = vld [vmem:[%s0 + $0x64] sm:$0xf]
    %v54 = vld [vmem:[%s0 + $0x68] sm:$0xf]
    %v55 = vld [vmem:[%s0 + $0x6c] sm:$0xf]
    %v56 = vld [vmem:[%s0 + $0x70] sm:$0xf]
    %v57 = vld [vmem:[%s0 + $0x74] sm:$0xf]
    %v58 = vld [vmem:[%s0 + $0x78] sm:$0xf]
    %v59 = vld [vmem:[%s0 + $0x7c] sm:$0xf]
    %v60 = vld [vmem:[%s0 + $0x80] sm:$0xf]
    %v61 = vld [vmem:[%s0 + $0x84] sm:$0xf]
    %v62 = vld [vmem:[%s0 + $0x88] sm:$0xf]
    %v63 = vld [vmem:[%s0 + $0x8c] sm:$0xf]
    %v64 = vld [vmem:[%s0 + $0x90] sm:$0xf]
    %v65 = vld [vmem:[%s0 + $0x94] sm:$0xf]
    %v66 = vld [vmem:[%s0 + $0x98] sm:$0xf]
    %v67 = vld [vmem:[%s0 + $0x9c] sm:$0xf]
    %v68 = vld [vmem:[%s0 + $0xa0] sm:$0xf]
    %v69 = vld [vmem:[%s0 + $0xa4] sm:$0xf]
    %v70 = vld [vmem:[%s0 + $0xa8] sm:$0xf]
    %v71 = vld [vmem:[%s0 + $0xac] sm:$0xf]
    %v72 = vld [vmem:[%s0 + $0xb0] sm:$0xf]
    %v73 = vld [vmem:[%s0 + $0xb4] sm:$0xf]
    %v74 = vld [vmem:[%s0 + $0xb8] sm:$0xf]
    %v75 = vld [vmem:[%s0 + $0xbc] sm:$0xf]
    %v76 = vld [vmem:[%s0 + $0xc0] sm:$0xf]
    %v77 = vld [vmem:[%s0 + $0xc4] sm:$0xf]
    %v78 = vld [vmem:[%s0 + $0xc8] sm:$0xf]
    %v79 = vld [vmem:[%s0 + $0xcc] sm:$0xf]
    %v80 = vld [vmem:[%s0 + $0xd0] sm:$0xf]
    %v81 = vld [vmem:[%s0 + $0xd4] sm:$0xf]
    %v82 = vld [vmem:[%s0 + $0xd8] sm:$0xf]
    %v83 = vld [vmem:[%s0 + $0xdc] sm:$0xf]
    %v84 = vld [vmem:[%s0 + $0xe0] sm:$0xf]
    %v85 = vld [vmem:[%s0 + $0xe4] sm:$0xf]
    %v86 = vld [vmem:[%s0 + $0xe8] sm:$0xf]
    %v87 = vld [vmem:[%s0 + $0xec] sm:$0xf]
    %v88 = vld [vmem:[%s0 + $0xf0] sm:$0xf]
    %v89 = vld [vmem:[%s0 + $0xf4] sm:$0xf]
    %v90 = vld [vmem:[%s0 + $0xf8] sm:$0xf]
    %v91 = vld [vmem:[%s0 + $0xfc] sm:$0xf]
    %v92 = vld [vmem:[%s0 + $0x100] sm:$0xf]
    %v93 = vld [vmem:[%s0 + $0x104] sm:$0xf]
    %v94 = vld [vmem:[%s0 + $0x108] sm:$0xf]
    %v95 = vld [vmem:[%s0 + $0x10c] sm:$0xf]
    %v96 = vld [vmem:[%s0 + $0x110] sm:$0xf]
    %v97 = vld [vmem:[%s0 + $0x114] sm:$0xf]
    %v98 = vld [vmem:[%s0 + $0x118] sm:$0xf]
    %v99 = vld [vmem:[%s0 + $0x11c] sm:$0xf]
    %v100 = vld [vmem:[%s0 + $0x120] sm:$0xf]
    %v101 = vld [vmem:[%s0 + $0x124] sm:$0xf]
    %v102 = vld [vmem:[%s0 + $0x128] sm:$0xf]
    %v103 = vld [vmem:[%s0 + $0x12c] sm:$0xf]
    %v104 = vld [vmem:[%s0 + $0x130] sm:$0xf]
    %v105 = vld [vmem:[%s0 + $0x134] sm:$0xf]
    %v106 = vld [vmem:[%s0 + $0x138] sm:$0xf]
    %v107 = vld [vmem:[%s0 + $0x13c] sm:$0xf]
    %v108 = vld [vmem:[%s0 + $0x140] sm:$0xf]
    %v109 = vld [vmem:[%s0 + $0x144] sm:$0xf]
    %v110 = vld [vmem:[%s0 + $0x148] sm:$0xf]
    %v111 = vld [vmem:[%s0 + $0x14c] sm:$0xf]
    %v112 = vld [vmem:[%s0 + $0x150] sm:$0xf]
    %v113 = vld [vmem:[%s0 + $0x154] sm:$0xf]
    %v114 = vld [vmem:[%s0 + $0x158] sm:$0xf]
    %v115 = vld [vmem:[%s0 + $0x15c] sm:$0xf]
    %v116 = vld [vmem:[%s0 + $0x160] sm:$0xf]
    %v117 = vld [vmem:[%s0 + $0x164] sm:$0xf]
    %v118 = vld [vmem:[%s0 + $0x168] sm:$0xf]
    %v119 = vld [vmem:[%s0 + $0x16c] sm:$0xf]
    %v120 = vld [vmem:[%s0 + $0x170] sm:$0xf]
    %v121 = vld [vmem:[%s0 + $0x174] sm:$0xf]
    %v122 = vld [vmem:[%s0 + $0x178] sm:$0xf]
    %v123 = vld [vmem:[%s0 + $0x17c] sm:$0xf]
    %v124 = vld [vmem:[%s0 + $0x180] sm:$0xf]
    %v125 = vld [vmem:[%s0 + $0x184] sm:$0xf]
    %v126 = vld [vmem:[%s0 + $0x188] sm:$0xf]
    %v127 = vld [vmem:[%s0 + $0x18c] sm:$0xf]
    %v128 = vld [vmem:[%s0 + $0x190] sm:$0xf]
    %v129 = vld [vmem:[%s0 + $0x194] sm:$0xf]
    %v130 = vld [vmem:[%s0 + $0x198] sm:$0xf]
    %v131 = vld [vmem:[%s0 + $0x19c] sm:$0xf]
    %v132 = vld [vmem:[%s0 + $0x1a0] sm:$0xf]
    %v133 = vld [vmem:[%s0 + $0x1a4] sm:$0xf]
    %v134 = vld [vmem:[%s0 + $0x1a8] sm:$0xf]
    %v135 = vld [vmem:[%s0 + $0x1ac] sm:$0xf]
    %v136 = vld [vmem:[%s0 + $0x1b0] sm:$0xf]
    %v137 = vld [vmem:[%s0 + $0x1b4] sm:$0xf]
    %v138 = vld [vmem:[%s0 + $0x1b8] sm:$0xf]
    %v139 = vld [vmem:[%s0 + $0x1bc] sm:$0xf]
    %v140 = vld [vmem:[%s0 + $0x1c0] sm:$0xf]
    %v141 = vld [vmem:[%s0 + $0x1c4] sm:$0xf]
    %v142 = vld [vmem:[%s0 + $0x1c8] sm:$0xf]
    %v143 = vld [vmem:[%s0 + $0x1cc] sm:$0xf]
    %v144 = vld [vmem:[%s0 + $0x1d0] sm:$0xf]
    %v145 = vld [vmem:[%s0 + $0x1d4] sm:$0xf]
    %v146 = vld [vmem:[%s0 + $0x1d8] sm:$0xf]
    %v147 = vld [vmem:[%s0 + $0x1dc] sm:$0xf]
    %v148 = vld [vmem:[%s0 + $0x1e0] sm:$0xf]
    %v149 = vld [vmem:[%s0 + $0x1e4] sm:$0xf]
    %v150 = vld [vmem:[%s0 + $0x1e8] sm:$0xf]
    %v151 = vld [vmem:[%s0 + $0x1ec] sm:$0xf]
    %v152 = vld [vmem:[%s0 + $0x1f0] sm:$0xf]
    %v153 = vld [vmem:[%s0 + $0x1f4] sm:$0xf]
    %v154 = vld [vmem:[%s0 + $0x1f8] sm:$0xf]
    %v155 = vld [vmem:[%s0 + $0x1fc] sm:$0xf]
    %v156 = vld [vmem:[%s0 + $0x200] sm:$0xf]
    %v157 = vld [vmem:[%s0 + $0x204] sm:$0xf]
    %v158 = vld [vmem:[%s0 + $0x208] sm:$0xf]
    %v159 = vld [vmem:[%s0 + $0x20c] sm:$0xf]
    %v160 = vld [vmem:[%s0 + $0x210] sm:$0xf]
    %v161 = vld [vmem:[%s0 + $0x214] sm:$0xf]
    %v162 = vld [vmem:[%s0 + $0x218] sm:$0xf]
    %v163 = vld [vmem:[%s0 + $0x21c] sm:$0xf]
    %v164 = vld [vmem:[%s0 + $0x220] sm:$0xf]
    %v165 = vld [vmem:[%s0 + $0x224] sm:$0xf]
    %v166 = vld [vmem:[%s0 + $0x228] sm:$0xf]
    %v167 = vld [vmem:[%s0 + $0x22c] sm:$0xf]
    %v168 = vld [vmem:[%s0 + $0x230] sm:$0xf]
    %v169 = vld [vmem:[%s0 + $0x234] sm:$0xf]
    %v170 = vld [vmem:[%s0 + $0x238] sm:$0xf]
    %v171 = vld [vmem:[%s0 + $0x23c] sm:$0xf]
    %v172 = vld [vmem:[%s1] sm:$0xf]
    %v173 = vld [vmem:[%s1 + $0x4] sm:$0xf]
    %v174 = vld [vmem:[%s1 + $0x8] sm:$0xf]
    %v175 = vld [vmem:[%s1 + $0xc] sm:$0x1]
    %v320 = vunpack.c.l.b16 %v28
    %v321 = vunpack.c.l.b16 %v29
    %v322 = vunpack.c.l.b16 %v30
    %v323 = vunpack.c.l.b16 %v31
    %v324 = vunpack.c.l.b16 %v32
    %v325 = vunpack.c.l.b16 %v33
    %v326 = vunpack.c.l.b16 %v34
    %v327 = vunpack.c.l.b16 %v35
    %v328 = vunpack.c.l.b16 %v36
    %v329 = vunpack.c.l.b16 %v37
    %v330 = vunpack.c.l.b16 %v38
    %v331 = vunpack.c.l.b16 %v39
    %v332 = vunpack.c.l.b16 %v40
    %v333 = vunpack.c.l.b16 %v41
    %v334 = vunpack.c.l.b16 %v42
    %v335 = vunpack.c.l.b16 %v43
    %v336 = vunpack.c.l.b16 %v44
    %v337 = vunpack.c.l.b16 %v45
    %v338 = vunpack.c.l.b16 %v46
    %v339 = vunpack.c.l.b16 %v47
    %v340 = vunpack.c.l.b16 %v48
    %v341 = vunpack.c.l.b16 %v49
    %v342 = vunpack.c.l.b16 %v50
    %v343 = vunpack.c.l.b16 %v51
    %v344 = vunpack.c.l.b16 %v52
    %v345 = vunpack.c.l.b16 %v53
    %v346 = vunpack.c.l.b16 %v54
    %v347 = vunpack.c.l.b16 %v55
    %v348 = vunpack.c.l.b16 %v56
    %v349 = vunpack.c.l.b16 %v57
    %v350 = vunpack.c.l.b16 %v58
    %v351 = vunpack.c.l.b16 %v59
    %v352 = vunpack.c.l.b16 %v60
    %v353 = vunpack.c.l.b16 %v61
    %v354 = vunpack.c.l.b16 %v62
    %v355 = vunpack.c.l.b16 %v63
    %v356 = vunpack.c.l.b16 %v64
    %v357 = vunpack.c.l.b16 %v65
    %v358 = vunpack.c.l.b16 %v66
    %v359 = vunpack.c.l.b16 %v67
    %v360 = vunpack.c.l.b16 %v68
    %v361 = vunpack.c.l.b16 %v69
    %v362 = vunpack.c.l.b16 %v70
    %v363 = vunpack.c.l.b16 %v71
    %v364 = vunpack.c.l.b16 %v72
    %v365 = vunpack.c.l.b16 %v73
    %v366 = vunpack.c.l.b16 %v74
    %v367 = vunpack.c.l.b16 %v75
    %v368 = vunpack.c.l.b16 %v76
    %v369 = vunpack.c.l.b16 %v77
    %v370 = vunpack.c.l.b16 %v78
    %v371 = vunpack.c.l.b16 %v79
    %v372 = vunpack.c.l.b16 %v80
    %v373 = vunpack.c.l.b16 %v81
    %v374 = vunpack.c.l.b16 %v82
    %v375 = vunpack.c.l.b16 %v83
    %v376 = vunpack.c.l.b16 %v84
    %v377 = vunpack.c.l.b16 %v85
    %v378 = vunpack.c.l.b16 %v86
    %v379 = vunpack.c.l.b16 %v87
    %v380 = vunpack.c.l.b16 %v88
    %v381 = vunpack.c.l.b16 %v89
    %v382 = vunpack.c.l.b16 %v90
    %v383 = vunpack.c.l.b16 %v91
    %v384 = vunpack.c.l.b16 %v92
    %v385 = vunpack.c.l.b16 %v93
    %v386 = vunpack.c.l.b16 %v94
    %v387 = vunpack.c.l.b16 %v95
    %v388 = vunpack.c.l.b16 %v96
    %v389 = vunpack.c.l.b16 %v97
    %v390 = vunpack.c.l.b16 %v98
    %v391 = vunpack.c.l.b16 %v99
    %v392 = vunpack.c.l.b16 %v100
    %v393 = vunpack.c.l.b16 %v101
    %v394 = vunpack.c.l.b16 %v102
    %v395 = vunpack.c.l.b16 %v103
    %v396 = vunpack.c.l.b16 %v104
    %v397 = vunpack.c.l.b16 %v105
    %v398 = vunpack.c.l.b16 %v106
    %v399 = vunpack.c.l.b16 %v107
    %v400 = vunpack.c.l.b16 %v108
    %v401 = vunpack.c.l.b16 %v109
    %v402 = vunpack.c.l.b16 %v110
    %v403 = vunpack.c.l.b16 %v111
    %v404 = vunpack.c.l.b16 %v112
    %v405 = vunpack.c.l.b16 %v113
    %v406 = vunpack.c.l.b16 %v114
    %v407 = vunpack.c.l.b16 %v115
    %v408 = vunpack.c.l.b16 %v116
    %v409 = vunpack.c.l.b16 %v117
    %v410 = vunpack.c.l.b16 %v118
    %v411 = vunpack.c.l.b16 %v119
    %v412 = vunpack.c.l.b16 %v120
    %v413 = vunpack.c.l.b16 %v121
    %v414 = vunpack.c.l.b16 %v122
    %v415 = vunpack.c.l.b16 %v123
    %v416 = vunpack.c.l.b16 %v124
    %v417 = vunpack.c.l.b16 %v125
    %v418 = vunpack.c.l.b16 %v126
    %v419 = vunpack.c.l.b16 %v127
    %v420 = vunpack.c.l.b16 %v128
    %v421 = vunpack.c.l.b16 %v129
    %v422 = vunpack.c.l.b16 %v130
    %v423 = vunpack.c.l.b16 %v131
    %v424 = vunpack.c.l.b16 %v132
    %v425 = vunpack.c.l.b16 %v133
    %v426 = vunpack.c.l.b16 %v134
    %v427 = vunpack.c.l.b16 %v135
    %v428 = vunpack.c.l.b16 %v136
    %v429 = vunpack.c.l.b16 %v137
    %v430 = vunpack.c.l.b16 %v138
    %v431 = vunpack.c.l.b16 %v139
    %v432 = vunpack.c.l.b16 %v140
    %v433 = vunpack.c.l.b16 %v141
    %v434 = vunpack.c.l.b16 %v142
    %v435 = vunpack.c.l.b16 %v143
    %v436 = vunpack.c.l.b16 %v144
    %v437 = vunpack.c.l.b16 %v145
    %v438 = vunpack.c.l.b16 %v146
    %v439 = vunpack.c.l.b16 %v147
    %v440 = vunpack.c.l.b16 %v148
    %v441 = vunpack.c.l.b16 %v149
    %v442 = vunpack.c.l.b16 %v150
    %v443 = vunpack.c.l.b16 %v151
    %v444 = vunpack.c.l.b16 %v152
    %v445 = vunpack.c.l.b16 %v153
    %v446 = vunpack.c.l.b16 %v154
    %v447 = vunpack.c.l.b16 %v155
    %v448 = vunpack.c.l.b16 %v156
    %v449 = vunpack.c.l.b16 %v157
    %v450 = vunpack.c.l.b16 %v158
    %v451 = vunpack.c.l.b16 %v159
    %v452 = vunpack.c.l.b16 %v160
    %v453 = vunpack.c.l.b16 %v161
    %v454 = vunpack.c.l.b16 %v162
    %v455 = vunpack.c.l.b16 %v163
    %v456 = vunpack.c.l.b16 %v164
    %v457 = vunpack.c.l.b16 %v165
    %v458 = vunpack.c.l.b16 %v166
    %v459 = vunpack.c.l.b16 %v167
    %v460 = vunpack.c.l.b16 %v168
    %v461 = vunpack.c.l.b16 %v169
    %v462 = vunpack.c.l.b16 %v170
    %v463 = vunpack.c.l.b16 %v171
    %v464 = vpack.c.b16 %v321, %v320
    %v465 = vpack.c.b16 %v323, %v322
    %v466 = vpack.c.b16 %v325, %v324
    %v467 = vpack.c.b16 %v327, %v326
    %v468 = vpack.c.b16 %v329, %v328
    %v469 = vpack.c.b16 %v331, %v330
    %v470 = vpack.c.b16 %v333, %v332
    %v471 = vpack.c.b16 %v335, %v334
    %v472 = vpack.c.b16 %v337, %v336
    %v473 = vpack.c.b16 %v339, %v338
    %v474 = vpack.c.b16 %v341, %v340
    %v475 = vpack.c.b16 %v343, %v342
    %v476 = vpack.c.b16 %v345, %v344
    %v477 = vpack.c.b16 %v347, %v346
    %v478 = vpack.c.b16 %v349, %v348
    %v479 = vpack.c.b16 %v351, %v350
    %v480 = vpack.c.b16 %v353, %v352
    %v481 = vpack.c.b16 %v355, %v354
    %v482 = vpack.c.b16 %v357, %v356
    %v483 = vpack.c.b16 %v359, %v358
    %v484 = vpack.c.b16 %v361, %v360
    %v485 = vpack.c.b16 %v363, %v362
    %v486 = vpack.c.b16 %v365, %v364
    %v487 = vpack.c.b16 %v367, %v366
    %v488 = vpack.c.b16 %v369, %v368
    %v489 = vpack.c.b16 %v371, %v370
    %v490 = vpack.c.b16 %v373, %v372
    %v491 = vpack.c.b16 %v375, %v374
    %v492 = vpack.c.b16 %v377, %v376
    %v493 = vpack.c.b16 %v379, %v378
    %v494 = vpack.c.b16 %v381, %v380
    %v495 = vpack.c.b16 %v383, %v382
    %v496 = vpack.c.b16 %v385, %v384
    %v497 = vpack.c.b16 %v387, %v386
    %v498 = vpack.c.b16 %v389, %v388
    %v499 = vpack.c.b16 %v391, %v390
    %v500 = vpack.c.b16 %v393, %v392
    %v501 = vpack.c.b16 %v395, %v394
    %v502 = vpack.c.b16 %v397, %v396
    %v503 = vpack.c.b16 %v399, %v398
    %v504 = vpack.c.b16 %v401, %v400
    %v505 = vpack.c.b16 %v403, %v402
    %v506 = vpack.c.b16 %v405, %v404
    %v507 = vpack.c.b16 %v407, %v406
    %v508 = vpack.c.b16 %v409, %v408
    %v509 = vpack.c.b16 %v411, %v410
    %v510 = vpack.c.b16 %v413, %v412
    %v511 = vpack.c.b16 %v415, %v414
    %v512 = vpack.c.b16 %v417, %v416
    %v513 = vpack.c.b16 %v419, %v418
    %v514 = vpack.c.b16 %v421, %v420
    %v515 = vpack.c.b16 %v423, %v422
    %v516 = vpack.c.b16 %v425, %v424
    %v517 = vpack.c.b16 %v427, %v426
    %v518 = vpack.c.b16 %v429, %v428
    %v519 = vpack.c.b16 %v431, %v430
    %v520 = vpack.c.b16 %v433, %v432
    %v521 = vpack.c.b16 %v435, %v434
    %v522 = vpack.c.b16 %v437, %v436
    %v523 = vpack.c.b16 %v439, %v438
    %v524 = vpack.c.b16 %v441, %v440
    %v525 = vpack.c.b16 %v443, %v442
    %v526 = vpack.c.b16 %v445, %v444
    %v527 = vpack.c.b16 %v447, %v446
    %v528 = vpack.c.b16 %v449, %v448
    %v529 = vpack.c.b16 %v451, %v450
    %v530 = vpack.c.b16 %v453, %v452
    %v531 = vpack.c.b16 %v455, %v454
    %v532 = vpack.c.b16 %v457, %v456
    %v533 = vpack.c.b16 %v459, %v458
    %v534 = vpack.c.b16 %v461, %v460
    %v535 = vpack.c.b16 %v463, %v462
    %v540 = vunpack.c.l.b16 %v172
    %v541 = vunpack.c.l.b16 %v173
    %v542 = vunpack.c.l.b16 %v174
    %v543 = vunpack.c.l.b16 %v175
    %v544 = vpack.c.b16 %v541, %v540
    %v545 = vpack.c.b16 %v543, %v542
    %vm547 = vcmask 211968
    %v549 = vsel %vm547, %v464, 0
    %v552 = vsel %vm547, %v465, 0
    %v555 = vsel %vm547, %v466, 0
    %v558 = vsel %vm547, %v467, 0
    %v561 = vsel %vm547, %v468, 0
    %v564 = vsel %vm547, %v469, 0
    %v567 = vsel %vm547, %v470, 0
    %v570 = vsel %vm547, %v471, 0
    %v573 = vsel %vm547, %v472, 0
    %v576 = vsel %vm547, %v473, 0
    %v579 = vsel %vm547, %v474, 0
    %v582 = vsel %vm547, %v475, 0
    %v585 = vsel %vm547, %v476, 0
    %v588 = vsel %vm547, %v477, 0
    %v591 = vsel %vm547, %v478, 0
    %v594 = vsel %vm547, %v479, 0
    %v597 = vsel %vm547, %v480, 0
    %v600 = vsel %vm547, %v481, 0
    %v603 = vsel %vm547, %v482, 0
    %v606 = vsel %vm547, %v483, 0
    %v609 = vsel %vm547, %v484, 0
    %v612 = vsel %vm547, %v485, 0
    %v615 = vsel %vm547, %v486, 0
    %v618 = vsel %vm547, %v487, 0
    %v621 = vsel %vm547, %v488, 0
    %v624 = vsel %vm547, %v489, 0
    %v627 = vsel %vm547, %v490, 0
    %v630 = vsel %vm547, %v491, 0
    %v633 = vsel %vm547, %v492, 0
    %v636 = vsel %vm547, %v493, 0
    %v639 = vsel %vm547, %v494, 0
    %v642 = vsel %vm547, %v495, 0
    %v645 = vsel %vm547, %v496, 0
    %v648 = vsel %vm547, %v497, 0
    %v651 = vsel %vm547, %v498, 0
    %v654 = vsel %vm547, %v499, 0
    %v657 = vsel %vm547, %v500, 0
    %v660 = vsel %vm547, %v501, 0
    %v663 = vsel %vm547, %v502, 0
    %v666 = vsel %vm547, %v503, 0
    %v669 = vsel %vm547, %v504, 0
    %v672 = vsel %vm547, %v505, 0
    %v675 = vsel %vm547, %v506, 0
    %v678 = vsel %vm547, %v507, 0
    %v681 = vsel %vm547, %v508, 0
    %v684 = vsel %vm547, %v509, 0
    %v687 = vsel %vm547, %v510, 0
    %v690 = vsel %vm547, %v511, 0
    %v693 = vsel %vm547, %v512, 0
    %v696 = vsel %vm547, %v513, 0
    %v699 = vsel %vm547, %v514, 0
    %v702 = vsel %vm547, %v515, 0
    %v705 = vsel %vm547, %v516, 0
    %v708 = vsel %vm547, %v517, 0
    %v711 = vsel %vm547, %v518, 0
    %v714 = vsel %vm547, %v519, 0
    %v717 = vsel %vm547, %v520, 0
    %v720 = vsel %vm547, %v521, 0
    %v723 = vsel %vm547, %v522, 0
    %v726 = vsel %vm547, %v523, 0
    %v729 = vsel %vm547, %v524, 0
    %v732 = vsel %vm547, %v525, 0
    %v735 = vsel %vm547, %v526, 0
    %v738 = vsel %vm547, %v527, 0
    %v741 = vsel %vm547, %v528, 0
    %v744 = vsel %vm547, %v529, 0
    %v747 = vsel %vm547, %v530, 0
    %v750 = vsel %vm547, %v531, 0
    %v753 = vsel %vm547, %v532, 0
    %v756 = vsel %vm547, %v533, 0
    %v759 = vsel %vm547, %v534, 0
    %v762 = vsel %vm547, %v535, 0
    %vm764 = vcmask 1044480
    %v766 = vsel %vm764, %v545, 0
    %768 = vmatprep.subr.bf16.mxu0 0
    %769 = vmatpush1.bf16.msra.mxu0 %v544
    %770 = vmatprep.subr.bf16.mxu0 0
    %771 = vmatpush1.bf16.msra.mxu0 %v766
    %772 = vmatprep.subr.bf16.mxu0 0
    %773 = vmatpush1.bf16.msra.mxu0 0
    %774 = vmatprep.subr.bf16.mxu0 0
    %775 = vmatpush1.bf16.msra.mxu0 0
    %776 = vmatprep.subr.bf16.mxu0 0
    %777 = vmatpush1.bf16.msra.mxu0 0
    %778 = vmatprep.subr.bf16.mxu0 0
    %779 = vmatpush1.bf16.msra.mxu0 0
    %780 = vmatprep.subr.bf16.mxu0 0
    %781 = vmatpush1.bf16.msra.mxu0 0
    %782 = vmatprep.subr.bf16.mxu0 0
    %783 = vmatpush1.bf16.msra.mxu0 0
    %784 = vmatprep.subr.bf16.mxu0 0
    %785 = vmatpush1.bf16.msra.mxu0 0
    %786 = vmatprep.subr.bf16.mxu0 0
    %787 = vmatpush1.bf16.msra.mxu0 0
    %788 = vmatprep.subr.bf16.mxu0 0
    %789 = vmatpush1.bf16.msra.mxu0 0
    %790 = vmatprep.subr.bf16.mxu0 0
    %791 = vmatpush1.bf16.msra.mxu0 0
    %792 = vmatprep.subr.bf16.mxu0 0
    %793 = vmatpush1.bf16.msra.mxu0 0
    %794 = vmatprep.subr.bf16.mxu0 0
    %795 = vmatpush1.bf16.msra.mxu0 0
    %796 = vmatprep.subr.bf16.mxu0 0
    %797 = vmatpush1.bf16.msra.mxu0 0
    %798 = vmatprep.subr.bf16.mxu0 0
    %799 = vmatpush1.bf16.msra.mxu0 0
    %800 = vmatprep.mubr.bf16.mxu0 0
    %801 = vmatmul.mubr.bf16.gmra.mrb[0].mxu0 %v549
    %v802 = vpop.f32.mrb[0].mxu0
    %v803 = vadd.f32 0.0, %v802
    %v804 = vpop.f32.mrb[0].mxu0
    %v805 = vpop.f32.mrb[0].mxu0
    %v806 = vadd.f32 0.0, %v805
    %v807 = vpop.f32.mrb[0].mxu0
    %808 = vmatprep.mubr.bf16.mxu0 0
    %809 = vmatmul.mubr.bf16.gmra.mrb[0].mxu0 %v552
    %v810 = vpop.f32.mrb[0].mxu0
    %v811 = vadd.f32 0.0, %v810
    %v812 = vpop.f32.mrb[0].mxu0
    %v813 = vpop.f32.mrb[0].mxu0
    %v814 = vadd.f32 0.0, %v813
    %v815 = vpop.f32.mrb[0].mxu0
    %816 = vmatprep.mubr.bf16.mxu0 0
    %817 = vmatmul.mubr.bf16.gmra.mrb[0].mxu0 %v555
    %v818 = vpop.f32.mrb[0].mxu0
    %v819 = vadd.f32 0.0, %v818
    %v820 = vpop.f32.mrb[0].mxu0
    %v821 = vpop.f32.mrb[0].mxu0
    %v822 = vadd.f32 0.0, %v821
    %v823 = vpop.f32.mrb[0].mxu0
    %824 = vmatprep.mubr.bf16.mxu0 0
    %825 = vmatmul.mubr.bf16.gmra.mrb[0].mxu0 %v558
    %v826 = vpop.f32.mrb[0].mxu0
    %v827 = vadd.f32 0.0, %v826
    %v828 = vpop.f32.mrb[0].mxu0
    %v829 = vpop.f32.mrb[0].mxu0
    %v830 = vadd.f32 0.0, %v829
    %v831 = vpop.f32.mrb[0].mxu0
    %832 = vmatprep.mubr.bf16.mxu0 0
    %833 = vmatmul.mubr.bf16.gmra.mrb[0].mxu0 %v561
    %v834 = vpop.f32.mrb[0].mxu0
    %v835 = vadd.f32 0.0, %v834
    %v836 = vpop.f32.mrb[0].mxu0
    %v837 = vpop.f32.mrb[0].mxu0
    %v838 = vadd.f32 0.0, %v837
    %v839 = vpop.f32.mrb[0].mxu0
    %840 = vmatprep.mubr.bf16.mxu0 0
    %841 = vmatmul.mubr.bf16.gmra.mrb[0].mxu0 %v564
    %v842 = vpop.f32.mrb[0].mxu0
    %v843 = vadd.f32 0.0, %v842
    %v844 = vpop.f32.mrb[0].mxu0
    %v845 = vpop.f32.mrb[0].mxu0
    %v846 = vadd.f32 0.0, %v845
    %v847 = vpop.f32.mrb[0].mxu0
    %848 = vmatprep.mubr.bf16.mxu0 0
    %849 = vmatmul.mubr.bf16.gmra.mrb[0].mxu0 %v567
    %v850 = vpop.f32.mrb[0].mxu0
    %v851 = vadd.f32 0.0, %v850
    %v852 = vpop.f32.mrb[0].mxu0
    %v853 = vpop.f32.mrb[0].mxu0
    %v854 = vadd.f32 0.0, %v853
    %v855 = vpop.f32.mrb[0].mxu0
    %856 = vmatprep.mubr.bf16.mxu0 0
    %857 = vmatmul.mubr.bf16.gmra.mrb[0].mxu0 %v570
    %v858 = vpop.f32.mrb[0].mxu0
    %v859 = vadd.f32 0.0, %v858
    %v860 = vpop.f32.mrb[0].mxu0
    %v861 = vpop.f32.mrb[0].mxu0
    %v862 = vadd.f32 0.0, %v861
    %v863 = vpop.f32.mrb[0].mxu0
    %864 = vmatprep.mubr.bf16.mxu0 0
    %865 = vmatmul.mubr.bf16.gmra.mrb[0].mxu0 %v573
    %v866 = vpop.f32.mrb[0].mxu0
    %v867 = vadd.f32 0.0, %v866
    %v868 = vpop.f32.mrb[0].mxu0
    %v869 = vpop.f32.mrb[0].mxu0
    %v870 = vadd.f32 0.0, %v869
    %v871 = vpop.f32.mrb[0].mxu0
    %872 = vmatprep.mubr.bf16.mxu0 0
    %873 = vmatmul.mubr.bf16.gmra.mrb[0].mxu0 %v576
    %v874 = vpop.f32.mrb[0].mxu0
    %v875 = vadd.f32 0.0, %v874
    %v876 = vpop.f32.mrb[0].mxu0
    %v877 = vpop.f32.mrb[0].mxu0
    %v878 = vadd.f32 0.0, %v877
    %v879 = vpop.f32.mrb[0].mxu0
    %880 = vmatprep.mubr.bf16.mxu0 0
    %881 = vmatmul.mubr.bf16.gmra.mrb[0].mxu0 %v579
    %v882 = vpop.f32.mrb[0].mxu0
    %v883 = vadd.f32 0.0, %v882
    %v884 = vpop.f32.mrb[0].mxu0
    %v885 = vpop.f32.mrb[0].mxu0
    %v886 = vadd.f32 0.0, %v885
    %v887 = vpop.f32.mrb[0].mxu0
    %888 = vmatprep.mubr.bf16.mxu0 0
    %889 = vmatmul.mubr.bf16.gmra.mrb[0].mxu0 %v582
    %v890 = vpop.f32.mrb[0].mxu0
    %v891 = vadd.f32 0.0, %v890
    %v892 = vpop.f32.mrb[0].mxu0
    %v893 = vpop.f32.mrb[0].mxu0
    %v894 = vadd.f32 0.0, %v893
    %v895 = vpop.f32.mrb[0].mxu0
    %896 = vmatprep.mubr.bf16.mxu0 0
    %897 = vmatmul.mubr.bf16.gmra.mrb[0].mxu0 %v585
    %v898 = vpop.f32.mrb[0].mxu0
    %v899 = vadd.f32 0.0, %v898
    %v900 = vpop.f32.mrb[0].mxu0
    %v901 = vpop.f32.mrb[0].mxu0
    %v902 = vadd.f32 0.0, %v901
    %v903 = vpop.f32.mrb[0].mxu0
    %904 = vmatprep.mubr.bf16.mxu0 0
    %905 = vmatmul.mubr.bf16.gmra.mrb[0].mxu0 %v588
    %v906 = vpop.f32.mrb[0].mxu0
    %v907 = vadd.f32 0.0, %v906
    %v908 = vpop.f32.mrb[0].mxu0
    %v909 = vpop.f32.mrb[0].mxu0
    %v910 = vadd.f32 0.0, %v909
    %v911 = vpop.f32.mrb[0].mxu0
    %912 = vmatprep.mubr.bf16.mxu0 0
    %913 = vmatmul.mubr.bf16.gmra.mrb[0].mxu0 %v591
    %v914 = vpop.f32.mrb[0].mxu0
    %v915 = vadd.f32 0.0, %v914
    %v916 = vpop.f32.mrb[0].mxu0
    %v917 = vpop.f32.mrb[0].mxu0
    %v918 = vadd.f32 0.0, %v917
    %v919 = vpop.f32.mrb[0].mxu0
    %920 = vmatprep.mubr.bf16.mxu0 0
    %921 = vmatmul.mubr.bf16.gmra.mrb[0].mxu0 %v594
    %v922 = vpop.f32.mrb[0].mxu0
    %v923 = vadd.f32 0.0, %v922
    %v924 = vpop.f32.mrb[0].mxu0
    %v925 = vpop.f32.mrb[0].mxu0
    %v926 = vadd.f32 0.0, %v925
    %v927 = vpop.f32.mrb[0].mxu0
    %928 = vmatprep.mubr.bf16.mxu0 0
    %929 = vmatmul.mubr.bf16.gmra.mrb[0].mxu0 %v597
    %v930 = vpop.f32.mrb[0].mxu0
    %v931 = vadd.f32 0.0, %v930
    %v932 = vpop.f32.mrb[0].mxu0
    %v933 = vpop.f32.mrb[0].mxu0
    %v934 = vadd.f32 0.0, %v933
    %v935 = vpop.f32.mrb[0].mxu0
    %936 = vmatprep.mubr.bf16.mxu0 0
    %937 = vmatmul.mubr.bf16.gmra.mrb[0].mxu0 %v600
    %v938 = vpop.f32.mrb[0].mxu0
    %v939 = vadd.f32 0.0, %v938
    %v940 = vpop.f32.mrb[0].mxu0
    %v941 = vpop.f32.mrb[0].mxu0
    %v942 = vadd.f32 0.0, %v941
    %v943 = vpop.f32.mrb[0].mxu0
    %944 = vmatprep.mubr.bf16.mxu0 0
    %945 = vmatmul.mubr.bf16.gmra.mrb[0].mxu0 %v603
    %v946 = vpop.f32.mrb[0].mxu0
    %v947 = vadd.f32 0.0, %v946
    %v948 = vpop.f32.mrb[0].mxu0
    %v949 = vpop.f32.mrb[0].mxu0
    %v950 = vadd.f32 0.0, %v949
    %v951 = vpop.f32.mrb[0].mxu0
    %952 = vmatprep.mubr.bf16.mxu0 0
    %953 = vmatmul.mubr.bf16.gmra.mrb[0].mxu0 %v606
    %v954 = vpop.f32.mrb[0].mxu0
    %v955 = vadd.f32 0.0, %v954
    %v956 = vpop.f32.mrb[0].mxu0
    %v957 = vpop.f32.mrb[0].mxu0
    %v958 = vadd.f32 0.0, %v957
    %v959 = vpop.f32.mrb[0].mxu0
    %960 = vmatprep.mubr.bf16.mxu0 0
    %961 = vmatmul.mubr.bf16.gmra.mrb[0].mxu0 %v609
    %v962 = vpop.f32.mrb[0].mxu0
    %v963 = vadd.f32 0.0, %v962
    %v964 = vpop.f32.mrb[0].mxu0
    %v965 = vpop.f32.mrb[0].mxu0
    %v966 = vadd.f32 0.0, %v965
    %v967 = vpop.f32.mrb[0].mxu0
    %968 = vmatprep.mubr.bf16.mxu0 0
    %969 = vmatmul.mubr.bf16.gmra.mrb[0].mxu0 %v612
    %v970 = vpop.f32.mrb[0].mxu0
    %v971 = vadd.f32 0.0, %v970
    %v972 = vpop.f32.mrb[0].mxu0
    %v973 = vpop.f32.mrb[0].mxu0
    %v974 = vadd.f32 0.0, %v973
    %v975 = vpop.f32.mrb[0].mxu0
    %976 = vmatprep.mubr.bf16.mxu0 0
    %977 = vmatmul.mubr.bf16.gmra.mrb[0].mxu0 %v615
    %v978 = vpop.f32.mrb[0].mxu0
    %v979 = vadd.f32 0.0, %v978
    %v980 = vpop.f32.mrb[0].mxu0
    %v981 = vpop.f32.mrb[0].mxu0
    %v982 = vadd.f32 0.0, %v981
    %v983 = vpop.f32.mrb[0].mxu0
    %984 = vmatprep.mubr.bf16.mxu0 0
    %985 = vmatmul.mubr.bf16.gmra.mrb[0].mxu0 %v618
    %v986 = vpop.f32.mrb[0].mxu0
    %v987 = vadd.f32 0.0, %v986
    %v988 = vpop.f32.mrb[0].mxu0
    %v989 = vpop.f32.mrb[0].mxu0
    %v990 = vadd.f32 0.0, %v989
    %v991 = vpop.f32.mrb[0].mxu0
    %992 = vmatprep.mubr.bf16.mxu0 0
    %993 = vmatmul.mubr.bf16.gmra.mrb[0].mxu0 %v621
    %v994 = vpop.f32.mrb[0].mxu0
    %v995 = vadd.f32 0.0, %v994
    %v996 = vpop.f32.mrb[0].mxu0
    %v997 = vpop.f32.mrb[0].mxu0
    %v998 = vadd.f32 0.0, %v997
    %v999 = vpop.f32.mrb[0].mxu0
    %1000 = vmatprep.mubr.bf16.mxu0 0
    %1001 = vmatmul.mubr.bf16.gmra.mrb[0].mxu0 %v624
    %v1002 = vpop.f32.mrb[0].mxu0
    %v1003 = vadd.f32 0.0, %v1002
    %v1004 = vpop.f32.mrb[0].mxu0
    %v1005 = vpop.f32.mrb[0].mxu0
    %v1006 = vadd.f32 0.0, %v1005
    %v1007 = vpop.f32.mrb[0].mxu0
    %1008 = vmatprep.mubr.bf16.mxu0 0
    %1009 = vmatmul.mubr.bf16.gmra.mrb[0].mxu0 %v627
    %v1010 = vpop.f32.mrb[0].mxu0
    %v1011 = vadd.f32 0.0, %v1010
    %v1012 = vpop.f32.mrb[0].mxu0
    %v1013 = vpop.f32.mrb[0].mxu0
    %v1014 = vadd.f32 0.0, %v1013
    %v1015 = vpop.f32.mrb[0].mxu0
    %1016 = vmatprep.mubr.bf16.mxu0 0
    %1017 = vmatmul.mubr.bf16.gmra.mrb[0].mxu0 %v630
    %v1018 = vpop.f32.mrb[0].mxu0
    %v1019 = vadd.f32 0.0, %v1018
    %v1020 = vpop.f32.mrb[0].mxu0
    %v1021 = vpop.f32.mrb[0].mxu0
    %v1022 = vadd.f32 0.0, %v1021
    %v1023 = vpop.f32.mrb[0].mxu0
    %1024 = vmatprep.mubr.bf16.mxu0 0
    %1025 = vmatmul.mubr.bf16.gmra.mrb[0].mxu0 %v633
    %v1026 = vpop.f32.mrb[0].mxu0
    %v1027 = vadd.f32 0.0, %v1026
    %v1028 = vpop.f32.mrb[0].mxu0
    %v1029 = vpop.f32.mrb[0].mxu0
    %v1030 = vadd.f32 0.0, %v1029
    %v1031 = vpop.f32.mrb[0].mxu0
    %1032 = vmatprep.mubr.bf16.mxu0 0
    %1033 = vmatmul.mubr.bf16.gmra.mrb[0].mxu0 %v636
    %v1034 = vpop.f32.mrb[0].mxu0
    %v1035 = vadd.f32 0.0, %v1034
    %v1036 = vpop.f32.mrb[0].mxu0
    %v1037 = vpop.f32.mrb[0].mxu0
    %v1038 = vadd.f32 0.0, %v1037
    %v1039 = vpop.f32.mrb[0].mxu0
    %1040 = vmatprep.mubr.bf16.mxu0 0
    %1041 = vmatmul.mubr.bf16.gmra.mrb[0].mxu0 %v639
    %v1042 = vpop.f32.mrb[0].mxu0
    %v1043 = vadd.f32 0.0, %v1042
    %v1044 = vpop.f32.mrb[0].mxu0
    %v1045 = vpop.f32.mrb[0].mxu0
    %v1046 = vadd.f32 0.0, %v1045
    %v1047 = vpop.f32.mrb[0].mxu0
    %1048 = vmatprep.mubr.bf16.mxu0 0
    %1049 = vmatmul.mubr.bf16.gmra.mrb[0].mxu0 %v642
    %v1050 = vpop.f32.mrb[0].mxu0
    %v1051 = vadd.f32 0.0, %v1050
    %v1052 = vpop.f32.mrb[0].mxu0
    %v1053 = vpop.f32.mrb[0].mxu0
    %v1054 = vadd.f32 0.0, %v1053
    %v1055 = vpop.f32.mrb[0].mxu0
    %1056 = vmatprep.mubr.bf16.mxu0 0
    %1057 = vmatmul.mubr.bf16.gmra.mrb[0].mxu0 %v645
    %v1058 = vpop.f32.mrb[0].mxu0
    %v1059 = vadd.f32 0.0, %v1058
    %v1060 = vpop.f32.mrb[0].mxu0
    %v1061 = vpop.f32.mrb[0].mxu0
    %v1062 = vadd.f32 0.0, %v1061
    %v1063 = vpop.f32.mrb[0].mxu0
    %1064 = vmatprep.mubr.bf16.mxu0 0
    %1065 = vmatmul.mubr.bf16.gmra.mrb[0].mxu0 %v648
    %v1066 = vpop.f32.mrb[0].mxu0
    %v1067 = vadd.f32 0.0, %v1066
    %v1068 = vpop.f32.mrb[0].mxu0
    %v1069 = vpop.f32.mrb[0].mxu0
    %v1070 = vadd.f32 0.0, %v1069
    %v1071 = vpop.f32.mrb[0].mxu0
    %1072 = vmatprep.mubr.bf16.mxu0 0
    %1073 = vmatmul.mubr.bf16.gmra.mrb[0].mxu0 %v651
    %v1074 = vpop.f32.mrb[0].mxu0
    %v1075 = vadd.f32 0.0, %v1074
    %v1076 = vpop.f32.mrb[0].mxu0
    %v1077 = vpop.f32.mrb[0].mxu0
    %v1078 = vadd.f32 0.0, %v1077
    %v1079 = vpop.f32.mrb[0].mxu0
    %1080 = vmatprep.mubr.bf16.mxu0 0
    %1081 = vmatmul.mubr.bf16.gmra.mrb[0].mxu0 %v654
    %v1082 = vpop.f32.mrb[0].mxu0
    %v1083 = vadd.f32 0.0, %v1082
    %v1084 = vpop.f32.mrb[0].mxu0
    %v1085 = vpop.f32.mrb[0].mxu0
    %v1086 = vadd.f32 0.0, %v1085
    %v1087 = vpop.f32.mrb[0].mxu0
    %1088 = vmatprep.mubr.bf16.mxu0 0
    %1089 = vmatmul.mubr.bf16.gmra.mrb[0].mxu0 %v657
    %v1090 = vpop.f32.mrb[0].mxu0
    %v1091 = vadd.f32 0.0, %v1090
    %v1092 = vpop.f32.mrb[0].mxu0
    %v1093 = vpop.f32.mrb[0].mxu0
    %v1094 = vadd.f32 0.0, %v1093
    %v1095 = vpop.f32.mrb[0].mxu0
    %1096 = vmatprep.mubr.bf16.mxu0 0
    %1097 = vmatmul.mubr.bf16.gmra.mrb[0].mxu0 %v660
    %v1098 = vpop.f32.mrb[0].mxu0
    %v1099 = vadd.f32 0.0, %v1098
    %v1100 = vpop.f32.mrb[0].mxu0
    %v1101 = vpop.f32.mrb[0].mxu0
    %v1102 = vadd.f32 0.0, %v1101
    %v1103 = vpop.f32.mrb[0].mxu0
    %1104 = vmatprep.mubr.bf16.mxu0 0
    %1105 = vmatmul.mubr.bf16.gmra.mrb[0].mxu0 %v663
    %v1106 = vpop.f32.mrb[0].mxu0
    %v1107 = vadd.f32 0.0, %v1106
    %v1108 = vpop.f32.mrb[0].mxu0
    %v1109 = vpop.f32.mrb[0].mxu0
    %v1110 = vadd.f32 0.0, %v1109
    %v1111 = vpop.f32.mrb[0].mxu0
    %1112 = vmatprep.mubr.bf16.mxu0 0
    %1113 = vmatmul.mubr.bf16.gmra.mrb[0].mxu0 %v666
    %v1114 = vpop.f32.mrb[0].mxu0
    %v1115 = vadd.f32 0.0, %v1114
    %v1116 = vpop.f32.mrb[0].mxu0
    %v1117 = vpop.f32.mrb[0].mxu0
    %v1118 = vadd.f32 0.0, %v1117
    %v1119 = vpop.f32.mrb[0].mxu0
    %1120 = vmatprep.mubr.bf16.mxu0 0
    %1121 = vmatmul.mubr.bf16.gmra.mrb[0].mxu0 %v669
    %v1122 = vpop.f32.mrb[0].mxu0
    %v1123 = vadd.f32 0.0, %v1122
    %v1124 = vpop.f32.mrb[0].mxu0
    %v1125 = vpop.f32.mrb[0].mxu0
    %v1126 = vadd.f32 0.0, %v1125
    %v1127 = vpop.f32.mrb[0].mxu0
    %1128 = vmatprep.mubr.bf16.mxu0 0
    %1129 = vmatmul.mubr.bf16.gmra.mrb[0].mxu0 %v672
    %v1130 = vpop.f32.mrb[0].mxu0
    %v1131 = vadd.f32 0.0, %v1130
    %v1132 = vpop.f32.mrb[0].mxu0
    %v1133 = vpop.f32.mrb[0].mxu0
    %v1134 = vadd.f32 0.0, %v1133
    %v1135 = vpop.f32.mrb[0].mxu0
    %1136 = vmatprep.mubr.bf16.mxu0 0
    %1137 = vmatmul.mubr.bf16.gmra.mrb[0].mxu0 %v675
    %v1138 = vpop.f32.mrb[0].mxu0
    %v1139 = vadd.f32 0.0, %v1138
    %v1140 = vpop.f32.mrb[0].mxu0
    %v1141 = vpop.f32.mrb[0].mxu0
    %v1142 = vadd.f32 0.0, %v1141
    %v1143 = vpop.f32.mrb[0].mxu0
    %1144 = vmatprep.mubr.bf16.mxu0 0
    %1145 = vmatmul.mubr.bf16.gmra.mrb[0].mxu0 %v678
    %v1146 = vpop.f32.mrb[0].mxu0
    %v1147 = vadd.f32 0.0, %v1146
    %v1148 = vpop.f32.mrb[0].mxu0
    %v1149 = vpop.f32.mrb[0].mxu0
    %v1150 = vadd.f32 0.0, %v1149
    %v1151 = vpop.f32.mrb[0].mxu0
    %1152 = vmatprep.mubr.bf16.mxu0 0
    %1153 = vmatmul.mubr.bf16.gmra.mrb[0].mxu0 %v681
    %v1154 = vpop.f32.mrb[0].mxu0
    %v1155 = vadd.f32 0.0, %v1154
    %v1156 = vpop.f32.mrb[0].mxu0
    %v1157 = vpop.f32.mrb[0].mxu0
    %v1158 = vadd.f32 0.0, %v1157
    %v1159 = vpop.f32.mrb[0].mxu0
    %1160 = vmatprep.mubr.bf16.mxu0 0
    %1161 = vmatmul.mubr.bf16.gmra.mrb[0].mxu0 %v684
    %v1162 = vpop.f32.mrb[0].mxu0
    %v1163 = vadd.f32 0.0, %v1162
    %v1164 = vpop.f32.mrb[0].mxu0
    %v1165 = vpop.f32.mrb[0].mxu0
    %v1166 = vadd.f32 0.0, %v1165
    %v1167 = vpop.f32.mrb[0].mxu0
    %1168 = vmatprep.mubr.bf16.mxu0 0
    %1169 = vmatmul.mubr.bf16.gmra.mrb[0].mxu0 %v687
    %v1170 = vpop.f32.mrb[0].mxu0
    %v1171 = vadd.f32 0.0, %v1170
    %v1172 = vpop.f32.mrb[0].mxu0
    %v1173 = vpop.f32.mrb[0].mxu0
    %v1174 = vadd.f32 0.0, %v1173
    %v1175 = vpop.f32.mrb[0].mxu0
    %1176 = vmatprep.mubr.bf16.mxu0 0
    %1177 = vmatmul.mubr.bf16.gmra.mrb[0].mxu0 %v690
    %v1178 = vpop.f32.mrb[0].mxu0
    %v1179 = vadd.f32 0.0, %v1178
    %v1180 = vpop.f32.mrb[0].mxu0
    %v1181 = vpop.f32.mrb[0].mxu0
    %v1182 = vadd.f32 0.0, %v1181
    %v1183 = vpop.f32.mrb[0].mxu0
    %1184 = vmatprep.mubr.bf16.mxu0 0
    %1185 = vmatmul.mubr.bf16.gmra.mrb[0].mxu0 %v693
    %v1186 = vpop.f32.mrb[0].mxu0
    %v1187 = vadd.f32 0.0, %v1186
    %v1188 = vpop.f32.mrb[0].mxu0
    %v1189 = vpop.f32.mrb[0].mxu0
    %v1190 = vadd.f32 0.0, %v1189
    %v1191 = vpop.f32.mrb[0].mxu0
    %1192 = vmatprep.mubr.bf16.mxu0 0
    %1193 = vmatmul.mubr.bf16.gmra.mrb[0].mxu0 %v696
    %v1194 = vpop.f32.mrb[0].mxu0
    %v1195 = vadd.f32 0.0, %v1194
    %v1196 = vpop.f32.mrb[0].mxu0
    %v1197 = vpop.f32.mrb[0].mxu0
    %v1198 = vadd.f32 0.0, %v1197
    %v1199 = vpop.f32.mrb[0].mxu0
    %1200 = vmatprep.mubr.bf16.mxu0 0
    %1201 = vmatmul.mubr.bf16.gmra.mrb[0].mxu0 %v699
    %v1202 = vpop.f32.mrb[0].mxu0
    %v1203 = vadd.f32 0.0, %v1202
    %v1204 = vpop.f32.mrb[0].mxu0
    %v1205 = vpop.f32.mrb[0].mxu0
    %v1206 = vadd.f32 0.0, %v1205
    %v1207 = vpop.f32.mrb[0].mxu0
    %1208 = vmatprep.mubr.bf16.mxu0 0
    %1209 = vmatmul.mubr.bf16.gmra.mrb[0].mxu0 %v702
    %v1210 = vpop.f32.mrb[0].mxu0
    %v1211 = vadd.f32 0.0, %v1210
    %v1212 = vpop.f32.mrb[0].mxu0
    %v1213 = vpop.f32.mrb[0].mxu0
    %v1214 = vadd.f32 0.0, %v1213
    %v1215 = vpop.f32.mrb[0].mxu0
    %1216 = vmatprep.mubr.bf16.mxu0 0
    %1217 = vmatmul.mubr.bf16.gmra.mrb[0].mxu0 %v705
    %v1218 = vpop.f32.mrb[0].mxu0
    %v1219 = vadd.f32 0.0, %v1218
    %v1220 = vpop.f32.mrb[0].mxu0
    %v1221 = vpop.f32.mrb[0].mxu0
    %v1222 = vadd.f32 0.0, %v1221
    %v1223 = vpop.f32.mrb[0].mxu0
    %1224 = vmatprep.mubr.bf16.mxu0 0
    %1225 = vmatmul.mubr.bf16.gmra.mrb[0].mxu0 %v708
    %v1226 = vpop.f32.mrb[0].mxu0
    %v1227 = vadd.f32 0.0, %v1226
    %v1228 = vpop.f32.mrb[0].mxu0
    %v1229 = vpop.f32.mrb[0].mxu0
    %v1230 = vadd.f32 0.0, %v1229
    %v1231 = vpop.f32.mrb[0].mxu0
    %1232 = vmatprep.mubr.bf16.mxu0 0
    %1233 = vmatmul.mubr.bf16.gmra.mrb[0].mxu0 %v711
    %v1234 = vpop.f32.mrb[0].mxu0
    %v1235 = vadd.f32 0.0, %v1234
    %v1236 = vpop.f32.mrb[0].mxu0
    %v1237 = vpop.f32.mrb[0].mxu0
    %v1238 = vadd.f32 0.0, %v1237
    %v1239 = vpop.f32.mrb[0].mxu0
    %1240 = vmatprep.mubr.bf16.mxu0 0
    %1241 = vmatmul.mubr.bf16.gmra.mrb[0].mxu0 %v714
    %v1242 = vpop.f32.mrb[0].mxu0
    %v1243 = vadd.f32 0.0, %v1242
    %v1244 = vpop.f32.mrb[0].mxu0
    %v1245 = vpop.f32.mrb[0].mxu0
    %v1246 = vadd.f32 0.0, %v1245
    %v1247 = vpop.f32.mrb[0].mxu0
    %1248 = vmatprep.mubr.bf16.mxu0 0
    %1249 = vmatmul.mubr.bf16.gmra.mrb[0].mxu0 %v717
    %v1250 = vpop.f32.mrb[0].mxu0
    %v1251 = vadd.f32 0.0, %v1250
    %v1252 = vpop.f32.mrb[0].mxu0
    %v1253 = vpop.f32.mrb[0].mxu0
    %v1254 = vadd.f32 0.0, %v1253
    %v1255 = vpop.f32.mrb[0].mxu0
    %1256 = vmatprep.mubr.bf16.mxu0 0
    %1257 = vmatmul.mubr.bf16.gmra.mrb[0].mxu0 %v720
    %v1258 = vpop.f32.mrb[0].mxu0
    %v1259 = vadd.f32 0.0, %v1258
    %v1260 = vpop.f32.mrb[0].mxu0
    %v1261 = vpop.f32.mrb[0].mxu0
    %v1262 = vadd.f32 0.0, %v1261
    %v1263 = vpop.f32.mrb[0].mxu0
    %1264 = vmatprep.mubr.bf16.mxu0 0
    %1265 = vmatmul.mubr.bf16.gmra.mrb[0].mxu0 %v723
    %v1266 = vpop.f32.mrb[0].mxu0
    %v1267 = vadd.f32 0.0, %v1266
    %v1268 = vpop.f32.mrb[0].mxu0
    %v1269 = vpop.f32.mrb[0].mxu0
    %v1270 = vadd.f32 0.0, %v1269
    %v1271 = vpop.f32.mrb[0].mxu0
    %1272 = vmatprep.mubr.bf16.mxu0 0
    %1273 = vmatmul.mubr.bf16.gmra.mrb[0].mxu0 %v726
    %v1274 = vpop.f32.mrb[0].mxu0
    %v1275 = vadd.f32 0.0, %v1274
    %v1276 = vpop.f32.mrb[0].mxu0
    %v1277 = vpop.f32.mrb[0].mxu0
    %v1278 = vadd.f32 0.0, %v1277
    %v1279 = vpop.f32.mrb[0].mxu0
    %1280 = vmatprep.mubr.bf16.mxu0 0
    %1281 = vmatmul.mubr.bf16.gmra.mrb[0].mxu0 %v729
    %v1282 = vpop.f32.mrb[0].mxu0
    %v1283 = vadd.f32 0.0, %v1282
    %v1284 = vpop.f32.mrb[0].mxu0
    %v1285 = vpop.f32.mrb[0].mxu0
    %v1286 = vadd.f32 0.0, %v1285
    %v1287 = vpop.f32.mrb[0].mxu0
    %1288 = vmatprep.mubr.bf16.mxu0 0
    %1289 = vmatmul.mubr.bf16.gmra.mrb[0].mxu0 %v732
    %v1290 = vpop.f32.mrb[0].mxu0
    %v1291 = vadd.f32 0.0, %v1290
    %v1292 = vpop.f32.mrb[0].mxu0
    %v1293 = vpop.f32.mrb[0].mxu0
    %v1294 = vadd.f32 0.0, %v1293
    %v1295 = vpop.f32.mrb[0].mxu0
    %1296 = vmatprep.mubr.bf16.mxu0 0
    %1297 = vmatmul.mubr.bf16.gmra.mrb[0].mxu0 %v735
    %v1298 = vpop.f32.mrb[0].mxu0
    %v1299 = vadd.f32 0.0, %v1298
    %v1300 = vpop.f32.mrb[0].mxu0
    %v1301 = vpop.f32.mrb[0].mxu0
    %v1302 = vadd.f32 0.0, %v1301
    %v1303 = vpop.f32.mrb[0].mxu0
    %1304 = vmatprep.mubr.bf16.mxu0 0
    %1305 = vmatmul.mubr.bf16.gmra.mrb[0].mxu0 %v738
    %v1306 = vpop.f32.mrb[0].mxu0
    %v1307 = vadd.f32 0.0, %v1306
    %v1308 = vpop.f32.mrb[0].mxu0
    %v1309 = vpop.f32.mrb[0].mxu0
    %v1310 = vadd.f32 0.0, %v1309
    %v1311 = vpop.f32.mrb[0].mxu0
    %1312 = vmatprep.mubr.bf16.mxu0 0
    %1313 = vmatmul.mubr.bf16.gmra.mrb[0].mxu0 %v741
    %v1314 = vpop.f32.mrb[0].mxu0
    %v1315 = vadd.f32 0.0, %v1314
    %v1316 = vpop.f32.mrb[0].mxu0
    %v1317 = vpop.f32.mrb[0].mxu0
    %v1318 = vadd.f32 0.0, %v1317
    %v1319 = vpop.f32.mrb[0].mxu0
    %1320 = vmatprep.mubr.bf16.mxu0 0
    %1321 = vmatmul.mubr.bf16.gmra.mrb[0].mxu0 %v744
    %v1322 = vpop.f32.mrb[0].mxu0
    %v1323 = vadd.f32 0.0, %v1322
    %v1324 = vpop.f32.mrb[0].mxu0
    %v1325 = vpop.f32.mrb[0].mxu0
    %v1326 = vadd.f32 0.0, %v1325
    %v1327 = vpop.f32.mrb[0].mxu0
    %1328 = vmatprep.mubr.bf16.mxu0 0
    %1329 = vmatmul.mubr.bf16.gmra.mrb[0].mxu0 %v747
    %v1330 = vpop.f32.mrb[0].mxu0
    %v1331 = vadd.f32 0.0, %v1330
    %v1332 = vpop.f32.mrb[0].mxu0
    %v1333 = vpop.f32.mrb[0].mxu0
    %v1334 = vadd.f32 0.0, %v1333
    %v1335 = vpop.f32.mrb[0].mxu0
    %1336 = vmatprep.mubr.bf16.mxu0 0
    %1337 = vmatmul.mubr.bf16.gmra.mrb[0].mxu0 %v750
    %v1338 = vpop.f32.mrb[0].mxu0
    %v1339 = vadd.f32 0.0, %v1338
    %v1340 = vpop.f32.mrb[0].mxu0
    %v1341 = vpop.f32.mrb[0].mxu0
    %v1342 = vadd.f32 0.0, %v1341
    %v1343 = vpop.f32.mrb[0].mxu0
    %1344 = vmatprep.mubr.bf16.mxu0 0
    %1345 = vmatmul.mubr.bf16.gmra.mrb[0].mxu0 %v753
    %v1346 = vpop.f32.mrb[0].mxu0
    %v1347 = vadd.f32 0.0, %v1346
    %v1348 = vpop.f32.mrb[0].mxu0
    %v1349 = vpop.f32.mrb[0].mxu0
    %v1350 = vadd.f32 0.0, %v1349
    %v1351 = vpop.f32.mrb[0].mxu0
    %1352 = vmatprep.mubr.bf16.mxu0 0
    %1353 = vmatmul.mubr.bf16.gmra.mrb[0].mxu0 %v756
    %v1354 = vpop.f32.mrb[0].mxu0
    %v1355 = vadd.f32 0.0, %v1354
    %v1356 = vpop.f32.mrb[0].mxu0
    %v1357 = vpop.f32.mrb[0].mxu0
    %v1358 = vadd.f32 0.0, %v1357
    %v1359 = vpop.f32.mrb[0].mxu0
    %1360 = vmatprep.mubr.bf16.mxu0 0
    %1361 = vmatmul.mubr.bf16.gmra.mrb[0].mxu0 %v759
    %v1362 = vpop.f32.mrb[0].mxu0
    %v1363 = vadd.f32 0.0, %v1362
    %v1364 = vpop.f32.mrb[0].mxu0
    %v1365 = vpop.f32.mrb[0].mxu0
    %v1366 = vadd.f32 0.0, %v1365
    %v1367 = vpop.f32.mrb[0].mxu0
    %1368 = vmatprep.mubr.bf16.mxu0 0
    %1369 = vmatmul.mubr.bf16.gmra.mrb[0].mxu0 %v762
    %v1370 = vpop.f32.mrb[0].mxu0
    %v1371 = vadd.f32 0.0, %v1370
    %v1372 = vpop.f32.mrb[0].mxu0
    %v1373 = vpop.f32.mrb[0].mxu0
    %v1374 = vadd.f32 0.0, %v1373
    %v1375 = vpop.f32.mrb[0].mxu0
    %1376 = vdwg.mxu0
    %v1377 = vmax.f32 %v803, %v947
    %v1378 = vmax.f32 %v806, %v950
    %v1379 = vmax.f32 %v811, %v955
    %v1380 = vmax.f32 %v814, %v958
    %v1381 = vmax.f32 %v819, %v963
    %v1382 = vmax.f32 %v822, %v966
    %v1383 = vmax.f32 %v827, %v971
    %v1384 = vmax.f32 %v830, %v974
    %v1385 = vmax.f32 %v835, %v979
    %v1386 = vmax.f32 %v838, %v982
    %v1387 = vmax.f32 %v843, %v987
    %v1388 = vmax.f32 %v846, %v990
    %v1389 = vmax.f32 %v851, %v995
    %v1390 = vmax.f32 %v854, %v998
    %v1391 = vmax.f32 %v859, %v1003
    %v1392 = vmax.f32 %v862, %v1006
    %v1393 = vmax.f32 %v867, %v1011
    %v1394 = vmax.f32 %v870, %v1014
    %v1395 = vmax.f32 %v875, %v1019
    %v1396 = vmax.f32 %v878, %v1022
    %v1397 = vmax.f32 %v883, %v1027
    %v1398 = vmax.f32 %v886, %v1030
    %v1399 = vmax.f32 %v891, %v1035
    %v1400 = vmax.f32 %v894, %v1038
    %v1401 = vmax.f32 %v899, %v1043
    %v1402 = vmax.f32 %v902, %v1046
    %v1403 = vmax.f32 %v907, %v1051
    %v1404 = vmax.f32 %v910, %v1054
    %v1405 = vmax.f32 %v915, %v1059
    %v1406 = vmax.f32 %v918, %v1062
    %v1407 = vmax.f32 %v923, %v1067
    %v1408 = vmax.f32 %v926, %v1070
    %v1409 = vmax.f32 %v931, %v1075
    %v1410 = vmax.f32 %v934, %v1078
    %v1411 = vmax.f32 %v939, %v1083
    %v1412 = vmax.f32 %v942, %v1086
    %v1413 = vmax.f32 %v1091, %v1235
    %v1414 = vmax.f32 %v1094, %v1238
    %v1415 = vmax.f32 %v1099, %v1243
    %v1416 = vmax.f32 %v1102, %v1246
    %v1417 = vmax.f32 %v1107, %v1251
    %v1418 = vmax.f32 %v1110, %v1254
    %v1419 = vmax.f32 %v1115, %v1259
    %v1420 = vmax.f32 %v1118, %v1262
    %v1421 = vmax.f32 %v1123, %v1267
    %v1422 = vmax.f32 %v1126, %v1270
    %v1423 = vmax.f32 %v1131, %v1275
    %v1424 = vmax.f32 %v1134, %v1278
    %v1425 = vmax.f32 %v1139, %v1283
    %v1426 = vmax.f32 %v1142, %v1286
    %v1427 = vmax.f32 %v1147, %v1291
    %v1428 = vmax.f32 %v1150, %v1294
    %v1429 = vmax.f32 %v1155, %v1299
    %v1430 = vmax.f32 %v1158, %v1302
    %v1431 = vmax.f32 %v1163, %v1307
    %v1432 = vmax.f32 %v1166, %v1310
    %v1433 = vmax.f32 %v1171, %v1315
    %v1434 = vmax.f32 %v1174, %v1318
    %v1435 = vmax.f32 %v1179, %v1323
    %v1436 = vmax.f32 %v1182, %v1326
    %v1437 = vmax.f32 %v1187, %v1331
    %v1438 = vmax.f32 %v1190, %v1334
    %v1439 = vmax.f32 %v1195, %v1339
    %v1440 = vmax.f32 %v1198, %v1342
    %v1441 = vmax.f32 %v1203, %v1347
    %v1442 = vmax.f32 %v1206, %v1350
    %v1443 = vmax.f32 %v1211, %v1355
    %v1444 = vmax.f32 %v1214, %v1358
    %v1445 = vmax.f32 %v1219, %v1363
    %v1446 = vmax.f32 %v1222, %v1366
    %v1447 = vmax.f32 %v1227, %v1371
    %v1448 = vmax.f32 %v1230, %v1374
    %v1449 = vmax.f32 %v1377, %v1413
    %v1450 = vmax.f32 %v1378, %v1414
    %v1451 = vmax.f32 %v1379, %v1415
    %v1452 = vmax.f32 %v1380, %v1416
    %v1453 = vmax.f32 %v1381, %v1417
    %v1454 = vmax.f32 %v1382, %v1418
    %v1455 = vmax.f32 %v1383, %v1419
    %v1456 = vmax.f32 %v1384, %v1420
    %v1457 = vmax.f32 %v1385, %v1421
    %v1458 = vmax.f32 %v1386, %v1422
    %v1459 = vmax.f32 %v1387, %v1423
    %v1460 = vmax.f32 %v1388, %v1424
    %v1461 = vmax.f32 %v1389, %v1425
    %v1462 = vmax.f32 %v1390, %v1426
    %v1463 = vmax.f32 %v1391, %v1427
    %v1464 = vmax.f32 %v1392, %v1428
    %v1465 = vmax.f32 %v1393, %v1429
    %v1466 = vmax.f32 %v1394, %v1430
    %v1467 = vmax.f32 %v1395, %v1431
    %v1468 = vmax.f32 %v1396, %v1432
    %v1469 = vmax.f32 %v1397, %v1433
    %v1470 = vmax.f32 %v1398, %v1434
    %v1471 = vmax.f32 %v1399, %v1435
    %v1472 = vmax.f32 %v1400, %v1436
    %v1473 = vmax.f32 %v1401, %v1437
    %v1474 = vmax.f32 %v1402, %v1438
    %v1475 = vmax.f32 %v1403, %v1439
    %v1476 = vmax.f32 %v1404, %v1440
    %v1477 = vmax.f32 %v1405, %v1441
    %v1478 = vmax.f32 %v1406, %v1442
    %v1479 = vmax.f32 %v1407, %v1443
    %v1480 = vmax.f32 %v1408, %v1444
    %v1481 = vmax.f32 %v1409, %v1445
    %v1482 = vmax.f32 %v1410, %v1446
    %v1483 = vmax.f32 %v1411, %v1447
    %v1484 = vmax.f32 %v1412, %v1448
    %v1485 = vmax.f32 %v1449, 0.0
    %v1486 = vmax.f32 %v1450, 0.0
    %v1487 = vmax.f32 %v1451, 0.0
    %v1488 = vmax.f32 %v1452, 0.0
    %v1489 = vmax.f32 %v1453, 0.0
    %v1490 = vmax.f32 %v1454, 0.0
    %v1491 = vmax.f32 %v1455, 0.0
    %v1492 = vmax.f32 %v1456, 0.0
    %v1493 = vmax.f32 %v1457, 0.0
    %v1494 = vmax.f32 %v1458, 0.0
    %v1495 = vmax.f32 %v1459, 0.0
    %v1496 = vmax.f32 %v1460, 0.0
    %v1497 = vmax.f32 %v1461, 0.0
    %v1498 = vmax.f32 %v1462, 0.0
    %v1499 = vmax.f32 %v1463, 0.0
    %v1500 = vmax.f32 %v1464, 0.0
    %v1501 = vmax.f32 %v1465, 0.0
    %v1502 = vmax.f32 %v1466, 0.0
    %v1503 = vmax.f32 %v1467, 0.0
    %v1504 = vmax.f32 %v1468, 0.0
    %v1505 = vmax.f32 %v1469, 0.0
    %v1506 = vmax.f32 %v1470, 0.0
    %v1507 = vmax.f32 %v1471, 0.0
    %v1508 = vmax.f32 %v1472, 0.0
    %v1509 = vmax.f32 %v1473, 0.0
    %v1510 = vmax.f32 %v1474, 0.0
    %v1511 = vmax.f32 %v1475, 0.0
    %v1512 = vmax.f32 %v1476, 0.0
    %v1513 = vmax.f32 %v1477, 0.0
    %v1514 = vmax.f32 %v1478, 0.0
    %v1515 = vmax.f32 %v1479, 0.0
    %v1516 = vmax.f32 %v1480, 0.0
    %v1517 = vmax.f32 %v1481, 0.0
    %v1518 = vmax.f32 %v1482, 0.0
    %v1519 = vmax.f32 %v1483, 0.0
    %v1520 = vmax.f32 %v1484, 0.0
    %v1521 = vpack.c.bf16 %v1486, %v1485
    %v1522 = vpack.c.bf16 %v1488, %v1487
    %v1523 = vpack.c.bf16 %v1490, %v1489
    %v1524 = vpack.c.bf16 %v1492, %v1491
    %v1525 = vpack.c.bf16 %v1494, %v1493
    %v1526 = vpack.c.bf16 %v1496, %v1495
    %v1527 = vpack.c.bf16 %v1498, %v1497
    %v1528 = vpack.c.bf16 %v1500, %v1499
    %v1529 = vpack.c.bf16 %v1502, %v1501
    %v1530 = vpack.c.bf16 %v1504, %v1503
    %v1531 = vpack.c.bf16 %v1506, %v1505
    %v1532 = vpack.c.bf16 %v1508, %v1507
    %v1533 = vpack.c.bf16 %v1510, %v1509
    %v1534 = vpack.c.bf16 %v1512, %v1511
    %v1535 = vpack.c.bf16 %v1514, %v1513
    %v1536 = vpack.c.bf16 %v1516, %v1515
    %v1537 = vpack.c.bf16 %v1518, %v1517
    %v1538 = vpack.c.bf16 %v1520, %v1519
    %v1539 = vld [vmem:[%s2] sm:$0x7]
    %v1540 = vpack.c.bf16 0.0, 0.0
    %s1541 = scalar_lea.vmem %s2, 4
    %v1542 = vld [vmem:[%s1541] sm:$0x7]
    %vm1543 = vsmask.f32 7424
    %v1545 = vshrl.u32 %v1521, 16
    %v1547 = vshll.u32 %v1521, 16
    %v1549 = vrot.slane %v1547, 1
    %v1550 = vor.u32 %v1545, %v1549
    %v1552 = vshll.u32 %v1522, 16
    %v1554 = vrot.slane %v1552, 1
    %v1555 = vsel %vm1543, %v1550, %v1554
    %v1556 = vshrl.u32 %v1522, 16
    %v1558 = vor.u32 %v1556, %v1554
    %v1560 = vshll.u32 %v1523, 16
    %v1562 = vrot.slane %v1560, 1
    %v1563 = vsel %vm1543, %v1558, %v1562
    %v1564 = vshrl.u32 %v1523, 16
    %v1566 = vor.u32 %v1564, %v1562
    %v1568 = vshll.u32 %v1524, 16
    %v1570 = vrot.slane %v1568, 1
    %v1571 = vsel %vm1543, %v1566, %v1570
    %v1572 = vshrl.u32 %v1524, 16
    %v1574 = vor.u32 %v1572, %v1570
    %v1576 = vshll.u32 %v1525, 16
    %v1578 = vrot.slane %v1576, 1
    %v1579 = vsel %vm1543, %v1574, %v1578
    %v1580 = vshrl.u32 %v1525, 16
    %v1582 = vor.u32 %v1580, %v1578
    %v1584 = vshll.u32 %v1526, 16
    %v1586 = vrot.slane %v1584, 1
    %v1587 = vsel %vm1543, %v1582, %v1586
    %v1588 = vshrl.u32 %v1526, 16
    %v1590 = vor.u32 %v1588, %v1586
    %v1592 = vshll.u32 %v1527, 16
    %v1594 = vrot.slane %v1592, 1
    %v1595 = vsel %vm1543, %v1590, %v1594
    %v1596 = vshrl.u32 %v1527, 16
    %v1598 = vor.u32 %v1596, %v1594
    %v1600 = vshll.u32 %v1528, 16
    %v1602 = vrot.slane %v1600, 1
    %v1603 = vsel %vm1543, %v1598, %v1602
    %v1604 = vshrl.u32 %v1528, 16
    %v1606 = vor.u32 %v1604, %v1602
    %v1608 = vshll.u32 %v1529, 16
    %v1610 = vrot.slane %v1608, 1
    %v1611 = vsel %vm1543, %v1606, %v1610
    %v1612 = vshrl.u32 %v1529, 16
    %v1614 = vor.u32 %v1612, %v1610
    %v1616 = vshll.u32 %v1530, 16
    %v1618 = vrot.slane %v1616, 1
    %v1619 = vsel %vm1543, %v1614, %v1618
    %v1620 = vshrl.u32 %v1530, 16
    %v1622 = vor.u32 %v1620, %v1618
    %v1624 = vshll.u32 %v1531, 16
    %v1626 = vrot.slane %v1624, 1
    %v1627 = vsel %vm1543, %v1622, %v1626
    %v1628 = vshrl.u32 %v1531, 16
    %v1630 = vor.u32 %v1628, %v1626
    %v1632 = vshll.u32 %v1532, 16
    %v1634 = vrot.slane %v1632, 1
    %v1635 = vsel %vm1543, %v1630, %v1634
    %v1636 = vshrl.u32 %v1532, 16
    %v1638 = vor.u32 %v1636, %v1634
    %v1640 = vshll.u32 %v1533, 16
    %v1642 = vrot.slane %v1640, 1
    %v1643 = vsel %vm1543, %v1638, %v1642
    %v1644 = vshrl.u32 %v1533, 16
    %v1646 = vor.u32 %v1644, %v1642
    %v1648 = vshll.u32 %v1534, 16
    %v1650 = vrot.slane %v1648, 1
    %v1651 = vsel %vm1543, %v1646, %v1650
    %v1652 = vshrl.u32 %v1534, 16
    %v1654 = vor.u32 %v1652, %v1650
    %v1656 = vshll.u32 %v1535, 16
    %v1658 = vrot.slane %v1656, 1
    %v1659 = vsel %vm1543, %v1654, %v1658
    %v1660 = vshrl.u32 %v1535, 16
    %v1662 = vor.u32 %v1660, %v1658
    %v1664 = vshll.u32 %v1536, 16
    %v1666 = vrot.slane %v1664, 1
    %v1667 = vsel %vm1543, %v1662, %v1666
    %v1668 = vshrl.u32 %v1536, 16
    %v1670 = vor.u32 %v1668, %v1666
    %v1672 = vshll.u32 %v1537, 16
    %v1674 = vrot.slane %v1672, 1
    %v1675 = vsel %vm1543, %v1670, %v1674
    %v1676 = vshrl.u32 %v1537, 16
    %v1678 = vor.u32 %v1676, %v1674
    %v1680 = vshll.u32 %v1538, 16
    %v1682 = vrot.slane %v1680, 1
    %v1683 = vsel %vm1543, %v1678, %v1682
    %v1684 = vshrl.u32 %v1538, 16
    %v1686 = vor.u32 %v1684, %v1682
    %v1688 = vshll.u32 %v1540, 16
    %v1690 = vrot.slane %v1688, 1
    %v1691 = vsel %vm1543, %v1686, %v1690
    %vm1692 = vcmask 48128
    %v1694 = vsel %vm1692, %v1555, 0
    %v1697 = vsel %vm1692, %v1563, 0
    %v1700 = vsel %vm1692, %v1571, 0
    %v1703 = vsel %vm1692, %v1579, 0
    %v1706 = vsel %vm1692, %v1587, 0
    %v1709 = vsel %vm1692, %v1595, 0
    %v1712 = vsel %vm1692, %v1603, 0
    %v1715 = vsel %vm1692, %v1611, 0
    %v1718 = vsel %vm1692, %v1619, 0
    %v1721 = vsel %vm1692, %v1627, 0
    %v1724 = vsel %vm1692, %v1635, 0
    %v1727 = vsel %vm1692, %v1643, 0
    %v1730 = vsel %vm1692, %v1651, 0
    %v1733 = vsel %vm1692, %v1659, 0
    %v1736 = vsel %vm1692, %v1667, 0
    %v1739 = vsel %vm1692, %v1675, 0
    %v1742 = vsel %vm1692, %v1683, 0
    %v1745 = vsel %vm1692, %v1691, 0
    %vm1747 = vcmask 1042432
    %v1749 = vsel %vm1747, %v1542, 0
    %1751 = vmatprep.subr.bf16.mxu0 0
    %1752 = vmatpush1.bf16.msra.mxu0 %v1749
    %1753 = vmatprep.subr.bf16.mxu0 0
    %1754 = vmatpush1.bf16.msra.mxu0 0
    %1755 = vmatprep.subr.bf16.mxu0 0
    %1756 = vmatpush1.bf16.msra.mxu0 0
    %1757 = vmatprep.subr.bf16.mxu0 0
    %1758 = vmatpush1.bf16.msra.mxu0 0
    %1759 = vmatprep.subr.bf16.mxu0 0
    %1760 = vmatpush1.bf16.msra.mxu0 0
    %1761 = vmatprep.subr.bf16.mxu0 0
    %1762 = vmatpush1.bf16.msra.mxu0 0
    %1763 = vmatprep.subr.bf16.mxu0 0
    %1764 = vmatpush1.bf16.msra.mxu0 0
    %1765 = vmatprep.subr.bf16.mxu0 0
    %1766 = vmatpush1.bf16.msra.mxu0 0
    %1767 = vmatprep.subr.bf16.mxu0 0
    %1768 = vmatpush1.bf16.msra.mxu0 0
    %1769 = vmatprep.subr.bf16.mxu0 0
    %1770 = vmatpush1.bf16.msra.mxu0 0
    %1771 = vmatprep.subr.bf16.mxu0 0
    %1772 = vmatpush1.bf16.msra.mxu0 0
    %1773 = vmatprep.subr.bf16.mxu0 0
    %1774 = vmatpush1.bf16.msra.mxu0 0
    %1775 = vmatprep.subr.bf16.mxu0 0
    %1776 = vmatpush1.bf16.msra.mxu0 0
    %1777 = vmatprep.subr.bf16.mxu0 0
    %1778 = vmatpush1.bf16.msra.mxu0 0
    %1779 = vmatprep.subr.bf16.mxu0 0
    %1780 = vmatpush1.bf16.msra.mxu0 0
    %1781 = vmatprep.subr.bf16.mxu0 0
    %1782 = vmatpush1.bf16.msra.mxu0 0
    %1783 = vmatprep.mubr.bf16.mxu0 0
    %1784 = vmatmul.mubr.bf16.gmra.mrb[0].mxu0 %v1694
    %v1785 = vpop.f32.mrb[0].mxu0
    %v1786 = vadd.f32 0.0, %v1785
    %v1787 = vpop.f32.mrb[0].mxu0
    %v1788 = vpop.f32.mrb[0].mxu0
    %v1789 = vadd.f32 0.0, %v1788
    %v1790 = vpop.f32.mrb[0].mxu0
    %1791 = vmatprep.mubr.bf16.mxu0 0
    %1792 = vmatmul.mubr.bf16.gmra.mrb[0].mxu0 %v1697
    %v1793 = vpop.f32.mrb[0].mxu0
    %v1794 = vadd.f32 0.0, %v1793
    %v1795 = vpop.f32.mrb[0].mxu0
    %v1796 = vpop.f32.mrb[0].mxu0
    %v1797 = vadd.f32 0.0, %v1796
    %v1798 = vpop.f32.mrb[0].mxu0
    %1799 = vmatprep.mubr.bf16.mxu0 0
    %1800 = vmatmul.mubr.bf16.gmra.mrb[0].mxu0 %v1700
    %v1801 = vpop.f32.mrb[0].mxu0
    %v1802 = vadd.f32 0.0, %v1801
    %v1803 = vpop.f32.mrb[0].mxu0
    %v1804 = vpop.f32.mrb[0].mxu0
    %v1805 = vadd.f32 0.0, %v1804
    %v1806 = vpop.f32.mrb[0].mxu0
    %1807 = vmatprep.mubr.bf16.mxu0 0
    %1808 = vmatmul.mubr.bf16.gmra.mrb[0].mxu0 %v1703
    %v1809 = vpop.f32.mrb[0].mxu0
    %v1810 = vadd.f32 0.0, %v1809
    %v1811 = vpop.f32.mrb[0].mxu0
    %v1812 = vpop.f32.mrb[0].mxu0
    %v1813 = vadd.f32 0.0, %v1812
    %v1814 = vpop.f32.mrb[0].mxu0
    %1815 = vmatprep.mubr.bf16.mxu0 0
    %1816 = vmatmul.mubr.bf16.gmra.mrb[0].mxu0 %v1706
    %v1817 = vpop.f32.mrb[0].mxu0
    %v1818 = vadd.f32 0.0, %v1817
    %v1819 = vpop.f32.mrb[0].mxu0
    %v1820 = vpop.f32.mrb[0].mxu0
    %v1821 = vadd.f32 0.0, %v1820
    %v1822 = vpop.f32.mrb[0].mxu0
    %1823 = vmatprep.mubr.bf16.mxu0 0
    %1824 = vmatmul.mubr.bf16.gmra.mrb[0].mxu0 %v1709
    %v1825 = vpop.f32.mrb[0].mxu0
    %v1826 = vadd.f32 0.0, %v1825
    %v1827 = vpop.f32.mrb[0].mxu0
    %v1828 = vpop.f32.mrb[0].mxu0
    %v1829 = vadd.f32 0.0, %v1828
    %v1830 = vpop.f32.mrb[0].mxu0
    %1831 = vmatprep.mubr.bf16.mxu0 0
    %1832 = vmatmul.mubr.bf16.gmra.mrb[0].mxu0 %v1712
    %v1833 = vpop.f32.mrb[0].mxu0
    %v1834 = vadd.f32 0.0, %v1833
    %v1835 = vpop.f32.mrb[0].mxu0
    %v1836 = vpop.f32.mrb[0].mxu0
    %v1837 = vadd.f32 0.0, %v1836
    %v1838 = vpop.f32.mrb[0].mxu0
    %1839 = vmatprep.mubr.bf16.mxu0 0
    %1840 = vmatmul.mubr.bf16.gmra.mrb[0].mxu0 %v1715
    %v1841 = vpop.f32.mrb[0].mxu0
    %v1842 = vadd.f32 0.0, %v1841
    %v1843 = vpop.f32.mrb[0].mxu0
    %v1844 = vpop.f32.mrb[0].mxu0
    %v1845 = vadd.f32 0.0, %v1844
    %v1846 = vpop.f32.mrb[0].mxu0
    %1847 = vmatprep.mubr.bf16.mxu0 0
    %1848 = vmatmul.mubr.bf16.gmra.mrb[0].mxu0 %v1718
    %v1849 = vpop.f32.mrb[0].mxu0
    %v1850 = vadd.f32 0.0, %v1849
    %v1851 = vpop.f32.mrb[0].mxu0
    %v1852 = vpop.f32.mrb[0].mxu0
    %v1853 = vadd.f32 0.0, %v1852
    %v1854 = vpop.f32.mrb[0].mxu0
    %1855 = vmatprep.mubr.bf16.mxu0 0
    %1856 = vmatmul.mubr.bf16.gmra.mrb[0].mxu0 %v1721
    %v1857 = vpop.f32.mrb[0].mxu0
    %v1858 = vadd.f32 0.0, %v1857
    %v1859 = vpop.f32.mrb[0].mxu0
    %v1860 = vpop.f32.mrb[0].mxu0
    %v1861 = vadd.f32 0.0, %v1860
    %v1862 = vpop.f32.mrb[0].mxu0
    %1863 = vmatprep.mubr.bf16.mxu0 0
    %1864 = vmatmul.mubr.bf16.gmra.mrb[0].mxu0 %v1724
    %v1865 = vpop.f32.mrb[0].mxu0
    %v1866 = vadd.f32 0.0, %v1865
    %v1867 = vpop.f32.mrb[0].mxu0
    %v1868 = vpop.f32.mrb[0].mxu0
    %v1869 = vadd.f32 0.0, %v1868
    %v1870 = vpop.f32.mrb[0].mxu0
    %1871 = vmatprep.mubr.bf16.mxu0 0
    %1872 = vmatmul.mubr.bf16.gmra.mrb[0].mxu0 %v1727
    %v1873 = vpop.f32.mrb[0].mxu0
    %v1874 = vadd.f32 0.0, %v1873
    %v1875 = vpop.f32.mrb[0].mxu0
    %v1876 = vpop.f32.mrb[0].mxu0
    %v1877 = vadd.f32 0.0, %v1876
    %v1878 = vpop.f32.mrb[0].mxu0
    %1879 = vmatprep.mubr.bf16.mxu0 0
    %1880 = vmatmul.mubr.bf16.gmra.mrb[0].mxu0 %v1730
    %v1881 = vpop.f32.mrb[0].mxu0
    %v1882 = vadd.f32 0.0, %v1881
    %v1883 = vpop.f32.mrb[0].mxu0
    %v1884 = vpop.f32.mrb[0].mxu0
    %v1885 = vadd.f32 0.0, %v1884
    %v1886 = vpop.f32.mrb[0].mxu0
    %1887 = vmatprep.mubr.bf16.mxu0 0
    %1888 = vmatmul.mubr.bf16.gmra.mrb[0].mxu0 %v1733
    %v1889 = vpop.f32.mrb[0].mxu0
    %v1890 = vadd.f32 0.0, %v1889
    %v1891 = vpop.f32.mrb[0].mxu0
    %v1892 = vpop.f32.mrb[0].mxu0
    %v1893 = vadd.f32 0.0, %v1892
    %v1894 = vpop.f32.mrb[0].mxu0
    %1895 = vmatprep.mubr.bf16.mxu0 0
    %1896 = vmatmul.mubr.bf16.gmra.mrb[0].mxu0 %v1736
    %v1897 = vpop.f32.mrb[0].mxu0
    %v1898 = vadd.f32 0.0, %v1897
    %v1899 = vpop.f32.mrb[0].mxu0
    %v1900 = vpop.f32.mrb[0].mxu0
    %v1901 = vadd.f32 0.0, %v1900
    %v1902 = vpop.f32.mrb[0].mxu0
    %1903 = vmatprep.mubr.bf16.mxu0 0
    %1904 = vmatmul.mubr.bf16.gmra.mrb[0].mxu0 %v1739
    %v1905 = vpop.f32.mrb[0].mxu0
    %v1906 = vadd.f32 0.0, %v1905
    %v1907 = vpop.f32.mrb[0].mxu0
    %v1908 = vpop.f32.mrb[0].mxu0
    %v1909 = vadd.f32 0.0, %v1908
    %v1910 = vpop.f32.mrb[0].mxu0
    %1911 = vmatprep.mubr.bf16.mxu0 0
    %1912 = vmatmul.mubr.bf16.gmra.mrb[0].mxu0 %v1742
    %v1913 = vpop.f32.mrb[0].mxu0
    %v1914 = vadd.f32 0.0, %v1913
    %v1915 = vpop.f32.mrb[0].mxu0
    %v1916 = vpop.f32.mrb[0].mxu0
    %v1917 = vadd.f32 0.0, %v1916
    %v1918 = vpop.f32.mrb[0].mxu0
    %1919 = vmatprep.mubr.bf16.mxu0 0
    %1920 = vmatmul.mubr.bf16.gmra.mrb[0].mxu0 %v1745
    %v1921 = vpop.f32.mrb[0].mxu0
    %v1922 = vadd.f32 0.0, %v1921
    %v1923 = vpop.f32.mrb[0].mxu0
    %v1924 = vpop.f32.mrb[0].mxu0
    %v1925 = vadd.f32 0.0, %v1924
    %v1926 = vpop.f32.mrb[0].mxu0
    %1927 = vdwg.mxu0
    %s1928 = scalar_lea.vmem %s2, 8
    %v1929 = vld [vmem:[%s1928] sm:$0x7]
    %v1930 = vpack.c.bf16 %v1487, %v1486
    %v1931 = vpack.c.bf16 %v1489, %v1488
    %v1932 = vpack.c.bf16 %v1491, %v1490
    %v1933 = vpack.c.bf16 %v1493, %v1492
    %v1934 = vpack.c.bf16 %v1495, %v1494
    %v1935 = vpack.c.bf16 %v1497, %v1496
    %v1936 = vpack.c.bf16 %v1499, %v1498
    %v1937 = vpack.c.bf16 %v1501, %v1500
    %v1938 = vpack.c.bf16 %v1503, %v1502
    %v1939 = vpack.c.bf16 %v1505, %v1504
    %v1940 = vpack.c.bf16 %v1507, %v1506
    %v1941 = vpack.c.bf16 %v1509, %v1508
    %v1942 = vpack.c.bf16 %v1511, %v1510
    %v1943 = vpack.c.bf16 %v1513, %v1512
    %v1944 = vpack.c.bf16 %v1515, %v1514
    %v1945 = vpack.c.bf16 %v1517, %v1516
    %v1946 = vpack.c.bf16 %v1519, %v1518
    %v1947 = vpack.c.bf16 0.0, %v1520
    %s1948 = scalar_lea.vmem %s2, 12
    %v1949 = vld [vmem:[%s1948] sm:$0x7]
    %vm1969 = vcmask 1045504
    %v1970 = vrot.slane %v1930, 2
    %v1971 = vrot.slane %v1931, 2
    %v1972 = vsel %vm1969, %v1970, %v1971
    %v1973 = vrot.slane %v1932, 2
    %v1974 = vsel %vm1969, %v1971, %v1973
    %v1975 = vrot.slane %v1933, 2
    %v1976 = vsel %vm1969, %v1973, %v1975
    %v1977 = vrot.slane %v1934, 2
    %v1978 = vsel %vm1969, %v1975, %v1977
    %v1979 = vrot.slane %v1935, 2
    %v1980 = vsel %vm1969, %v1977, %v1979
    %v1981 = vrot.slane %v1936, 2
    %v1982 = vsel %vm1969, %v1979, %v1981
    %v1983 = vrot.slane %v1937, 2
    %v1984 = vsel %vm1969, %v1981, %v1983
    %v1985 = vrot.slane %v1938, 2
    %v1986 = vsel %vm1969, %v1983, %v1985
    %v1987 = vrot.slane %v1939, 2
    %v1988 = vsel %vm1969, %v1985, %v1987
    %v1989 = vrot.slane %v1940, 2
    %v1990 = vsel %vm1969, %v1987, %v1989
    %v1991 = vrot.slane %v1941, 2
    %v1992 = vsel %vm1969, %v1989, %v1991
    %v1993 = vrot.slane %v1942, 2
    %v1994 = vsel %vm1969, %v1991, %v1993
    %v1995 = vrot.slane %v1943, 2
    %v1996 = vsel %vm1969, %v1993, %v1995
    %v1997 = vrot.slane %v1944, 2
    %v1998 = vsel %vm1969, %v1995, %v1997
    %v1999 = vrot.slane %v1945, 2
    %v2000 = vsel %vm1969, %v1997, %v1999
    %v2001 = vrot.slane %v1946, 2
    %v2002 = vsel %vm1969, %v1999, %v2001
    %v2003 = vrot.slane %v1947, 2
    %v2004 = vsel %vm1969, %v2001, %v2003
    %v2005 = vrot.slane %v1540, 2
    %v2006 = vsel %vm1969, %v2003, %v2005
    %v2008 = vsel %vm1692, %v1972, 0
    %v2011 = vsel %vm1692, %v1974, 0
    %v2014 = vsel %vm1692, %v1976, 0
    %v2017 = vsel %vm1692, %v1978, 0
    %v2020 = vsel %vm1692, %v1980, 0
    %v2023 = vsel %vm1692, %v1982, 0
    %v2026 = vsel %vm1692, %v1984, 0
    %v2029 = vsel %vm1692, %v1986, 0
    %v2032 = vsel %vm1692, %v1988, 0
    %v2035 = vsel %vm1692, %v1990, 0
    %v2038 = vsel %vm1692, %v1992, 0
    %v2041 = vsel %vm1692, %v1994, 0
    %v2044 = vsel %vm1692, %v1996, 0
    %v2047 = vsel %vm1692, %v1998, 0
    %v2050 = vsel %vm1692, %v2000, 0
    %v2053 = vsel %vm1692, %v2002, 0
    %v2056 = vsel %vm1692, %v2004, 0
    %v2059 = vsel %vm1692, %v2006, 0
    %v2062 = vsel %vm1747, %v1949, 0
    %2064 = vmatprep.subr.bf16.mxu0 0
    %2065 = vmatpush1.bf16.msra.mxu0 %v2062
    %2066 = vmatprep.subr.bf16.mxu0 0
    %2067 = vmatpush1.bf16.msra.mxu0 0
    %2068 = vmatprep.subr.bf16.mxu0 0
    %2069 = vmatpush1.bf16.msra.mxu0 0
    %2070 = vmatprep.subr.bf16.mxu0 0
    %2071 = vmatpush1.bf16.msra.mxu0 0
    %2072 = vmatprep.subr.bf16.mxu0 0
    %2073 = vmatpush1.bf16.msra.mxu0 0
    %2074 = vmatprep.subr.bf16.mxu0 0
    %2075 = vmatpush1.bf16.msra.mxu0 0
    %2076 = vmatprep.subr.bf16.mxu0 0
    %2077 = vmatpush1.bf16.msra.mxu0 0
    %2078 = vmatprep.subr.bf16.mxu0 0
    %2079 = vmatpush1.bf16.msra.mxu0 0
    %2080 = vmatprep.subr.bf16.mxu0 0
    %2081 = vmatpush1.bf16.msra.mxu0 0
    %2082 = vmatprep.subr.bf16.mxu0 0
    %2083 = vmatpush1.bf16.msra.mxu0 0
    %2084 = vmatprep.subr.bf16.mxu0 0
    %2085 = vmatpush1.bf16.msra.mxu0 0
    %2086 = vmatprep.subr.bf16.mxu0 0
    %2087 = vmatpush1.bf16.msra.mxu0 0
    %2088 = vmatprep.subr.bf16.mxu0 0
    %2089 = vmatpush1.bf16.msra.mxu0 0
    %2090 = vmatprep.subr.bf16.mxu0 0
    %2091 = vmatpush1.bf16.msra.mxu0 0
    %2092 = vmatprep.subr.bf16.mxu0 0
    %2093 = vmatpush1.bf16.msra.mxu0 0
    %2094 = vmatprep.subr.bf16.mxu0 0
    %2095 = vmatpush1.bf16.msra.mxu0 0
    %2096 = vmatprep.mubr.bf16.mxu0 0
    %2097 = vmatmul.mubr.bf16.gmra.mrb[0].mxu0 %v2008
    %v2098 = vpop.f32.mrb[0].mxu0
    %v2099 = vadd.f32 0.0, %v2098
    %v2100 = vpop.f32.mrb[0].mxu0
    %v2101 = vpop.f32.mrb[0].mxu0
    %v2102 = vadd.f32 0.0, %v2101
    %v2103 = vpop.f32.mrb[0].mxu0
    %2104 = vmatprep.mubr.bf16.mxu0 0
    %2105 = vmatmul.mubr.bf16.gmra.mrb[0].mxu0 %v2011
    %v2106 = vpop.f32.mrb[0].mxu0
    %v2107 = vadd.f32 0.0, %v2106
    %v2108 = vpop.f32.mrb[0].mxu0
    %v2109 = vpop.f32.mrb[0].mxu0
    %v2110 = vadd.f32 0.0, %v2109
    %v2111 = vpop.f32.mrb[0].mxu0
    %2112 = vmatprep.mubr.bf16.mxu0 0
    %2113 = vmatmul.mubr.bf16.gmra.mrb[0].mxu0 %v2014
    %v2114 = vpop.f32.mrb[0].mxu0
    %v2115 = vadd.f32 0.0, %v2114
    %v2116 = vpop.f32.mrb[0].mxu0
    %v2117 = vpop.f32.mrb[0].mxu0
    %v2118 = vadd.f32 0.0, %v2117
    %v2119 = vpop.f32.mrb[0].mxu0
    %2120 = vmatprep.mubr.bf16.mxu0 0
    %2121 = vmatmul.mubr.bf16.gmra.mrb[0].mxu0 %v2017
    %v2122 = vpop.f32.mrb[0].mxu0
    %v2123 = vadd.f32 0.0, %v2122
    %v2124 = vpop.f32.mrb[0].mxu0
    %v2125 = vpop.f32.mrb[0].mxu0
    %v2126 = vadd.f32 0.0, %v2125
    %v2127 = vpop.f32.mrb[0].mxu0
    %2128 = vmatprep.mubr.bf16.mxu0 0
    %2129 = vmatmul.mubr.bf16.gmra.mrb[0].mxu0 %v2020
    %v2130 = vpop.f32.mrb[0].mxu0
    %v2131 = vadd.f32 0.0, %v2130
    %v2132 = vpop.f32.mrb[0].mxu0
    %v2133 = vpop.f32.mrb[0].mxu0
    %v2134 = vadd.f32 0.0, %v2133
    %v2135 = vpop.f32.mrb[0].mxu0
    %2136 = vmatprep.mubr.bf16.mxu0 0
    %2137 = vmatmul.mubr.bf16.gmra.mrb[0].mxu0 %v2023
    %v2138 = vpop.f32.mrb[0].mxu0
    %v2139 = vadd.f32 0.0, %v2138
    %v2140 = vpop.f32.mrb[0].mxu0
    %v2141 = vpop.f32.mrb[0].mxu0
    %v2142 = vadd.f32 0.0, %v2141
    %v2143 = vpop.f32.mrb[0].mxu0
    %2144 = vmatprep.mubr.bf16.mxu0 0
    %2145 = vmatmul.mubr.bf16.gmra.mrb[0].mxu0 %v2026
    %v2146 = vpop.f32.mrb[0].mxu0
    %v2147 = vadd.f32 0.0, %v2146
    %v2148 = vpop.f32.mrb[0].mxu0
    %v2149 = vpop.f32.mrb[0].mxu0
    %v2150 = vadd.f32 0.0, %v2149
    %v2151 = vpop.f32.mrb[0].mxu0
    %2152 = vmatprep.mubr.bf16.mxu0 0
    %2153 = vmatmul.mubr.bf16.gmra.mrb[0].mxu0 %v2029
    %v2154 = vpop.f32.mrb[0].mxu0
    %v2155 = vadd.f32 0.0, %v2154
    %v2156 = vpop.f32.mrb[0].mxu0
    %v2157 = vpop.f32.mrb[0].mxu0
    %v2158 = vadd.f32 0.0, %v2157
    %v2159 = vpop.f32.mrb[0].mxu0
    %2160 = vmatprep.mubr.bf16.mxu0 0
    %2161 = vmatmul.mubr.bf16.gmra.mrb[0].mxu0 %v2032
    %v2162 = vpop.f32.mrb[0].mxu0
    %v2163 = vadd.f32 0.0, %v2162
    %v2164 = vpop.f32.mrb[0].mxu0
    %v2165 = vpop.f32.mrb[0].mxu0
    %v2166 = vadd.f32 0.0, %v2165
    %v2167 = vpop.f32.mrb[0].mxu0
    %2168 = vmatprep.mubr.bf16.mxu0 0
    %2169 = vmatmul.mubr.bf16.gmra.mrb[0].mxu0 %v2035
    %v2170 = vpop.f32.mrb[0].mxu0
    %v2171 = vadd.f32 0.0, %v2170
    %v2172 = vpop.f32.mrb[0].mxu0
    %v2173 = vpop.f32.mrb[0].mxu0
    %v2174 = vadd.f32 0.0, %v2173
    %v2175 = vpop.f32.mrb[0].mxu0
    %2176 = vmatprep.mubr.bf16.mxu0 0
    %2177 = vmatmul.mubr.bf16.gmra.mrb[0].mxu0 %v2038
    %v2178 = vpop.f32.mrb[0].mxu0
    %v2179 = vadd.f32 0.0, %v2178
    %v2180 = vpop.f32.mrb[0].mxu0
    %v2181 = vpop.f32.mrb[0].mxu0
    %v2182 = vadd.f32 0.0, %v2181
    %v2183 = vpop.f32.mrb[0].mxu0
    %2184 = vmatprep.mubr.bf16.mxu0 0
    %2185 = vmatmul.mubr.bf16.gmra.mrb[0].mxu0 %v2041
    %v2186 = vpop.f32.mrb[0].mxu0
    %v2187 = vadd.f32 0.0, %v2186
    %v2188 = vpop.f32.mrb[0].mxu0
    %v2189 = vpop.f32.mrb[0].mxu0
    %v2190 = vadd.f32 0.0, %v2189
    %v2191 = vpop.f32.mrb[0].mxu0
    %2192 = vmatprep.mubr.bf16.mxu0 0
    %2193 = vmatmul.mubr.bf16.gmra.mrb[0].mxu0 %v2044
    %v2194 = vpop.f32.mrb[0].mxu0
    %v2195 = vadd.f32 0.0, %v2194
    %v2196 = vpop.f32.mrb[0].mxu0
    %v2197 = vpop.f32.mrb[0].mxu0
    %v2198 = vadd.f32 0.0, %v2197
    %v2199 = vpop.f32.mrb[0].mxu0
    %2200 = vmatprep.mubr.bf16.mxu0 0
    %2201 = vmatmul.mubr.bf16.gmra.mrb[0].mxu0 %v2047
    %v2202 = vpop.f32.mrb[0].mxu0
    %v2203 = vadd.f32 0.0, %v2202
    %v2204 = vpop.f32.mrb[0].mxu0
    %v2205 = vpop.f32.mrb[0].mxu0
    %v2206 = vadd.f32 0.0, %v2205
    %v2207 = vpop.f32.mrb[0].mxu0
    %2208 = vmatprep.mubr.bf16.mxu0 0
    %2209 = vmatmul.mubr.bf16.gmra.mrb[0].mxu0 %v2050
    %v2210 = vpop.f32.mrb[0].mxu0
    %v2211 = vadd.f32 0.0, %v2210
    %v2212 = vpop.f32.mrb[0].mxu0
    %v2213 = vpop.f32.mrb[0].mxu0
    %v2214 = vadd.f32 0.0, %v2213
    %v2215 = vpop.f32.mrb[0].mxu0
    %2216 = vmatprep.mubr.bf16.mxu0 0
    %2217 = vmatmul.mubr.bf16.gmra.mrb[0].mxu0 %v2053
    %v2218 = vpop.f32.mrb[0].mxu0
    %v2219 = vadd.f32 0.0, %v2218
    %v2220 = vpop.f32.mrb[0].mxu0
    %v2221 = vpop.f32.mrb[0].mxu0
    %v2222 = vadd.f32 0.0, %v2221
    %v2223 = vpop.f32.mrb[0].mxu0
    %2224 = vmatprep.mubr.bf16.mxu0 0
    %2225 = vmatmul.mubr.bf16.gmra.mrb[0].mxu0 %v2056
    %v2226 = vpop.f32.mrb[0].mxu0
    %v2227 = vadd.f32 0.0, %v2226
    %v2228 = vpop.f32.mrb[0].mxu0
    %v2229 = vpop.f32.mrb[0].mxu0
    %v2230 = vadd.f32 0.0, %v2229
    %v2231 = vpop.f32.mrb[0].mxu0
    %2232 = vmatprep.mubr.bf16.mxu0 0
    %2233 = vmatmul.mubr.bf16.gmra.mrb[0].mxu0 %v2059
    %v2234 = vpop.f32.mrb[0].mxu0
    %v2235 = vadd.f32 0.0, %v2234
    %v2236 = vpop.f32.mrb[0].mxu0
    %v2237 = vpop.f32.mrb[0].mxu0
    %v2238 = vadd.f32 0.0, %v2237
    %v2239 = vpop.f32.mrb[0].mxu0
    %2240 = vdwg.mxu0
    %s2241 = scalar_lea.vmem %s2, 16
    %v2242 = vld [vmem:[%s2241] sm:$0x7]
    %s2243 = scalar_lea.vmem %s2, 20
    %v2244 = vld [vmem:[%s2243] sm:$0x7]
    %vm2245 = vcmask 1044480
    %v2246 = vrot.slane %v1930, 3
    %v2247 = vrot.slane %v1931, 3
    %v2248 = vsel %vm2245, %v2246, %v2247
    %v2249 = vrot.slane %v1932, 3
    %v2250 = vsel %vm2245, %v2247, %v2249
    %v2251 = vrot.slane %v1933, 3
    %v2252 = vsel %vm2245, %v2249, %v2251
    %v2253 = vrot.slane %v1934, 3
    %v2254 = vsel %vm2245, %v2251, %v2253
    %v2255 = vrot.slane %v1935, 3
    %v2256 = vsel %vm2245, %v2253, %v2255
    %v2257 = vrot.slane %v1936, 3
    %v2258 = vsel %vm2245, %v2255, %v2257
    %v2259 = vrot.slane %v1937, 3
    %v2260 = vsel %vm2245, %v2257, %v2259
    %v2261 = vrot.slane %v1938, 3
    %v2262 = vsel %vm2245, %v2259, %v2261
    %v2263 = vrot.slane %v1939, 3
    %v2264 = vsel %vm2245, %v2261, %v2263
    %v2265 = vrot.slane %v1940, 3
    %v2266 = vsel %vm2245, %v2263, %v2265
    %v2267 = vrot.slane %v1941, 3
    %v2268 = vsel %vm2245, %v2265, %v2267
    %v2269 = vrot.slane %v1942, 3
    %v2270 = vsel %vm2245, %v2267, %v2269
    %v2271 = vrot.slane %v1943, 3
    %v2272 = vsel %vm2245, %v2269, %v2271
    %v2273 = vrot.slane %v1944, 3
    %v2274 = vsel %vm2245, %v2271, %v2273
    %v2275 = vrot.slane %v1945, 3
    %v2276 = vsel %vm2245, %v2273, %v2275
    %v2277 = vrot.slane %v1946, 3
    %v2278 = vsel %vm2245, %v2275, %v2277
    %v2279 = vrot.slane %v1947, 3
    %v2280 = vsel %vm2245, %v2277, %v2279
    %v2281 = vrot.slane %v1540, 3
    %v2282 = vsel %vm2245, %v2279, %v2281
    %v2284 = vsel %vm1692, %v2248, 0
    %v2287 = vsel %vm1692, %v2250, 0
    %v2290 = vsel %vm1692, %v2252, 0
    %v2293 = vsel %vm1692, %v2254, 0
    %v2296 = vsel %vm1692, %v2256, 0
    %v2299 = vsel %vm1692, %v2258, 0
    %v2302 = vsel %vm1692, %v2260, 0
    %v2305 = vsel %vm1692, %v2262, 0
    %v2308 = vsel %vm1692, %v2264, 0
    %v2311 = vsel %vm1692, %v2266, 0
    %v2314 = vsel %vm1692, %v2268, 0
    %v2317 = vsel %vm1692, %v2270, 0
    %v2320 = vsel %vm1692, %v2272, 0
    %v2323 = vsel %vm1692, %v2274, 0
    %v2326 = vsel %vm1692, %v2276, 0
    %v2329 = vsel %vm1692, %v2278, 0
    %v2332 = vsel %vm1692, %v2280, 0
    %v2335 = vsel %vm1692, %v2282, 0
    %v2338 = vsel %vm1747, %v2244, 0
    %2340 = vmatprep.subr.bf16.mxu0 0
    %2341 = vmatpush1.bf16.msra.mxu0 %v2338
    %2342 = vmatprep.subr.bf16.mxu0 0
    %2343 = vmatpush1.bf16.msra.mxu0 0
    %2344 = vmatprep.subr.bf16.mxu0 0
    %2345 = vmatpush1.bf16.msra.mxu0 0
    %2346 = vmatprep.subr.bf16.mxu0 0
    %2347 = vmatpush1.bf16.msra.mxu0 0
    %2348 = vmatprep.subr.bf16.mxu0 0
    %2349 = vmatpush1.bf16.msra.mxu0 0
    %2350 = vmatprep.subr.bf16.mxu0 0
    %2351 = vmatpush1.bf16.msra.mxu0 0
    %2352 = vmatprep.subr.bf16.mxu0 0
    %2353 = vmatpush1.bf16.msra.mxu0 0
    %2354 = vmatprep.subr.bf16.mxu0 0
    %2355 = vmatpush1.bf16.msra.mxu0 0
    %2356 = vmatprep.subr.bf16.mxu0 0
    %2357 = vmatpush1.bf16.msra.mxu0 0
    %2358 = vmatprep.subr.bf16.mxu0 0
    %2359 = vmatpush1.bf16.msra.mxu0 0
    %2360 = vmatprep.subr.bf16.mxu0 0
    %2361 = vmatpush1.bf16.msra.mxu0 0
    %2362 = vmatprep.subr.bf16.mxu0 0
    %2363 = vmatpush1.bf16.msra.mxu0 0
    %2364 = vmatprep.subr.bf16.mxu0 0
    %2365 = vmatpush1.bf16.msra.mxu0 0
    %2366 = vmatprep.subr.bf16.mxu0 0
    %2367 = vmatpush1.bf16.msra.mxu0 0
    %2368 = vmatprep.subr.bf16.mxu0 0
    %2369 = vmatpush1.bf16.msra.mxu0 0
    %2370 = vmatprep.subr.bf16.mxu0 0
    %2371 = vmatpush1.bf16.msra.mxu0 0
    %2372 = vmatprep.mubr.bf16.mxu0 0
    %2373 = vmatmul.mubr.bf16.gmra.mrb[0].mxu0 %v2284
    %v2374 = vpop.f32.mrb[0].mxu0
    %v2375 = vadd.f32 0.0, %v2374
    %v2376 = vpop.f32.mrb[0].mxu0
    %v2377 = vpop.f32.mrb[0].mxu0
    %v2378 = vadd.f32 0.0, %v2377
    %v2379 = vpop.f32.mrb[0].mxu0
    %2380 = vmatprep.mubr.bf16.mxu0 0
    %2381 = vmatmul.mubr.bf16.gmra.mrb[0].mxu0 %v2287
    %v2382 = vpop.f32.mrb[0].mxu0
    %v2383 = vadd.f32 0.0, %v2382
    %v2384 = vpop.f32.mrb[0].mxu0
    %v2385 = vpop.f32.mrb[0].mxu0
    %v2386 = vadd.f32 0.0, %v2385
    %v2387 = vpop.f32.mrb[0].mxu0
    %2388 = vmatprep.mubr.bf16.mxu0 0
    %2389 = vmatmul.mubr.bf16.gmra.mrb[0].mxu0 %v2290
    %v2390 = vpop.f32.mrb[0].mxu0
    %v2391 = vadd.f32 0.0, %v2390
    %v2392 = vpop.f32.mrb[0].mxu0
    %v2393 = vpop.f32.mrb[0].mxu0
    %v2394 = vadd.f32 0.0, %v2393
    %v2395 = vpop.f32.mrb[0].mxu0
    %2396 = vmatprep.mubr.bf16.mxu0 0
    %2397 = vmatmul.mubr.bf16.gmra.mrb[0].mxu0 %v2293
    %v2398 = vpop.f32.mrb[0].mxu0
    %v2399 = vadd.f32 0.0, %v2398
    %v2400 = vpop.f32.mrb[0].mxu0
    %v2401 = vpop.f32.mrb[0].mxu0
    %v2402 = vadd.f32 0.0, %v2401
    %v2403 = vpop.f32.mrb[0].mxu0
    %2404 = vmatprep.mubr.bf16.mxu0 0
    %2405 = vmatmul.mubr.bf16.gmra.mrb[0].mxu0 %v2296
    %v2406 = vpop.f32.mrb[0].mxu0
    %v2407 = vadd.f32 0.0, %v2406
    %v2408 = vpop.f32.mrb[0].mxu0
    %v2409 = vpop.f32.mrb[0].mxu0
    %v2410 = vadd.f32 0.0, %v2409
    %v2411 = vpop.f32.mrb[0].mxu0
    %2412 = vmatprep.mubr.bf16.mxu0 0
    %2413 = vmatmul.mubr.bf16.gmra.mrb[0].mxu0 %v2299
    %v2414 = vpop.f32.mrb[0].mxu0
    %v2415 = vadd.f32 0.0, %v2414
    %v2416 = vpop.f32.mrb[0].mxu0
    %v2417 = vpop.f32.mrb[0].mxu0
    %v2418 = vadd.f32 0.0, %v2417
    %v2419 = vpop.f32.mrb[0].mxu0
    %2420 = vmatprep.mubr.bf16.mxu0 0
    %2421 = vmatmul.mubr.bf16.gmra.mrb[0].mxu0 %v2302
    %v2422 = vpop.f32.mrb[0].mxu0
    %v2423 = vadd.f32 0.0, %v2422
    %v2424 = vpop.f32.mrb[0].mxu0
    %v2425 = vpop.f32.mrb[0].mxu0
    %v2426 = vadd.f32 0.0, %v2425
    %v2427 = vpop.f32.mrb[0].mxu0
    %2428 = vmatprep.mubr.bf16.mxu0 0
    %2429 = vmatmul.mubr.bf16.gmra.mrb[0].mxu0 %v2305
    %v2430 = vpop.f32.mrb[0].mxu0
    %v2431 = vadd.f32 0.0, %v2430
    %v2432 = vpop.f32.mrb[0].mxu0
    %v2433 = vpop.f32.mrb[0].mxu0
    %v2434 = vadd.f32 0.0, %v2433
    %v2435 = vpop.f32.mrb[0].mxu0
    %2436 = vmatprep.mubr.bf16.mxu0 0
    %2437 = vmatmul.mubr.bf16.gmra.mrb[0].mxu0 %v2308
    %v2438 = vpop.f32.mrb[0].mxu0
    %v2439 = vadd.f32 0.0, %v2438
    %v2440 = vpop.f32.mrb[0].mxu0
    %v2441 = vpop.f32.mrb[0].mxu0
    %v2442 = vadd.f32 0.0, %v2441
    %v2443 = vpop.f32.mrb[0].mxu0
    %2444 = vmatprep.mubr.bf16.mxu0 0
    %2445 = vmatmul.mubr.bf16.gmra.mrb[0].mxu0 %v2311
    %v2446 = vpop.f32.mrb[0].mxu0
    %v2447 = vadd.f32 0.0, %v2446
    %v2448 = vpop.f32.mrb[0].mxu0
    %v2449 = vpop.f32.mrb[0].mxu0
    %v2450 = vadd.f32 0.0, %v2449
    %v2451 = vpop.f32.mrb[0].mxu0
    %2452 = vmatprep.mubr.bf16.mxu0 0
    %2453 = vmatmul.mubr.bf16.gmra.mrb[0].mxu0 %v2314
    %v2454 = vpop.f32.mrb[0].mxu0
    %v2455 = vadd.f32 0.0, %v2454
    %v2456 = vpop.f32.mrb[0].mxu0
    %v2457 = vpop.f32.mrb[0].mxu0
    %v2458 = vadd.f32 0.0, %v2457
    %v2459 = vpop.f32.mrb[0].mxu0
    %2460 = vmatprep.mubr.bf16.mxu0 0
    %2461 = vmatmul.mubr.bf16.gmra.mrb[0].mxu0 %v2317
    %v2462 = vpop.f32.mrb[0].mxu0
    %v2463 = vadd.f32 0.0, %v2462
    %v2464 = vpop.f32.mrb[0].mxu0
    %v2465 = vpop.f32.mrb[0].mxu0
    %v2466 = vadd.f32 0.0, %v2465
    %v2467 = vpop.f32.mrb[0].mxu0
    %2468 = vmatprep.mubr.bf16.mxu0 0
    %2469 = vmatmul.mubr.bf16.gmra.mrb[0].mxu0 %v2320
    %v2470 = vpop.f32.mrb[0].mxu0
    %v2471 = vadd.f32 0.0, %v2470
    %v2472 = vpop.f32.mrb[0].mxu0
    %v2473 = vpop.f32.mrb[0].mxu0
    %v2474 = vadd.f32 0.0, %v2473
    %v2475 = vpop.f32.mrb[0].mxu0
    %2476 = vmatprep.mubr.bf16.mxu0 0
    %2477 = vmatmul.mubr.bf16.gmra.mrb[0].mxu0 %v2323
    %v2478 = vpop.f32.mrb[0].mxu0
    %v2479 = vadd.f32 0.0, %v2478
    %v2480 = vpop.f32.mrb[0].mxu0
    %v2481 = vpop.f32.mrb[0].mxu0
    %v2482 = vadd.f32 0.0, %v2481
    %v2483 = vpop.f32.mrb[0].mxu0
    %2484 = vmatprep.mubr.bf16.mxu0 0
    %2485 = vmatmul.mubr.bf16.gmra.mrb[0].mxu0 %v2326
    %v2486 = vpop.f32.mrb[0].mxu0
    %v2487 = vadd.f32 0.0, %v2486
    %v2488 = vpop.f32.mrb[0].mxu0
    %v2489 = vpop.f32.mrb[0].mxu0
    %v2490 = vadd.f32 0.0, %v2489
    %v2491 = vpop.f32.mrb[0].mxu0
    %2492 = vmatprep.mubr.bf16.mxu0 0
    %2493 = vmatmul.mubr.bf16.gmra.mrb[0].mxu0 %v2329
    %v2494 = vpop.f32.mrb[0].mxu0
    %v2495 = vadd.f32 0.0, %v2494
    %v2496 = vpop.f32.mrb[0].mxu0
    %v2497 = vpop.f32.mrb[0].mxu0
    %v2498 = vadd.f32 0.0, %v2497
    %v2499 = vpop.f32.mrb[0].mxu0
    %2500 = vmatprep.mubr.bf16.mxu0 0
    %2501 = vmatmul.mubr.bf16.gmra.mrb[0].mxu0 %v2332
    %v2502 = vpop.f32.mrb[0].mxu0
    %v2503 = vadd.f32 0.0, %v2502
    %v2504 = vpop.f32.mrb[0].mxu0
    %v2505 = vpop.f32.mrb[0].mxu0
    %v2506 = vadd.f32 0.0, %v2505
    %v2507 = vpop.f32.mrb[0].mxu0
    %2508 = vmatprep.mubr.bf16.mxu0 0
    %2509 = vmatmul.mubr.bf16.gmra.mrb[0].mxu0 %v2335
    %v2510 = vpop.f32.mrb[0].mxu0
    %v2511 = vadd.f32 0.0, %v2510
    %v2512 = vpop.f32.mrb[0].mxu0
    %v2513 = vpop.f32.mrb[0].mxu0
    %v2514 = vadd.f32 0.0, %v2513
    %v2515 = vpop.f32.mrb[0].mxu0
    %2516 = vdwg.mxu0
    %s2517 = scalar_lea.vmem %s2, 24
    %v2518 = vld [vmem:[%s2517] sm:$0x7]
    %s2519 = scalar_lea.vmem %s2, 28
    %v2520 = vld [vmem:[%s2519] sm:$0x7]
    %v2522 = vshrl.u32 %v1931, 16
    %v2524 = vshll.u32 %v1931, 16
    %v2526 = vrot.slane %v2524, 1
    %v2527 = vor.u32 %v2522, %v2526
    %v2529 = vshll.u32 %v1932, 16
    %v2531 = vrot.slane %v2529, 1
    %v2532 = vsel %vm1543, %v2527, %v2531
    %v2533 = vshrl.u32 %v1932, 16
    %v2535 = vor.u32 %v2533, %v2531
    %v2537 = vshll.u32 %v1933, 16
    %v2539 = vrot.slane %v2537, 1
    %v2540 = vsel %vm1543, %v2535, %v2539
    %v2541 = vshrl.u32 %v1933, 16
    %v2543 = vor.u32 %v2541, %v2539
    %v2545 = vshll.u32 %v1934, 16
    %v2547 = vrot.slane %v2545, 1
    %v2548 = vsel %vm1543, %v2543, %v2547
    %v2549 = vshrl.u32 %v1934, 16
    %v2551 = vor.u32 %v2549, %v2547
    %v2553 = vshll.u32 %v1935, 16
    %v2555 = vrot.slane %v2553, 1
    %v2556 = vsel %vm1543, %v2551, %v2555
    %v2557 = vshrl.u32 %v1935, 16
    %v2559 = vor.u32 %v2557, %v2555
    %v2561 = vshll.u32 %v1936, 16
    %v2563 = vrot.slane %v2561, 1
    %v2564 = vsel %vm1543, %v2559, %v2563
    %v2565 = vshrl.u32 %v1936, 16
    %v2567 = vor.u32 %v2565, %v2563
    %v2569 = vshll.u32 %v1937, 16
    %v2571 = vrot.slane %v2569, 1
    %v2572 = vsel %vm1543, %v2567, %v2571
    %v2573 = vshrl.u32 %v1937, 16
    %v2575 = vor.u32 %v2573, %v2571
    %v2577 = vshll.u32 %v1938, 16
    %v2579 = vrot.slane %v2577, 1
    %v2580 = vsel %vm1543, %v2575, %v2579
    %v2581 = vshrl.u32 %v1938, 16
    %v2583 = vor.u32 %v2581, %v2579
    %v2585 = vshll.u32 %v1939, 16
    %v2587 = vrot.slane %v2585, 1
    %v2588 = vsel %vm1543, %v2583, %v2587
    %v2589 = vshrl.u32 %v1939, 16
    %v2591 = vor.u32 %v2589, %v2587
    %v2593 = vshll.u32 %v1940, 16
    %v2595 = vrot.slane %v2593, 1
    %v2596 = vsel %vm1543, %v2591, %v2595
    %v2597 = vshrl.u32 %v1940, 16
    %v2599 = vor.u32 %v2597, %v2595
    %v2601 = vshll.u32 %v1941, 16
    %v2603 = vrot.slane %v2601, 1
    %v2604 = vsel %vm1543, %v2599, %v2603
    %v2605 = vshrl.u32 %v1941, 16
    %v2607 = vor.u32 %v2605, %v2603
    %v2609 = vshll.u32 %v1942, 16
    %v2611 = vrot.slane %v2609, 1
    %v2612 = vsel %vm1543, %v2607, %v2611
    %v2613 = vshrl.u32 %v1942, 16
    %v2615 = vor.u32 %v2613, %v2611
    %v2617 = vshll.u32 %v1943, 16
    %v2619 = vrot.slane %v2617, 1
    %v2620 = vsel %vm1543, %v2615, %v2619
    %v2621 = vshrl.u32 %v1943, 16
    %v2623 = vor.u32 %v2621, %v2619
    %v2625 = vshll.u32 %v1944, 16
    %v2627 = vrot.slane %v2625, 1
    %v2628 = vsel %vm1543, %v2623, %v2627
    %v2629 = vshrl.u32 %v1944, 16
    %v2631 = vor.u32 %v2629, %v2627
    %v2633 = vshll.u32 %v1945, 16
    %v2635 = vrot.slane %v2633, 1
    %v2636 = vsel %vm1543, %v2631, %v2635
    %v2637 = vshrl.u32 %v1945, 16
    %v2639 = vor.u32 %v2637, %v2635
    %v2641 = vshll.u32 %v1946, 16
    %v2643 = vrot.slane %v2641, 1
    %v2644 = vsel %vm1543, %v2639, %v2643
    %v2645 = vshrl.u32 %v1946, 16
    %v2647 = vor.u32 %v2645, %v2643
    %v2649 = vshll.u32 %v1947, 16
    %v2651 = vrot.slane %v2649, 1
    %v2652 = vsel %vm1543, %v2647, %v2651
    %v2653 = vshrl.u32 %v1947, 16
    %v2655 = vor.u32 %v2653, %v2651
    %v2656 = vsel %vm1543, %v2655, %v1690
    %v2657 = vshrl.u32 %v1540, 16
    %v2659 = vor.u32 %v2657, %v1690
    %v2660 = vsel %vm1543, %v2659, %v1690
    %v2662 = vsel %vm1692, %v2532, 0
    %v2665 = vsel %vm1692, %v2540, 0
    %v2668 = vsel %vm1692, %v2548, 0
    %v2671 = vsel %vm1692, %v2556, 0
    %v2674 = vsel %vm1692, %v2564, 0
    %v2677 = vsel %vm1692, %v2572, 0
    %v2680 = vsel %vm1692, %v2580, 0
    %v2683 = vsel %vm1692, %v2588, 0
    %v2686 = vsel %vm1692, %v2596, 0
    %v2689 = vsel %vm1692, %v2604, 0
    %v2692 = vsel %vm1692, %v2612, 0
    %v2695 = vsel %vm1692, %v2620, 0
    %v2698 = vsel %vm1692, %v2628, 0
    %v2701 = vsel %vm1692, %v2636, 0
    %v2704 = vsel %vm1692, %v2644, 0
    %v2707 = vsel %vm1692, %v2652, 0
    %v2710 = vsel %vm1692, %v2656, 0
    %v2713 = vsel %vm1692, %v2660, 0
    %v2716 = vsel %vm1747, %v2520, 0
    %2718 = vmatprep.subr.bf16.mxu0 0
    %2719 = vmatpush1.bf16.msra.mxu0 %v2716
    %2720 = vmatprep.subr.bf16.mxu0 0
    %2721 = vmatpush1.bf16.msra.mxu0 0
    %2722 = vmatprep.subr.bf16.mxu0 0
    %2723 = vmatpush1.bf16.msra.mxu0 0
    %2724 = vmatprep.subr.bf16.mxu0 0
    %2725 = vmatpush1.bf16.msra.mxu0 0
    %2726 = vmatprep.subr.bf16.mxu0 0
    %2727 = vmatpush1.bf16.msra.mxu0 0
    %2728 = vmatprep.subr.bf16.mxu0 0
    %2729 = vmatpush1.bf16.msra.mxu0 0
    %2730 = vmatprep.subr.bf16.mxu0 0
    %2731 = vmatpush1.bf16.msra.mxu0 0
    %2732 = vmatprep.subr.bf16.mxu0 0
    %2733 = vmatpush1.bf16.msra.mxu0 0
    %2734 = vmatprep.subr.bf16.mxu0 0
    %2735 = vmatpush1.bf16.msra.mxu0 0
    %2736 = vmatprep.subr.bf16.mxu0 0
    %2737 = vmatpush1.bf16.msra.mxu0 0
    %2738 = vmatprep.subr.bf16.mxu0 0
    %2739 = vmatpush1.bf16.msra.mxu0 0
    %2740 = vmatprep.subr.bf16.mxu0 0
    %2741 = vmatpush1.bf16.msra.mxu0 0
    %2742 = vmatprep.subr.bf16.mxu0 0
    %2743 = vmatpush1.bf16.msra.mxu0 0
    %2744 = vmatprep.subr.bf16.mxu0 0
    %2745 = vmatpush1.bf16.msra.mxu0 0
    %2746 = vmatprep.subr.bf16.mxu0 0
    %2747 = vmatpush1.bf16.msra.mxu0 0
    %2748 = vmatprep.subr.bf16.mxu0 0
    %2749 = vmatpush1.bf16.msra.mxu0 0
    %2750 = vmatprep.mubr.bf16.mxu0 0
    %2751 = vmatmul.mubr.bf16.gmra.mrb[0].mxu0 %v2662
    %v2752 = vpop.f32.mrb[0].mxu0
    %v2753 = vadd.f32 0.0, %v2752
    %v2754 = vpop.f32.mrb[0].mxu0
    %v2755 = vpop.f32.mrb[0].mxu0
    %v2756 = vadd.f32 0.0, %v2755
    %v2757 = vpop.f32.mrb[0].mxu0
    %2758 = vmatprep.mubr.bf16.mxu0 0
    %2759 = vmatmul.mubr.bf16.gmra.mrb[0].mxu0 %v2665
    %v2760 = vpop.f32.mrb[0].mxu0
    %v2761 = vadd.f32 0.0, %v2760
    %v2762 = vpop.f32.mrb[0].mxu0
    %v2763 = vpop.f32.mrb[0].mxu0
    %v2764 = vadd.f32 0.0, %v2763
    %v2765 = vpop.f32.mrb[0].mxu0
    %2766 = vmatprep.mubr.bf16.mxu0 0
    %2767 = vmatmul.mubr.bf16.gmra.mrb[0].mxu0 %v2668
    %v2768 = vpop.f32.mrb[0].mxu0
    %v2769 = vadd.f32 0.0, %v2768
    %v2770 = vpop.f32.mrb[0].mxu0
    %v2771 = vpop.f32.mrb[0].mxu0
    %v2772 = vadd.f32 0.0, %v2771
    %v2773 = vpop.f32.mrb[0].mxu0
    %2774 = vmatprep.mubr.bf16.mxu0 0
    %2775 = vmatmul.mubr.bf16.gmra.mrb[0].mxu0 %v2671
    %v2776 = vpop.f32.mrb[0].mxu0
    %v2777 = vadd.f32 0.0, %v2776
    %v2778 = vpop.f32.mrb[0].mxu0
    %v2779 = vpop.f32.mrb[0].mxu0
    %v2780 = vadd.f32 0.0, %v2779
    %v2781 = vpop.f32.mrb[0].mxu0
    %2782 = vmatprep.mubr.bf16.mxu0 0
    %2783 = vmatmul.mubr.bf16.gmra.mrb[0].mxu0 %v2674
    %v2784 = vpop.f32.mrb[0].mxu0
    %v2785 = vadd.f32 0.0, %v2784
    %v2786 = vpop.f32.mrb[0].mxu0
    %v2787 = vpop.f32.mrb[0].mxu0
    %v2788 = vadd.f32 0.0, %v2787
    %v2789 = vpop.f32.mrb[0].mxu0
    %2790 = vmatprep.mubr.bf16.mxu0 0
    %2791 = vmatmul.mubr.bf16.gmra.mrb[0].mxu0 %v2677
    %v2792 = vpop.f32.mrb[0].mxu0
    %v2793 = vadd.f32 0.0, %v2792
    %v2794 = vpop.f32.mrb[0].mxu0
    %v2795 = vpop.f32.mrb[0].mxu0
    %v2796 = vadd.f32 0.0, %v2795
    %v2797 = vpop.f32.mrb[0].mxu0
    %2798 = vmatprep.mubr.bf16.mxu0 0
    %2799 = vmatmul.mubr.bf16.gmra.mrb[0].mxu0 %v2680
    %v2800 = vpop.f32.mrb[0].mxu0
    %v2801 = vadd.f32 0.0, %v2800
    %v2802 = vpop.f32.mrb[0].mxu0
    %v2803 = vpop.f32.mrb[0].mxu0
    %v2804 = vadd.f32 0.0, %v2803
    %v2805 = vpop.f32.mrb[0].mxu0
    %2806 = vmatprep.mubr.bf16.mxu0 0
    %2807 = vmatmul.mubr.bf16.gmra.mrb[0].mxu0 %v2683
    %v2808 = vpop.f32.mrb[0].mxu0
    %v2809 = vadd.f32 0.0, %v2808
    %v2810 = vpop.f32.mrb[0].mxu0
    %v2811 = vpop.f32.mrb[0].mxu0
    %v2812 = vadd.f32 0.0, %v2811
    %v2813 = vpop.f32.mrb[0].mxu0
    %2814 = vmatprep.mubr.bf16.mxu0 0
    %2815 = vmatmul.mubr.bf16.gmra.mrb[0].mxu0 %v2686
    %v2816 = vpop.f32.mrb[0].mxu0
    %v2817 = vadd.f32 0.0, %v2816
    %v2818 = vpop.f32.mrb[0].mxu0
    %v2819 = vpop.f32.mrb[0].mxu0
    %v2820 = vadd.f32 0.0, %v2819
    %v2821 = vpop.f32.mrb[0].mxu0
    %2822 = vmatprep.mubr.bf16.mxu0 0
    %2823 = vmatmul.mubr.bf16.gmra.mrb[0].mxu0 %v2689
    %v2824 = vpop.f32.mrb[0].mxu0
    %v2825 = vadd.f32 0.0, %v2824
    %v2826 = vpop.f32.mrb[0].mxu0
    %v2827 = vpop.f32.mrb[0].mxu0
    %v2828 = vadd.f32 0.0, %v2827
    %v2829 = vpop.f32.mrb[0].mxu0
    %2830 = vmatprep.mubr.bf16.mxu0 0
    %2831 = vmatmul.mubr.bf16.gmra.mrb[0].mxu0 %v2692
    %v2832 = vpop.f32.mrb[0].mxu0
    %v2833 = vadd.f32 0.0, %v2832
    %v2834 = vpop.f32.mrb[0].mxu0
    %v2835 = vpop.f32.mrb[0].mxu0
    %v2836 = vadd.f32 0.0, %v2835
    %v2837 = vpop.f32.mrb[0].mxu0
    %2838 = vmatprep.mubr.bf16.mxu0 0
    %2839 = vmatmul.mubr.bf16.gmra.mrb[0].mxu0 %v2695
    %v2840 = vpop.f32.mrb[0].mxu0
    %v2841 = vadd.f32 0.0, %v2840
    %v2842 = vpop.f32.mrb[0].mxu0
    %v2843 = vpop.f32.mrb[0].mxu0
    %v2844 = vadd.f32 0.0, %v2843
    %v2845 = vpop.f32.mrb[0].mxu0
    %2846 = vmatprep.mubr.bf16.mxu0 0
    %2847 = vmatmul.mubr.bf16.gmra.mrb[0].mxu0 %v2698
    %v2848 = vpop.f32.mrb[0].mxu0
    %v2849 = vadd.f32 0.0, %v2848
    %v2850 = vpop.f32.mrb[0].mxu0
    %v2851 = vpop.f32.mrb[0].mxu0
    %v2852 = vadd.f32 0.0, %v2851
    %v2853 = vpop.f32.mrb[0].mxu0
    %2854 = vmatprep.mubr.bf16.mxu0 0
    %2855 = vmatmul.mubr.bf16.gmra.mrb[0].mxu0 %v2701
    %v2856 = vpop.f32.mrb[0].mxu0
    %v2857 = vadd.f32 0.0, %v2856
    %v2858 = vpop.f32.mrb[0].mxu0
    %v2859 = vpop.f32.mrb[0].mxu0
    %v2860 = vadd.f32 0.0, %v2859
    %v2861 = vpop.f32.mrb[0].mxu0
    %2862 = vmatprep.mubr.bf16.mxu0 0
    %2863 = vmatmul.mubr.bf16.gmra.mrb[0].mxu0 %v2704
    %v2864 = vpop.f32.mrb[0].mxu0
    %v2865 = vadd.f32 0.0, %v2864
    %v2866 = vpop.f32.mrb[0].mxu0
    %v2867 = vpop.f32.mrb[0].mxu0
    %v2868 = vadd.f32 0.0, %v2867
    %v2869 = vpop.f32.mrb[0].mxu0
    %2870 = vmatprep.mubr.bf16.mxu0 0
    %2871 = vmatmul.mubr.bf16.gmra.mrb[0].mxu0 %v2707
    %v2872 = vpop.f32.mrb[0].mxu0
    %v2873 = vadd.f32 0.0, %v2872
    %v2874 = vpop.f32.mrb[0].mxu0
    %v2875 = vpop.f32.mrb[0].mxu0
    %v2876 = vadd.f32 0.0, %v2875
    %v2877 = vpop.f32.mrb[0].mxu0
    %2878 = vmatprep.mubr.bf16.mxu0 0
    %2879 = vmatmul.mubr.bf16.gmra.mrb[0].mxu0 %v2710
    %v2880 = vpop.f32.mrb[0].mxu0
    %v2881 = vadd.f32 0.0, %v2880
    %v2882 = vpop.f32.mrb[0].mxu0
    %v2883 = vpop.f32.mrb[0].mxu0
    %v2884 = vadd.f32 0.0, %v2883
    %v2885 = vpop.f32.mrb[0].mxu0
    %2886 = vmatprep.mubr.bf16.mxu0 0
    %2887 = vmatmul.mubr.bf16.gmra.mrb[0].mxu0 %v2713
    %v2888 = vpop.f32.mrb[0].mxu0
    %v2889 = vadd.f32 0.0, %v2888
    %v2890 = vpop.f32.mrb[0].mxu0
    %v2891 = vpop.f32.mrb[0].mxu0
    %v2892 = vadd.f32 0.0, %v2891
    %v2893 = vpop.f32.mrb[0].mxu0
    %2894 = vdwg.mxu0
    %s2895 = scalar_lea.vmem %s2, 32
    %v2896 = vld [vmem:[%s2895] sm:$0x7]
    %vm2897 = vcmask 1046528
    %v2898 = vrot.slane %v1931, 1
    %v2899 = vrot.slane %v1932, 1
    %v2900 = vsel %vm2897, %v2898, %v2899
    %v2901 = vrot.slane %v1933, 1
    %v2902 = vsel %vm2897, %v2899, %v2901
    %v2903 = vrot.slane %v1934, 1
    %v2904 = vsel %vm2897, %v2901, %v2903
    %v2905 = vrot.slane %v1935, 1
    %v2906 = vsel %vm2897, %v2903, %v2905
    %v2907 = vrot.slane %v1936, 1
    %v2908 = vsel %vm2897, %v2905, %v2907
    %v2909 = vrot.slane %v1937, 1
    %v2910 = vsel %vm2897, %v2907, %v2909
    %v2911 = vrot.slane %v1938, 1
    %v2912 = vsel %vm2897, %v2909, %v2911
    %v2913 = vrot.slane %v1939, 1
    %v2914 = vsel %vm2897, %v2911, %v2913
    %v2915 = vrot.slane %v1940, 1
    %v2916 = vsel %vm2897, %v2913, %v2915
    %v2917 = vrot.slane %v1941, 1
    %v2918 = vsel %vm2897, %v2915, %v2917
    %v2919 = vrot.slane %v1942, 1
    %v2920 = vsel %vm2897, %v2917, %v2919
    %v2921 = vrot.slane %v1943, 1
    %v2922 = vsel %vm2897, %v2919, %v2921
    %v2923 = vrot.slane %v1944, 1
    %v2924 = vsel %vm2897, %v2921, %v2923
    %v2925 = vrot.slane %v1945, 1
    %v2926 = vsel %vm2897, %v2923, %v2925
    %v2927 = vrot.slane %v1946, 1
    %v2928 = vsel %vm2897, %v2925, %v2927
    %v2929 = vrot.slane %v1947, 1
    %v2930 = vsel %vm2897, %v2927, %v2929
    %v2931 = vrot.slane %v1540, 1
    %v2932 = vsel %vm2897, %v2929, %v2931
    %v2933 = vsel %vm2897, %v2931, %v2931
    %v2935 = vsel %vm1692, %v2900, 0
    %v2938 = vsel %vm1692, %v2902, 0
    %v2941 = vsel %vm1692, %v2904, 0
    %v2944 = vsel %vm1692, %v2906, 0
    %v2947 = vsel %vm1692, %v2908, 0
    %v2950 = vsel %vm1692, %v2910, 0
    %v2953 = vsel %vm1692, %v2912, 0
    %v2956 = vsel %vm1692, %v2914, 0
    %v2959 = vsel %vm1692, %v2916, 0
    %v2962 = vsel %vm1692, %v2918, 0
    %v2965 = vsel %vm1692, %v2920, 0
    %v2968 = vsel %vm1692, %v2922, 0
    %v2971 = vsel %vm1692, %v2924, 0
    %v2974 = vsel %vm1692, %v2926, 0
    %v2977 = vsel %vm1692, %v2928, 0
    %v2980 = vsel %vm1692, %v2930, 0
    %v2983 = vsel %vm1692, %v2932, 0
    %v2986 = vsel %vm1692, %v2933, 0
    %v2989 = vsel %vm1747, %v2896, 0
    %2991 = vmatprep.subr.bf16.mxu0 0
    %2992 = vmatpush1.bf16.msra.mxu0 %v2989
    %2993 = vmatprep.subr.bf16.mxu0 0
    %2994 = vmatpush1.bf16.msra.mxu0 0
    %2995 = vmatprep.subr.bf16.mxu0 0
    %2996 = vmatpush1.bf16.msra.mxu0 0
    %2997 = vmatprep.subr.bf16.mxu0 0
    %2998 = vmatpush1.bf16.msra.mxu0 0
    %2999 = vmatprep.subr.bf16.mxu0 0
    %3000 = vmatpush1.bf16.msra.mxu0 0
    %3001 = vmatprep.subr.bf16.mxu0 0
    %3002 = vmatpush1.bf16.msra.mxu0 0
    %3003 = vmatprep.subr.bf16.mxu0 0
    %3004 = vmatpush1.bf16.msra.mxu0 0
    %3005 = vmatprep.subr.bf16.mxu0 0
    %3006 = vmatpush1.bf16.msra.mxu0 0
    %3007 = vmatprep.subr.bf16.mxu0 0
    %3008 = vmatpush1.bf16.msra.mxu0 0
    %3009 = vmatprep.subr.bf16.mxu0 0
    %3010 = vmatpush1.bf16.msra.mxu0 0
    %3011 = vmatprep.subr.bf16.mxu0 0
    %3012 = vmatpush1.bf16.msra.mxu0 0
    %3013 = vmatprep.subr.bf16.mxu0 0
    %3014 = vmatpush1.bf16.msra.mxu0 0
    %3015 = vmatprep.subr.bf16.mxu0 0
    %3016 = vmatpush1.bf16.msra.mxu0 0
    %3017 = vmatprep.subr.bf16.mxu0 0
    %3018 = vmatpush1.bf16.msra.mxu0 0
    %3019 = vmatprep.subr.bf16.mxu0 0
    %3020 = vmatpush1.bf16.msra.mxu0 0
    %3021 = vmatprep.subr.bf16.mxu0 0
    %3022 = vmatpush1.bf16.msra.mxu0 0
    %3023 = vmatprep.mubr.bf16.mxu0 0
    %3024 = vmatmul.mubr.bf16.gmra.mrb[0].mxu0 %v2935
    %v3025 = vpop.f32.mrb[0].mxu0
    %v3026 = vadd.f32 0.0, %v3025
    %v3027 = vpop.f32.mrb[0].mxu0
    %v3028 = vpop.f32.mrb[0].mxu0
    %v3029 = vadd.f32 0.0, %v3028
    %v3030 = vpop.f32.mrb[0].mxu0
    %3031 = vmatprep.mubr.bf16.mxu0 0
    %3032 = vmatmul.mubr.bf16.gmra.mrb[0].mxu0 %v2938
    %v3033 = vpop.f32.mrb[0].mxu0
    %v3034 = vadd.f32 0.0, %v3033
    %v3035 = vpop.f32.mrb[0].mxu0
    %v3036 = vpop.f32.mrb[0].mxu0
    %v3037 = vadd.f32 0.0, %v3036
    %v3038 = vpop.f32.mrb[0].mxu0
    %3039 = vmatprep.mubr.bf16.mxu0 0
    %3040 = vmatmul.mubr.bf16.gmra.mrb[0].mxu0 %v2941
    %v3041 = vpop.f32.mrb[0].mxu0
    %v3042 = vadd.f32 0.0, %v3041
    %v3043 = vpop.f32.mrb[0].mxu0
    %v3044 = vpop.f32.mrb[0].mxu0
    %v3045 = vadd.f32 0.0, %v3044
    %v3046 = vpop.f32.mrb[0].mxu0
    %3047 = vmatprep.mubr.bf16.mxu0 0
    %3048 = vmatmul.mubr.bf16.gmra.mrb[0].mxu0 %v2944
    %v3049 = vpop.f32.mrb[0].mxu0
    %v3050 = vadd.f32 0.0, %v3049
    %v3051 = vpop.f32.mrb[0].mxu0
    %v3052 = vpop.f32.mrb[0].mxu0
    %v3053 = vadd.f32 0.0, %v3052
    %v3054 = vpop.f32.mrb[0].mxu0
    %3055 = vmatprep.mubr.bf16.mxu0 0
    %3056 = vmatmul.mubr.bf16.gmra.mrb[0].mxu0 %v2947
    %v3057 = vpop.f32.mrb[0].mxu0
    %v3058 = vadd.f32 0.0, %v3057
    %v3059 = vpop.f32.mrb[0].mxu0
    %v3060 = vpop.f32.mrb[0].mxu0
    %v3061 = vadd.f32 0.0, %v3060
    %v3062 = vpop.f32.mrb[0].mxu0
    %3063 = vmatprep.mubr.bf16.mxu0 0
    %3064 = vmatmul.mubr.bf16.gmra.mrb[0].mxu0 %v2950
    %v3065 = vpop.f32.mrb[0].mxu0
    %v3066 = vadd.f32 0.0, %v3065
    %v3067 = vpop.f32.mrb[0].mxu0
    %v3068 = vpop.f32.mrb[0].mxu0
    %v3069 = vadd.f32 0.0, %v3068
    %v3070 = vpop.f32.mrb[0].mxu0
    %3071 = vmatprep.mubr.bf16.mxu0 0
    %3072 = vmatmul.mubr.bf16.gmra.mrb[0].mxu0 %v2953
    %v3073 = vpop.f32.mrb[0].mxu0
    %v3074 = vadd.f32 0.0, %v3073
    %v3075 = vpop.f32.mrb[0].mxu0
    %v3076 = vpop.f32.mrb[0].mxu0
    %v3077 = vadd.f32 0.0, %v3076
    %v3078 = vpop.f32.mrb[0].mxu0
    %3079 = vmatprep.mubr.bf16.mxu0 0
    %3080 = vmatmul.mubr.bf16.gmra.mrb[0].mxu0 %v2956
    %v3081 = vpop.f32.mrb[0].mxu0
    %v3082 = vadd.f32 0.0, %v3081
    %v3083 = vpop.f32.mrb[0].mxu0
    %v3084 = vpop.f32.mrb[0].mxu0
    %v3085 = vadd.f32 0.0, %v3084
    %v3086 = vpop.f32.mrb[0].mxu0
    %3087 = vmatprep.mubr.bf16.mxu0 0
    %3088 = vmatmul.mubr.bf16.gmra.mrb[0].mxu0 %v2959
    %v3089 = vpop.f32.mrb[0].mxu0
    %v3090 = vadd.f32 0.0, %v3089
    %v3091 = vpop.f32.mrb[0].mxu0
    %v3092 = vpop.f32.mrb[0].mxu0
    %v3093 = vadd.f32 0.0, %v3092
    %v3094 = vpop.f32.mrb[0].mxu0
    %3095 = vmatprep.mubr.bf16.mxu0 0
    %3096 = vmatmul.mubr.bf16.gmra.mrb[0].mxu0 %v2962
    %v3097 = vpop.f32.mrb[0].mxu0
    %v3098 = vadd.f32 0.0, %v3097
    %v3099 = vpop.f32.mrb[0].mxu0
    %v3100 = vpop.f32.mrb[0].mxu0
    %v3101 = vadd.f32 0.0, %v3100
    %v3102 = vpop.f32.mrb[0].mxu0
    %3103 = vmatprep.mubr.bf16.mxu0 0
    %3104 = vmatmul.mubr.bf16.gmra.mrb[0].mxu0 %v2965
    %v3105 = vpop.f32.mrb[0].mxu0
    %v3106 = vadd.f32 0.0, %v3105
    %v3107 = vpop.f32.mrb[0].mxu0
    %v3108 = vpop.f32.mrb[0].mxu0
    %v3109 = vadd.f32 0.0, %v3108
    %v3110 = vpop.f32.mrb[0].mxu0
    %3111 = vmatprep.mubr.bf16.mxu0 0
    %3112 = vmatmul.mubr.bf16.gmra.mrb[0].mxu0 %v2968
    %v3113 = vpop.f32.mrb[0].mxu0
    %v3114 = vadd.f32 0.0, %v3113
    %v3115 = vpop.f32.mrb[0].mxu0
    %v3116 = vpop.f32.mrb[0].mxu0
    %v3117 = vadd.f32 0.0, %v3116
    %v3118 = vpop.f32.mrb[0].mxu0
    %3119 = vmatprep.mubr.bf16.mxu0 0
    %3120 = vmatmul.mubr.bf16.gmra.mrb[0].mxu0 %v2971
    %v3121 = vpop.f32.mrb[0].mxu0
    %v3122 = vadd.f32 0.0, %v3121
    %v3123 = vpop.f32.mrb[0].mxu0
    %v3124 = vpop.f32.mrb[0].mxu0
    %v3125 = vadd.f32 0.0, %v3124
    %v3126 = vpop.f32.mrb[0].mxu0
    %3127 = vmatprep.mubr.bf16.mxu0 0
    %3128 = vmatmul.mubr.bf16.gmra.mrb[0].mxu0 %v2974
    %v3129 = vpop.f32.mrb[0].mxu0
    %v3130 = vadd.f32 0.0, %v3129
    %v3131 = vpop.f32.mrb[0].mxu0
    %v3132 = vpop.f32.mrb[0].mxu0
    %v3133 = vadd.f32 0.0, %v3132
    %v3134 = vpop.f32.mrb[0].mxu0
    %3135 = vmatprep.mubr.bf16.mxu0 0
    %3136 = vmatmul.mubr.bf16.gmra.mrb[0].mxu0 %v2977
    %v3137 = vpop.f32.mrb[0].mxu0
    %v3138 = vadd.f32 0.0, %v3137
    %v3139 = vpop.f32.mrb[0].mxu0
    %v3140 = vpop.f32.mrb[0].mxu0
    %v3141 = vadd.f32 0.0, %v3140
    %v3142 = vpop.f32.mrb[0].mxu0
    %3143 = vmatprep.mubr.bf16.mxu0 0
    %3144 = vmatmul.mubr.bf16.gmra.mrb[0].mxu0 %v2980
    %v3145 = vpop.f32.mrb[0].mxu0
    %v3146 = vadd.f32 0.0, %v3145
    %v3147 = vpop.f32.mrb[0].mxu0
    %v3148 = vpop.f32.mrb[0].mxu0
    %v3149 = vadd.f32 0.0, %v3148
    %v3150 = vpop.f32.mrb[0].mxu0
    %3151 = vmatprep.mubr.bf16.mxu0 0
    %3152 = vmatmul.mubr.bf16.gmra.mrb[0].mxu0 %v2983
    %v3153 = vpop.f32.mrb[0].mxu0
    %v3154 = vadd.f32 0.0, %v3153
    %v3155 = vpop.f32.mrb[0].mxu0
    %v3156 = vpop.f32.mrb[0].mxu0
    %v3157 = vadd.f32 0.0, %v3156
    %v3158 = vpop.f32.mrb[0].mxu0
    %3159 = vmatprep.mubr.bf16.mxu0 0
    %3160 = vmatmul.mubr.bf16.gmra.mrb[0].mxu0 %v2986
    %v3161 = vpop.f32.mrb[0].mxu0
    %v3162 = vadd.f32 0.0, %v3161
    %v3163 = vpop.f32.mrb[0].mxu0
    %v3164 = vpop.f32.mrb[0].mxu0
    %v3165 = vadd.f32 0.0, %v3164
    %v3166 = vpop.f32.mrb[0].mxu0
    %3167 = vdwg.mxu0
    %v3168 = vsel %vm1692, %v1521, 0
    %v3170 = vsel %vm1692, %v1522, 0
    %v3172 = vsel %vm1692, %v1523, 0
    %v3174 = vsel %vm1692, %v1524, 0
    %v3176 = vsel %vm1692, %v1525, 0
    %v3178 = vsel %vm1692, %v1526, 0
    %v3180 = vsel %vm1692, %v1527, 0
    %v3182 = vsel %vm1692, %v1528, 0
    %v3184 = vsel %vm1692, %v1529, 0
    %v3186 = vsel %vm1692, %v1530, 0
    %v3188 = vsel %vm1692, %v1531, 0
    %v3190 = vsel %vm1692, %v1532, 0
    %v3192 = vsel %vm1692, %v1533, 0
    %v3194 = vsel %vm1692, %v1534, 0
    %v3196 = vsel %vm1692, %v1535, 0
    %v3198 = vsel %vm1692, %v1536, 0
    %v3200 = vsel %vm1692, %v1537, 0
    %v3202 = vsel %vm1692, %v1538, 0
    %v3205 = vsel %vm1747, %v1539, 0
    %3207 = vmatprep.subr.bf16.mxu0 0
    %3208 = vmatpush1.bf16.msra.mxu0 %v3205
    %3209 = vmatprep.subr.bf16.mxu0 0
    %3210 = vmatpush1.bf16.msra.mxu0 0
    %3211 = vmatprep.subr.bf16.mxu0 0
    %3212 = vmatpush1.bf16.msra.mxu0 0
    %3213 = vmatprep.subr.bf16.mxu0 0
    %3214 = vmatpush1.bf16.msra.mxu0 0
    %3215 = vmatprep.subr.bf16.mxu0 0
    %3216 = vmatpush1.bf16.msra.mxu0 0
    %3217 = vmatprep.subr.bf16.mxu0 0
    %3218 = vmatpush1.bf16.msra.mxu0 0
    %3219 = vmatprep.subr.bf16.mxu0 0
    %3220 = vmatpush1.bf16.msra.mxu0 0
    %3221 = vmatprep.subr.bf16.mxu0 0
    %3222 = vmatpush1.bf16.msra.mxu0 0
    %3223 = vmatprep.subr.bf16.mxu0 0
    %3224 = vmatpush1.bf16.msra.mxu0 0
    %3225 = vmatprep.subr.bf16.mxu0 0
    %3226 = vmatpush1.bf16.msra.mxu0 0
    %3227 = vmatprep.subr.bf16.mxu0 0
    %3228 = vmatpush1.bf16.msra.mxu0 0
    %3229 = vmatprep.subr.bf16.mxu0 0
    %3230 = vmatpush1.bf16.msra.mxu0 0
    %3231 = vmatprep.subr.bf16.mxu0 0
    %3232 = vmatpush1.bf16.msra.mxu0 0
    %3233 = vmatprep.subr.bf16.mxu0 0
    %3234 = vmatpush1.bf16.msra.mxu0 0
    %3235 = vmatprep.subr.bf16.mxu0 0
    %3236 = vmatpush1.bf16.msra.mxu0 0
    %3237 = vmatprep.subr.bf16.mxu0 0
    %3238 = vmatpush1.bf16.msra.mxu0 0
    %3239 = vmatprep.mubr.bf16.mxu0 0
    %3240 = vmatmul.mubr.bf16.gmra.mrb[0].mxu0 %v3168
    %v3241 = vpop.f32.mrb[0].mxu0
    %v3242 = vadd.f32 %v1786, %v3241
    %v3243 = vpop.f32.mrb[0].mxu0
    %v3244 = vpop.f32.mrb[0].mxu0
    %v3245 = vadd.f32 %v1789, %v3244
    %v3246 = vpop.f32.mrb[0].mxu0
    %3247 = vmatprep.mubr.bf16.mxu0 0
    %3248 = vmatmul.mubr.bf16.gmra.mrb[0].mxu0 %v3170
    %v3249 = vpop.f32.mrb[0].mxu0
    %v3250 = vadd.f32 %v1794, %v3249
    %v3251 = vpop.f32.mrb[0].mxu0
    %v3252 = vpop.f32.mrb[0].mxu0
    %v3253 = vadd.f32 %v1797, %v3252
    %v3254 = vpop.f32.mrb[0].mxu0
    %3255 = vmatprep.mubr.bf16.mxu0 0
    %3256 = vmatmul.mubr.bf16.gmra.mrb[0].mxu0 %v3172
    %v3257 = vpop.f32.mrb[0].mxu0
    %v3258 = vadd.f32 %v1802, %v3257
    %v3259 = vpop.f32.mrb[0].mxu0
    %v3260 = vpop.f32.mrb[0].mxu0
    %v3261 = vadd.f32 %v1805, %v3260
    %v3262 = vpop.f32.mrb[0].mxu0
    %3263 = vmatprep.mubr.bf16.mxu0 0
    %3264 = vmatmul.mubr.bf16.gmra.mrb[0].mxu0 %v3174
    %v3265 = vpop.f32.mrb[0].mxu0
    %v3266 = vadd.f32 %v1810, %v3265
    %v3267 = vpop.f32.mrb[0].mxu0
    %v3268 = vpop.f32.mrb[0].mxu0
    %v3269 = vadd.f32 %v1813, %v3268
    %v3270 = vpop.f32.mrb[0].mxu0
    %3271 = vmatprep.mubr.bf16.mxu0 0
    %3272 = vmatmul.mubr.bf16.gmra.mrb[0].mxu0 %v3176
    %v3273 = vpop.f32.mrb[0].mxu0
    %v3274 = vadd.f32 %v1818, %v3273
    %v3275 = vpop.f32.mrb[0].mxu0
    %v3276 = vpop.f32.mrb[0].mxu0
    %v3277 = vadd.f32 %v1821, %v3276
    %v3278 = vpop.f32.mrb[0].mxu0
    %3279 = vmatprep.mubr.bf16.mxu0 0
    %3280 = vmatmul.mubr.bf16.gmra.mrb[0].mxu0 %v3178
    %v3281 = vpop.f32.mrb[0].mxu0
    %v3282 = vadd.f32 %v1826, %v3281
    %v3283 = vpop.f32.mrb[0].mxu0
    %v3284 = vpop.f32.mrb[0].mxu0
    %v3285 = vadd.f32 %v1829, %v3284
    %v3286 = vpop.f32.mrb[0].mxu0
    %3287 = vmatprep.mubr.bf16.mxu0 0
    %3288 = vmatmul.mubr.bf16.gmra.mrb[0].mxu0 %v3180
    %v3289 = vpop.f32.mrb[0].mxu0
    %v3290 = vadd.f32 %v1834, %v3289
    %v3291 = vpop.f32.mrb[0].mxu0
    %v3292 = vpop.f32.mrb[0].mxu0
    %v3293 = vadd.f32 %v1837, %v3292
    %v3294 = vpop.f32.mrb[0].mxu0
    %3295 = vmatprep.mubr.bf16.mxu0 0
    %3296 = vmatmul.mubr.bf16.gmra.mrb[0].mxu0 %v3182
    %v3297 = vpop.f32.mrb[0].mxu0
    %v3298 = vadd.f32 %v1842, %v3297
    %v3299 = vpop.f32.mrb[0].mxu0
    %v3300 = vpop.f32.mrb[0].mxu0
    %v3301 = vadd.f32 %v1845, %v3300
    %v3302 = vpop.f32.mrb[0].mxu0
    %3303 = vmatprep.mubr.bf16.mxu0 0
    %3304 = vmatmul.mubr.bf16.gmra.mrb[0].mxu0 %v3184
    %v3305 = vpop.f32.mrb[0].mxu0
    %v3306 = vadd.f32 %v1850, %v3305
    %v3307 = vpop.f32.mrb[0].mxu0
    %v3308 = vpop.f32.mrb[0].mxu0
    %v3309 = vadd.f32 %v1853, %v3308
    %v3310 = vpop.f32.mrb[0].mxu0
    %3311 = vmatprep.mubr.bf16.mxu0 0
    %3312 = vmatmul.mubr.bf16.gmra.mrb[0].mxu0 %v3186
    %v3313 = vpop.f32.mrb[0].mxu0
    %v3314 = vadd.f32 %v1858, %v3313
    %v3315 = vpop.f32.mrb[0].mxu0
    %v3316 = vpop.f32.mrb[0].mxu0
    %v3317 = vadd.f32 %v1861, %v3316
    %v3318 = vpop.f32.mrb[0].mxu0
    %3319 = vmatprep.mubr.bf16.mxu0 0
    %3320 = vmatmul.mubr.bf16.gmra.mrb[0].mxu0 %v3188
    %v3321 = vpop.f32.mrb[0].mxu0
    %v3322 = vadd.f32 %v1866, %v3321
    %v3323 = vpop.f32.mrb[0].mxu0
    %v3324 = vpop.f32.mrb[0].mxu0
    %v3325 = vadd.f32 %v1869, %v3324
    %v3326 = vpop.f32.mrb[0].mxu0
    %3327 = vmatprep.mubr.bf16.mxu0 0
    %3328 = vmatmul.mubr.bf16.gmra.mrb[0].mxu0 %v3190
    %v3329 = vpop.f32.mrb[0].mxu0
    %v3330 = vadd.f32 %v1874, %v3329
    %v3331 = vpop.f32.mrb[0].mxu0
    %v3332 = vpop.f32.mrb[0].mxu0
    %v3333 = vadd.f32 %v1877, %v3332
    %v3334 = vpop.f32.mrb[0].mxu0
    %3335 = vmatprep.mubr.bf16.mxu0 0
    %3336 = vmatmul.mubr.bf16.gmra.mrb[0].mxu0 %v3192
    %v3337 = vpop.f32.mrb[0].mxu0
    %v3338 = vadd.f32 %v1882, %v3337
    %v3339 = vpop.f32.mrb[0].mxu0
    %v3340 = vpop.f32.mrb[0].mxu0
    %v3341 = vadd.f32 %v1885, %v3340
    %v3342 = vpop.f32.mrb[0].mxu0
    %3343 = vmatprep.mubr.bf16.mxu0 0
    %3344 = vmatmul.mubr.bf16.gmra.mrb[0].mxu0 %v3194
    %v3345 = vpop.f32.mrb[0].mxu0
    %v3346 = vadd.f32 %v1890, %v3345
    %v3347 = vpop.f32.mrb[0].mxu0
    %v3348 = vpop.f32.mrb[0].mxu0
    %v3349 = vadd.f32 %v1893, %v3348
    %v3350 = vpop.f32.mrb[0].mxu0
    %3351 = vmatprep.mubr.bf16.mxu0 0
    %3352 = vmatmul.mubr.bf16.gmra.mrb[0].mxu0 %v3196
    %v3353 = vpop.f32.mrb[0].mxu0
    %v3354 = vadd.f32 %v1898, %v3353
    %v3355 = vpop.f32.mrb[0].mxu0
    %v3356 = vpop.f32.mrb[0].mxu0
    %v3357 = vadd.f32 %v1901, %v3356
    %v3358 = vpop.f32.mrb[0].mxu0
    %3359 = vmatprep.mubr.bf16.mxu0 0
    %3360 = vmatmul.mubr.bf16.gmra.mrb[0].mxu0 %v3198
    %v3361 = vpop.f32.mrb[0].mxu0
    %v3362 = vadd.f32 %v1906, %v3361
    %v3363 = vpop.f32.mrb[0].mxu0
    %v3364 = vpop.f32.mrb[0].mxu0
    %v3365 = vadd.f32 %v1909, %v3364
    %v3366 = vpop.f32.mrb[0].mxu0
    %3367 = vmatprep.mubr.bf16.mxu0 0
    %3368 = vmatmul.mubr.bf16.gmra.mrb[0].mxu0 %v3200
    %v3369 = vpop.f32.mrb[0].mxu0
    %v3370 = vadd.f32 %v1914, %v3369
    %v3371 = vpop.f32.mrb[0].mxu0
    %v3372 = vpop.f32.mrb[0].mxu0
    %v3373 = vadd.f32 %v1917, %v3372
    %v3374 = vpop.f32.mrb[0].mxu0
    %3375 = vmatprep.mubr.bf16.mxu0 0
    %3376 = vmatmul.mubr.bf16.gmra.mrb[0].mxu0 %v3202
    %v3377 = vpop.f32.mrb[0].mxu0
    %v3378 = vadd.f32 %v1922, %v3377
    %v3379 = vpop.f32.mrb[0].mxu0
    %v3380 = vpop.f32.mrb[0].mxu0
    %v3381 = vadd.f32 %v1925, %v3380
    %v3382 = vpop.f32.mrb[0].mxu0
    %3383 = vdwg.mxu0
    %v3402 = vrot.slane %v1521, 1
    %v3403 = vrot.slane %v1522, 1
    %v3404 = vsel %vm2897, %v3402, %v3403
    %v3405 = vrot.slane %v1523, 1
    %v3406 = vsel %vm2897, %v3403, %v3405
    %v3407 = vrot.slane %v1524, 1
    %v3408 = vsel %vm2897, %v3405, %v3407
    %v3409 = vrot.slane %v1525, 1
    %v3410 = vsel %vm2897, %v3407, %v3409
    %v3411 = vrot.slane %v1526, 1
    %v3412 = vsel %vm2897, %v3409, %v3411
    %v3413 = vrot.slane %v1527, 1
    %v3414 = vsel %vm2897, %v3411, %v3413
    %v3415 = vrot.slane %v1528, 1
    %v3416 = vsel %vm2897, %v3413, %v3415
    %v3417 = vrot.slane %v1529, 1
    %v3418 = vsel %vm2897, %v3415, %v3417
    %v3419 = vrot.slane %v1530, 1
    %v3420 = vsel %vm2897, %v3417, %v3419
    %v3421 = vrot.slane %v1531, 1
    %v3422 = vsel %vm2897, %v3419, %v3421
    %v3423 = vrot.slane %v1532, 1
    %v3424 = vsel %vm2897, %v3421, %v3423
    %v3425 = vrot.slane %v1533, 1
    %v3426 = vsel %vm2897, %v3423, %v3425
    %v3427 = vrot.slane %v1534, 1
    %v3428 = vsel %vm2897, %v3425, %v3427
    %v3429 = vrot.slane %v1535, 1
    %v3430 = vsel %vm2897, %v3427, %v3429
    %v3431 = vrot.slane %v1536, 1
    %v3432 = vsel %vm2897, %v3429, %v3431
    %v3433 = vrot.slane %v1537, 1
    %v3434 = vsel %vm2897, %v3431, %v3433
    %v3435 = vrot.slane %v1538, 1
    %v3436 = vsel %vm2897, %v3433, %v3435
    %v3437 = vsel %vm2897, %v3435, %v2931
    %v3439 = vsel %vm1692, %v3404, 0
    %v3442 = vsel %vm1692, %v3406, 0
    %v3445 = vsel %vm1692, %v3408, 0
    %v3448 = vsel %vm1692, %v3410, 0
    %v3451 = vsel %vm1692, %v3412, 0
    %v3454 = vsel %vm1692, %v3414, 0
    %v3457 = vsel %vm1692, %v3416, 0
    %v3460 = vsel %vm1692, %v3418, 0
    %v3463 = vsel %vm1692, %v3420, 0
    %v3466 = vsel %vm1692, %v3422, 0
    %v3469 = vsel %vm1692, %v3424, 0
    %v3472 = vsel %vm1692, %v3426, 0
    %v3475 = vsel %vm1692, %v3428, 0
    %v3478 = vsel %vm1692, %v3430, 0
    %v3481 = vsel %vm1692, %v3432, 0
    %v3484 = vsel %vm1692, %v3434, 0
    %v3487 = vsel %vm1692, %v3436, 0
    %v3490 = vsel %vm1692, %v3437, 0
    %v3493 = vsel %vm1747, %v1929, 0
    %3495 = vmatprep.subr.bf16.mxu0 0
    %3496 = vmatpush1.bf16.msra.mxu0 %v3493
    %3497 = vmatprep.subr.bf16.mxu0 0
    %3498 = vmatpush1.bf16.msra.mxu0 0
    %3499 = vmatprep.subr.bf16.mxu0 0
    %3500 = vmatpush1.bf16.msra.mxu0 0
    %3501 = vmatprep.subr.bf16.mxu0 0
    %3502 = vmatpush1.bf16.msra.mxu0 0
    %3503 = vmatprep.subr.bf16.mxu0 0
    %3504 = vmatpush1.bf16.msra.mxu0 0
    %3505 = vmatprep.subr.bf16.mxu0 0
    %3506 = vmatpush1.bf16.msra.mxu0 0
    %3507 = vmatprep.subr.bf16.mxu0 0
    %3508 = vmatpush1.bf16.msra.mxu0 0
    %3509 = vmatprep.subr.bf16.mxu0 0
    %3510 = vmatpush1.bf16.msra.mxu0 0
    %3511 = vmatprep.subr.bf16.mxu0 0
    %3512 = vmatpush1.bf16.msra.mxu0 0
    %3513 = vmatprep.subr.bf16.mxu0 0
    %3514 = vmatpush1.bf16.msra.mxu0 0
    %3515 = vmatprep.subr.bf16.mxu0 0
    %3516 = vmatpush1.bf16.msra.mxu0 0
    %3517 = vmatprep.subr.bf16.mxu0 0
    %3518 = vmatpush1.bf16.msra.mxu0 0
    %3519 = vmatprep.subr.bf16.mxu0 0
    %3520 = vmatpush1.bf16.msra.mxu0 0
    %3521 = vmatprep.subr.bf16.mxu0 0
    %3522 = vmatpush1.bf16.msra.mxu0 0
    %3523 = vmatprep.subr.bf16.mxu0 0
    %3524 = vmatpush1.bf16.msra.mxu0 0
    %3525 = vmatprep.subr.bf16.mxu0 0
    %3526 = vmatpush1.bf16.msra.mxu0 0
    %3527 = vmatprep.mubr.bf16.mxu0 0
    %3528 = vmatmul.mubr.bf16.gmra.mrb[0].mxu0 %v3439
    %v3529 = vpop.f32.mrb[0].mxu0
    %v3530 = vadd.f32 %v2099, %v3529
    %v3531 = vpop.f32.mrb[0].mxu0
    %v3532 = vpop.f32.mrb[0].mxu0
    %v3533 = vadd.f32 %v2102, %v3532
    %v3534 = vpop.f32.mrb[0].mxu0
    %3535 = vmatprep.mubr.bf16.mxu0 0
    %3536 = vmatmul.mubr.bf16.gmra.mrb[0].mxu0 %v3442
    %v3537 = vpop.f32.mrb[0].mxu0
    %v3538 = vadd.f32 %v2107, %v3537
    %v3539 = vpop.f32.mrb[0].mxu0
    %v3540 = vpop.f32.mrb[0].mxu0
    %v3541 = vadd.f32 %v2110, %v3540
    %v3542 = vpop.f32.mrb[0].mxu0
    %3543 = vmatprep.mubr.bf16.mxu0 0
    %3544 = vmatmul.mubr.bf16.gmra.mrb[0].mxu0 %v3445
    %v3545 = vpop.f32.mrb[0].mxu0
    %v3546 = vadd.f32 %v2115, %v3545
    %v3547 = vpop.f32.mrb[0].mxu0
    %v3548 = vpop.f32.mrb[0].mxu0
    %v3549 = vadd.f32 %v2118, %v3548
    %v3550 = vpop.f32.mrb[0].mxu0
    %3551 = vmatprep.mubr.bf16.mxu0 0
    %3552 = vmatmul.mubr.bf16.gmra.mrb[0].mxu0 %v3448
    %v3553 = vpop.f32.mrb[0].mxu0
    %v3554 = vadd.f32 %v2123, %v3553
    %v3555 = vpop.f32.mrb[0].mxu0
    %v3556 = vpop.f32.mrb[0].mxu0
    %v3557 = vadd.f32 %v2126, %v3556
    %v3558 = vpop.f32.mrb[0].mxu0
    %3559 = vmatprep.mubr.bf16.mxu0 0
    %3560 = vmatmul.mubr.bf16.gmra.mrb[0].mxu0 %v3451
    %v3561 = vpop.f32.mrb[0].mxu0
    %v3562 = vadd.f32 %v2131, %v3561
    %v3563 = vpop.f32.mrb[0].mxu0
    %v3564 = vpop.f32.mrb[0].mxu0
    %v3565 = vadd.f32 %v2134, %v3564
    %v3566 = vpop.f32.mrb[0].mxu0
    %3567 = vmatprep.mubr.bf16.mxu0 0
    %3568 = vmatmul.mubr.bf16.gmra.mrb[0].mxu0 %v3454
    %v3569 = vpop.f32.mrb[0].mxu0
    %v3570 = vadd.f32 %v2139, %v3569
    %v3571 = vpop.f32.mrb[0].mxu0
    %v3572 = vpop.f32.mrb[0].mxu0
    %v3573 = vadd.f32 %v2142, %v3572
    %v3574 = vpop.f32.mrb[0].mxu0
    %3575 = vmatprep.mubr.bf16.mxu0 0
    %3576 = vmatmul.mubr.bf16.gmra.mrb[0].mxu0 %v3457
    %v3577 = vpop.f32.mrb[0].mxu0
    %v3578 = vadd.f32 %v2147, %v3577
    %v3579 = vpop.f32.mrb[0].mxu0
    %v3580 = vpop.f32.mrb[0].mxu0
    %v3581 = vadd.f32 %v2150, %v3580
    %v3582 = vpop.f32.mrb[0].mxu0
    %3583 = vmatprep.mubr.bf16.mxu0 0
    %3584 = vmatmul.mubr.bf16.gmra.mrb[0].mxu0 %v3460
    %v3585 = vpop.f32.mrb[0].mxu0
    %v3586 = vadd.f32 %v2155, %v3585
    %v3587 = vpop.f32.mrb[0].mxu0
    %v3588 = vpop.f32.mrb[0].mxu0
    %v3589 = vadd.f32 %v2158, %v3588
    %v3590 = vpop.f32.mrb[0].mxu0
    %3591 = vmatprep.mubr.bf16.mxu0 0
    %3592 = vmatmul.mubr.bf16.gmra.mrb[0].mxu0 %v3463
    %v3593 = vpop.f32.mrb[0].mxu0
    %v3594 = vadd.f32 %v2163, %v3593
    %v3595 = vpop.f32.mrb[0].mxu0
    %v3596 = vpop.f32.mrb[0].mxu0
    %v3597 = vadd.f32 %v2166, %v3596
    %v3598 = vpop.f32.mrb[0].mxu0
    %3599 = vmatprep.mubr.bf16.mxu0 0
    %3600 = vmatmul.mubr.bf16.gmra.mrb[0].mxu0 %v3466
    %v3601 = vpop.f32.mrb[0].mxu0
    %v3602 = vadd.f32 %v2171, %v3601
    %v3603 = vpop.f32.mrb[0].mxu0
    %v3604 = vpop.f32.mrb[0].mxu0
    %v3605 = vadd.f32 %v2174, %v3604
    %v3606 = vpop.f32.mrb[0].mxu0
    %3607 = vmatprep.mubr.bf16.mxu0 0
    %3608 = vmatmul.mubr.bf16.gmra.mrb[0].mxu0 %v3469
    %v3609 = vpop.f32.mrb[0].mxu0
    %v3610 = vadd.f32 %v2179, %v3609
    %v3611 = vpop.f32.mrb[0].mxu0
    %v3612 = vpop.f32.mrb[0].mxu0
    %v3613 = vadd.f32 %v2182, %v3612
    %v3614 = vpop.f32.mrb[0].mxu0
    %3615 = vmatprep.mubr.bf16.mxu0 0
    %3616 = vmatmul.mubr.bf16.gmra.mrb[0].mxu0 %v3472
    %v3617 = vpop.f32.mrb[0].mxu0
    %v3618 = vadd.f32 %v2187, %v3617
    %v3619 = vpop.f32.mrb[0].mxu0
    %v3620 = vpop.f32.mrb[0].mxu0
    %v3621 = vadd.f32 %v2190, %v3620
    %v3622 = vpop.f32.mrb[0].mxu0
    %3623 = vmatprep.mubr.bf16.mxu0 0
    %3624 = vmatmul.mubr.bf16.gmra.mrb[0].mxu0 %v3475
    %v3625 = vpop.f32.mrb[0].mxu0
    %v3626 = vadd.f32 %v2195, %v3625
    %v3627 = vpop.f32.mrb[0].mxu0
    %v3628 = vpop.f32.mrb[0].mxu0
    %v3629 = vadd.f32 %v2198, %v3628
    %v3630 = vpop.f32.mrb[0].mxu0
    %3631 = vmatprep.mubr.bf16.mxu0 0
    %3632 = vmatmul.mubr.bf16.gmra.mrb[0].mxu0 %v3478
    %v3633 = vpop.f32.mrb[0].mxu0
    %v3634 = vadd.f32 %v2203, %v3633
    %v3635 = vpop.f32.mrb[0].mxu0
    %v3636 = vpop.f32.mrb[0].mxu0
    %v3637 = vadd.f32 %v2206, %v3636
    %v3638 = vpop.f32.mrb[0].mxu0
    %3639 = vmatprep.mubr.bf16.mxu0 0
    %3640 = vmatmul.mubr.bf16.gmra.mrb[0].mxu0 %v3481
    %v3641 = vpop.f32.mrb[0].mxu0
    %v3642 = vadd.f32 %v2211, %v3641
    %v3643 = vpop.f32.mrb[0].mxu0
    %v3644 = vpop.f32.mrb[0].mxu0
    %v3645 = vadd.f32 %v2214, %v3644
    %v3646 = vpop.f32.mrb[0].mxu0
    %3647 = vmatprep.mubr.bf16.mxu0 0
    %3648 = vmatmul.mubr.bf16.gmra.mrb[0].mxu0 %v3484
    %v3649 = vpop.f32.mrb[0].mxu0
    %v3650 = vadd.f32 %v2219, %v3649
    %v3651 = vpop.f32.mrb[0].mxu0
    %v3652 = vpop.f32.mrb[0].mxu0
    %v3653 = vadd.f32 %v2222, %v3652
    %v3654 = vpop.f32.mrb[0].mxu0
    %3655 = vmatprep.mubr.bf16.mxu0 0
    %3656 = vmatmul.mubr.bf16.gmra.mrb[0].mxu0 %v3487
    %v3657 = vpop.f32.mrb[0].mxu0
    %v3658 = vadd.f32 %v2227, %v3657
    %v3659 = vpop.f32.mrb[0].mxu0
    %v3660 = vpop.f32.mrb[0].mxu0
    %v3661 = vadd.f32 %v2230, %v3660
    %v3662 = vpop.f32.mrb[0].mxu0
    %3663 = vmatprep.mubr.bf16.mxu0 0
    %3664 = vmatmul.mubr.bf16.gmra.mrb[0].mxu0 %v3490
    %v3665 = vpop.f32.mrb[0].mxu0
    %v3666 = vadd.f32 %v2235, %v3665
    %v3667 = vpop.f32.mrb[0].mxu0
    %v3668 = vpop.f32.mrb[0].mxu0
    %v3669 = vadd.f32 %v2238, %v3668
    %v3670 = vpop.f32.mrb[0].mxu0
    %3671 = vdwg.mxu0
    %vm3672 = vsmask.f32 5376
    %v3674 = vshrl.u32 %v1930, 16
    %v3676 = vrot.slane %v3674, 2
    %v3677 = vshll.u32 %v1930, 16
    %v3679 = vrot.slane %v3677, 3
    %v3680 = vor.u32 %v3676, %v3679
    %v3681 = vrot.slane %v2522, 2
    %v3682 = vrot.slane %v2524, 3
    %v3683 = vor.u32 %v3681, %v3682
    %v3684 = vsel %vm3672, %v3680, %v3683
    %v3685 = vrot.slane %v2533, 2
    %v3686 = vrot.slane %v2529, 3
    %v3687 = vor.u32 %v3685, %v3686
    %v3688 = vsel %vm3672, %v3683, %v3687
    %v3689 = vrot.slane %v2541, 2
    %v3690 = vrot.slane %v2537, 3
    %v3691 = vor.u32 %v3689, %v3690
    %v3692 = vsel %vm3672, %v3687, %v3691
    %v3693 = vrot.slane %v2549, 2
    %v3694 = vrot.slane %v2545, 3
    %v3695 = vor.u32 %v3693, %v3694
    %v3696 = vsel %vm3672, %v3691, %v3695
    %v3697 = vrot.slane %v2557, 2
    %v3698 = vrot.slane %v2553, 3
    %v3699 = vor.u32 %v3697, %v3698
    %v3700 = vsel %vm3672, %v3695, %v3699
    %v3701 = vrot.slane %v2565, 2
    %v3702 = vrot.slane %v2561, 3
    %v3703 = vor.u32 %v3701, %v3702
    %v3704 = vsel %vm3672, %v3699, %v3703
    %v3705 = vrot.slane %v2573, 2
    %v3706 = vrot.slane %v2569, 3
    %v3707 = vor.u32 %v3705, %v3706
    %v3708 = vsel %vm3672, %v3703, %v3707
    %v3709 = vrot.slane %v2581, 2
    %v3710 = vrot.slane %v2577, 3
    %v3711 = vor.u32 %v3709, %v3710
    %v3712 = vsel %vm3672, %v3707, %v3711
    %v3713 = vrot.slane %v2589, 2
    %v3714 = vrot.slane %v2585, 3
    %v3715 = vor.u32 %v3713, %v3714
    %v3716 = vsel %vm3672, %v3711, %v3715
    %v3717 = vrot.slane %v2597, 2
    %v3718 = vrot.slane %v2593, 3
    %v3719 = vor.u32 %v3717, %v3718
    %v3720 = vsel %vm3672, %v3715, %v3719
    %v3721 = vrot.slane %v2605, 2
    %v3722 = vrot.slane %v2601, 3
    %v3723 = vor.u32 %v3721, %v3722
    %v3724 = vsel %vm3672, %v3719, %v3723
    %v3725 = vrot.slane %v2613, 2
    %v3726 = vrot.slane %v2609, 3
    %v3727 = vor.u32 %v3725, %v3726
    %v3728 = vsel %vm3672, %v3723, %v3727
    %v3729 = vrot.slane %v2621, 2
    %v3730 = vrot.slane %v2617, 3
    %v3731 = vor.u32 %v3729, %v3730
    %v3732 = vsel %vm3672, %v3727, %v3731
    %v3733 = vrot.slane %v2629, 2
    %v3734 = vrot.slane %v2625, 3
    %v3735 = vor.u32 %v3733, %v3734
    %v3736 = vsel %vm3672, %v3731, %v3735
    %v3737 = vrot.slane %v2637, 2
    %v3738 = vrot.slane %v2633, 3
    %v3739 = vor.u32 %v3737, %v3738
    %v3740 = vsel %vm3672, %v3735, %v3739
    %v3741 = vrot.slane %v2645, 2
    %v3742 = vrot.slane %v2641, 3
    %v3743 = vor.u32 %v3741, %v3742
    %v3744 = vsel %vm3672, %v3739, %v3743
    %v3745 = vrot.slane %v2653, 2
    %v3746 = vrot.slane %v2649, 3
    %v3747 = vor.u32 %v3745, %v3746
    %v3748 = vsel %vm3672, %v3743, %v3747
    %v3749 = vrot.slane %v2657, 2
    %v3750 = vrot.slane %v1688, 3
    %v3751 = vor.u32 %v3749, %v3750
    %v3752 = vsel %vm3672, %v3747, %v3751
    %v3754 = vsel %vm1692, %v3684, 0
    %v3757 = vsel %vm1692, %v3688, 0
    %v3760 = vsel %vm1692, %v3692, 0
    %v3763 = vsel %vm1692, %v3696, 0
    %v3766 = vsel %vm1692, %v3700, 0
    %v3769 = vsel %vm1692, %v3704, 0
    %v3772 = vsel %vm1692, %v3708, 0
    %v3775 = vsel %vm1692, %v3712, 0
    %v3778 = vsel %vm1692, %v3716, 0
    %v3781 = vsel %vm1692, %v3720, 0
    %v3784 = vsel %vm1692, %v3724, 0
    %v3787 = vsel %vm1692, %v3728, 0
    %v3790 = vsel %vm1692, %v3732, 0
    %v3793 = vsel %vm1692, %v3736, 0
    %v3796 = vsel %vm1692, %v3740, 0
    %v3799 = vsel %vm1692, %v3744, 0
    %v3802 = vsel %vm1692, %v3748, 0
    %v3805 = vsel %vm1692, %v3752, 0
    %v3808 = vsel %vm1747, %v2242, 0
    %3810 = vmatprep.subr.bf16.mxu0 0
    %3811 = vmatpush1.bf16.msra.mxu0 %v3808
    %3812 = vmatprep.subr.bf16.mxu0 0
    %3813 = vmatpush1.bf16.msra.mxu0 0
    %3814 = vmatprep.subr.bf16.mxu0 0
    %3815 = vmatpush1.bf16.msra.mxu0 0
    %3816 = vmatprep.subr.bf16.mxu0 0
    %3817 = vmatpush1.bf16.msra.mxu0 0
    %3818 = vmatprep.subr.bf16.mxu0 0
    %3819 = vmatpush1.bf16.msra.mxu0 0
    %3820 = vmatprep.subr.bf16.mxu0 0
    %3821 = vmatpush1.bf16.msra.mxu0 0
    %3822 = vmatprep.subr.bf16.mxu0 0
    %3823 = vmatpush1.bf16.msra.mxu0 0
    %3824 = vmatprep.subr.bf16.mxu0 0
    %3825 = vmatpush1.bf16.msra.mxu0 0
    %3826 = vmatprep.subr.bf16.mxu0 0
    %3827 = vmatpush1.bf16.msra.mxu0 0
    %3828 = vmatprep.subr.bf16.mxu0 0
    %3829 = vmatpush1.bf16.msra.mxu0 0
    %3830 = vmatprep.subr.bf16.mxu0 0
    %3831 = vmatpush1.bf16.msra.mxu0 0
    %3832 = vmatprep.subr.bf16.mxu0 0
    %3833 = vmatpush1.bf16.msra.mxu0 0
    %3834 = vmatprep.subr.bf16.mxu0 0
    %3835 = vmatpush1.bf16.msra.mxu0 0
    %3836 = vmatprep.subr.bf16.mxu0 0
    %3837 = vmatpush1.bf16.msra.mxu0 0
    %3838 = vmatprep.subr.bf16.mxu0 0
    %3839 = vmatpush1.bf16.msra.mxu0 0
    %3840 = vmatprep.subr.bf16.mxu0 0
    %3841 = vmatpush1.bf16.msra.mxu0 0
    %3842 = vmatprep.mubr.bf16.mxu0 0
    %3843 = vmatmul.mubr.bf16.gmra.mrb[0].mxu0 %v3754
    %v3844 = vpop.f32.mrb[0].mxu0
    %v3845 = vadd.f32 %v2375, %v3844
    %v3846 = vpop.f32.mrb[0].mxu0
    %v3847 = vpop.f32.mrb[0].mxu0
    %v3848 = vadd.f32 %v2378, %v3847
    %v3849 = vpop.f32.mrb[0].mxu0
    %3850 = vmatprep.mubr.bf16.mxu0 0
    %3851 = vmatmul.mubr.bf16.gmra.mrb[0].mxu0 %v3757
    %v3852 = vpop.f32.mrb[0].mxu0
    %v3853 = vadd.f32 %v2383, %v3852
    %v3854 = vpop.f32.mrb[0].mxu0
    %v3855 = vpop.f32.mrb[0].mxu0
    %v3856 = vadd.f32 %v2386, %v3855
    %v3857 = vpop.f32.mrb[0].mxu0
    %3858 = vmatprep.mubr.bf16.mxu0 0
    %3859 = vmatmul.mubr.bf16.gmra.mrb[0].mxu0 %v3760
    %v3860 = vpop.f32.mrb[0].mxu0
    %v3861 = vadd.f32 %v2391, %v3860
    %v3862 = vpop.f32.mrb[0].mxu0
    %v3863 = vpop.f32.mrb[0].mxu0
    %v3864 = vadd.f32 %v2394, %v3863
    %v3865 = vpop.f32.mrb[0].mxu0
    %3866 = vmatprep.mubr.bf16.mxu0 0
    %3867 = vmatmul.mubr.bf16.gmra.mrb[0].mxu0 %v3763
    %v3868 = vpop.f32.mrb[0].mxu0
    %v3869 = vadd.f32 %v2399, %v3868
    %v3870 = vpop.f32.mrb[0].mxu0
    %v3871 = vpop.f32.mrb[0].mxu0
    %v3872 = vadd.f32 %v2402, %v3871
    %v3873 = vpop.f32.mrb[0].mxu0
    %3874 = vmatprep.mubr.bf16.mxu0 0
    %3875 = vmatmul.mubr.bf16.gmra.mrb[0].mxu0 %v3766
    %v3876 = vpop.f32.mrb[0].mxu0
    %v3877 = vadd.f32 %v2407, %v3876
    %v3878 = vpop.f32.mrb[0].mxu0
    %v3879 = vpop.f32.mrb[0].mxu0
    %v3880 = vadd.f32 %v2410, %v3879
    %v3881 = vpop.f32.mrb[0].mxu0
    %3882 = vmatprep.mubr.bf16.mxu0 0
    %3883 = vmatmul.mubr.bf16.gmra.mrb[0].mxu0 %v3769
    %v3884 = vpop.f32.mrb[0].mxu0
    %v3885 = vadd.f32 %v2415, %v3884
    %v3886 = vpop.f32.mrb[0].mxu0
    %v3887 = vpop.f32.mrb[0].mxu0
    %v3888 = vadd.f32 %v2418, %v3887
    %v3889 = vpop.f32.mrb[0].mxu0
    %3890 = vmatprep.mubr.bf16.mxu0 0
    %3891 = vmatmul.mubr.bf16.gmra.mrb[0].mxu0 %v3772
    %v3892 = vpop.f32.mrb[0].mxu0
    %v3893 = vadd.f32 %v2423, %v3892
    %v3894 = vpop.f32.mrb[0].mxu0
    %v3895 = vpop.f32.mrb[0].mxu0
    %v3896 = vadd.f32 %v2426, %v3895
    %v3897 = vpop.f32.mrb[0].mxu0
    %3898 = vmatprep.mubr.bf16.mxu0 0
    %3899 = vmatmul.mubr.bf16.gmra.mrb[0].mxu0 %v3775
    %v3900 = vpop.f32.mrb[0].mxu0
    %v3901 = vadd.f32 %v2431, %v3900
    %v3902 = vpop.f32.mrb[0].mxu0
    %v3903 = vpop.f32.mrb[0].mxu0
    %v3904 = vadd.f32 %v2434, %v3903
    %v3905 = vpop.f32.mrb[0].mxu0
    %3906 = vmatprep.mubr.bf16.mxu0 0
    %3907 = vmatmul.mubr.bf16.gmra.mrb[0].mxu0 %v3778
    %v3908 = vpop.f32.mrb[0].mxu0
    %v3909 = vadd.f32 %v2439, %v3908
    %v3910 = vpop.f32.mrb[0].mxu0
    %v3911 = vpop.f32.mrb[0].mxu0
    %v3912 = vadd.f32 %v2442, %v3911
    %v3913 = vpop.f32.mrb[0].mxu0
    %3914 = vmatprep.mubr.bf16.mxu0 0
    %3915 = vmatmul.mubr.bf16.gmra.mrb[0].mxu0 %v3781
    %v3916 = vpop.f32.mrb[0].mxu0
    %v3917 = vadd.f32 %v2447, %v3916
    %v3918 = vpop.f32.mrb[0].mxu0
    %v3919 = vpop.f32.mrb[0].mxu0
    %v3920 = vadd.f32 %v2450, %v3919
    %v3921 = vpop.f32.mrb[0].mxu0
    %3922 = vmatprep.mubr.bf16.mxu0 0
    %3923 = vmatmul.mubr.bf16.gmra.mrb[0].mxu0 %v3784
    %v3924 = vpop.f32.mrb[0].mxu0
    %v3925 = vadd.f32 %v2455, %v3924
    %v3926 = vpop.f32.mrb[0].mxu0
    %v3927 = vpop.f32.mrb[0].mxu0
    %v3928 = vadd.f32 %v2458, %v3927
    %v3929 = vpop.f32.mrb[0].mxu0
    %3930 = vmatprep.mubr.bf16.mxu0 0
    %3931 = vmatmul.mubr.bf16.gmra.mrb[0].mxu0 %v3787
    %v3932 = vpop.f32.mrb[0].mxu0
    %v3933 = vadd.f32 %v2463, %v3932
    %v3934 = vpop.f32.mrb[0].mxu0
    %v3935 = vpop.f32.mrb[0].mxu0
    %v3936 = vadd.f32 %v2466, %v3935
    %v3937 = vpop.f32.mrb[0].mxu0
    %3938 = vmatprep.mubr.bf16.mxu0 0
    %3939 = vmatmul.mubr.bf16.gmra.mrb[0].mxu0 %v3790
    %v3940 = vpop.f32.mrb[0].mxu0
    %v3941 = vadd.f32 %v2471, %v3940
    %v3942 = vpop.f32.mrb[0].mxu0
    %v3943 = vpop.f32.mrb[0].mxu0
    %v3944 = vadd.f32 %v2474, %v3943
    %v3945 = vpop.f32.mrb[0].mxu0
    %3946 = vmatprep.mubr.bf16.mxu0 0
    %3947 = vmatmul.mubr.bf16.gmra.mrb[0].mxu0 %v3793
    %v3948 = vpop.f32.mrb[0].mxu0
    %v3949 = vadd.f32 %v2479, %v3948
    %v3950 = vpop.f32.mrb[0].mxu0
    %v3951 = vpop.f32.mrb[0].mxu0
    %v3952 = vadd.f32 %v2482, %v3951
    %v3953 = vpop.f32.mrb[0].mxu0
    %3954 = vmatprep.mubr.bf16.mxu0 0
    %3955 = vmatmul.mubr.bf16.gmra.mrb[0].mxu0 %v3796
    %v3956 = vpop.f32.mrb[0].mxu0
    %v3957 = vadd.f32 %v2487, %v3956
    %v3958 = vpop.f32.mrb[0].mxu0
    %v3959 = vpop.f32.mrb[0].mxu0
    %v3960 = vadd.f32 %v2490, %v3959
    %v3961 = vpop.f32.mrb[0].mxu0
    %3962 = vmatprep.mubr.bf16.mxu0 0
    %3963 = vmatmul.mubr.bf16.gmra.mrb[0].mxu0 %v3799
    %v3964 = vpop.f32.mrb[0].mxu0
    %v3965 = vadd.f32 %v2495, %v3964
    %v3966 = vpop.f32.mrb[0].mxu0
    %v3967 = vpop.f32.mrb[0].mxu0
    %v3968 = vadd.f32 %v2498, %v3967
    %v3969 = vpop.f32.mrb[0].mxu0
    %3970 = vmatprep.mubr.bf16.mxu0 0
    %3971 = vmatmul.mubr.bf16.gmra.mrb[0].mxu0 %v3802
    %v3972 = vpop.f32.mrb[0].mxu0
    %v3973 = vadd.f32 %v2503, %v3972
    %v3974 = vpop.f32.mrb[0].mxu0
    %v3975 = vpop.f32.mrb[0].mxu0
    %v3976 = vadd.f32 %v2506, %v3975
    %v3977 = vpop.f32.mrb[0].mxu0
    %3978 = vmatprep.mubr.bf16.mxu0 0
    %3979 = vmatmul.mubr.bf16.gmra.mrb[0].mxu0 %v3805
    %v3980 = vpop.f32.mrb[0].mxu0
    %v3981 = vadd.f32 %v2511, %v3980
    %v3982 = vpop.f32.mrb[0].mxu0
    %v3983 = vpop.f32.mrb[0].mxu0
    %v3984 = vadd.f32 %v2514, %v3983
    %v3985 = vpop.f32.mrb[0].mxu0
    %3986 = vdwg.mxu0
    %v3987 = vsel %vm1692, %v1931, 0
    %v3989 = vsel %vm1692, %v1932, 0
    %v3991 = vsel %vm1692, %v1933, 0
    %v3993 = vsel %vm1692, %v1934, 0
    %v3995 = vsel %vm1692, %v1935, 0
    %v3997 = vsel %vm1692, %v1936, 0
    %v3999 = vsel %vm1692, %v1937, 0
    %v4001 = vsel %vm1692, %v1938, 0
    %v4003 = vsel %vm1692, %v1939, 0
    %v4005 = vsel %vm1692, %v1940, 0
    %v4007 = vsel %vm1692, %v1941, 0
    %v4009 = vsel %vm1692, %v1942, 0
    %v4011 = vsel %vm1692, %v1943, 0
    %v4013 = vsel %vm1692, %v1944, 0
    %v4015 = vsel %vm1692, %v1945, 0
    %v4017 = vsel %vm1692, %v1946, 0
    %v4019 = vsel %vm1692, %v1947, 0
    %v4021 = vsel %vm1692, %v1540, 0
    %v4024 = vsel %vm1747, %v2518, 0
    %4026 = vmatprep.subr.bf16.mxu0 0
    %4027 = vmatpush1.bf16.msra.mxu0 %v4024
    %4028 = vmatprep.subr.bf16.mxu0 0
    %4029 = vmatpush1.bf16.msra.mxu0 0
    %4030 = vmatprep.subr.bf16.mxu0 0
    %4031 = vmatpush1.bf16.msra.mxu0 0
    %4032 = vmatprep.subr.bf16.mxu0 0
    %4033 = vmatpush1.bf16.msra.mxu0 0
    %4034 = vmatprep.subr.bf16.mxu0 0
    %4035 = vmatpush1.bf16.msra.mxu0 0
    %4036 = vmatprep.subr.bf16.mxu0 0
    %4037 = vmatpush1.bf16.msra.mxu0 0
    %4038 = vmatprep.subr.bf16.mxu0 0
    %4039 = vmatpush1.bf16.msra.mxu0 0
    %4040 = vmatprep.subr.bf16.mxu0 0
    %4041 = vmatpush1.bf16.msra.mxu0 0
    %4042 = vmatprep.subr.bf16.mxu0 0
    %4043 = vmatpush1.bf16.msra.mxu0 0
    %4044 = vmatprep.subr.bf16.mxu0 0
    %4045 = vmatpush1.bf16.msra.mxu0 0
    %4046 = vmatprep.subr.bf16.mxu0 0
    %4047 = vmatpush1.bf16.msra.mxu0 0
    %4048 = vmatprep.subr.bf16.mxu0 0
    %4049 = vmatpush1.bf16.msra.mxu0 0
    %4050 = vmatprep.subr.bf16.mxu0 0
    %4051 = vmatpush1.bf16.msra.mxu0 0
    %4052 = vmatprep.subr.bf16.mxu0 0
    %4053 = vmatpush1.bf16.msra.mxu0 0
    %4054 = vmatprep.subr.bf16.mxu0 0
    %4055 = vmatpush1.bf16.msra.mxu0 0
    %4056 = vmatprep.subr.bf16.mxu0 0
    %4057 = vmatpush1.bf16.msra.mxu0 0
    %4058 = vmatprep.mubr.bf16.mxu0 0
    %4059 = vmatmul.mubr.bf16.gmra.mrb[0].mxu0 %v3987
    %v4060 = vpop.f32.mrb[0].mxu0
    %v4061 = vadd.f32 %v2753, %v4060
    %v4062 = vpop.f32.mrb[0].mxu0
    %v4063 = vpop.f32.mrb[0].mxu0
    %v4064 = vadd.f32 %v2756, %v4063
    %v4065 = vpop.f32.mrb[0].mxu0
    %4066 = vmatprep.mubr.bf16.mxu0 0
    %4067 = vmatmul.mubr.bf16.gmra.mrb[0].mxu0 %v3989
    %v4068 = vpop.f32.mrb[0].mxu0
    %v4069 = vadd.f32 %v2761, %v4068
    %v4070 = vpop.f32.mrb[0].mxu0
    %v4071 = vpop.f32.mrb[0].mxu0
    %v4072 = vadd.f32 %v2764, %v4071
    %v4073 = vpop.f32.mrb[0].mxu0
    %4074 = vmatprep.mubr.bf16.mxu0 0
    %4075 = vmatmul.mubr.bf16.gmra.mrb[0].mxu0 %v3991
    %v4076 = vpop.f32.mrb[0].mxu0
    %v4077 = vadd.f32 %v2769, %v4076
    %v4078 = vpop.f32.mrb[0].mxu0
    %v4079 = vpop.f32.mrb[0].mxu0
    %v4080 = vadd.f32 %v2772, %v4079
    %v4081 = vpop.f32.mrb[0].mxu0
    %4082 = vmatprep.mubr.bf16.mxu0 0
    %4083 = vmatmul.mubr.bf16.gmra.mrb[0].mxu0 %v3993
    %v4084 = vpop.f32.mrb[0].mxu0
    %v4085 = vadd.f32 %v2777, %v4084
    %v4086 = vpop.f32.mrb[0].mxu0
    %v4087 = vpop.f32.mrb[0].mxu0
    %v4088 = vadd.f32 %v2780, %v4087
    %v4089 = vpop.f32.mrb[0].mxu0
    %4090 = vmatprep.mubr.bf16.mxu0 0
    %4091 = vmatmul.mubr.bf16.gmra.mrb[0].mxu0 %v3995
    %v4092 = vpop.f32.mrb[0].mxu0
    %v4093 = vadd.f32 %v2785, %v4092
    %v4094 = vpop.f32.mrb[0].mxu0
    %v4095 = vpop.f32.mrb[0].mxu0
    %v4096 = vadd.f32 %v2788, %v4095
    %v4097 = vpop.f32.mrb[0].mxu0
    %4098 = vmatprep.mubr.bf16.mxu0 0
    %4099 = vmatmul.mubr.bf16.gmra.mrb[0].mxu0 %v3997
    %v4100 = vpop.f32.mrb[0].mxu0
    %v4101 = vadd.f32 %v2793, %v4100
    %v4102 = vpop.f32.mrb[0].mxu0
    %v4103 = vpop.f32.mrb[0].mxu0
    %v4104 = vadd.f32 %v2796, %v4103
    %v4105 = vpop.f32.mrb[0].mxu0
    %4106 = vmatprep.mubr.bf16.mxu0 0
    %4107 = vmatmul.mubr.bf16.gmra.mrb[0].mxu0 %v3999
    %v4108 = vpop.f32.mrb[0].mxu0
    %v4109 = vadd.f32 %v2801, %v4108
    %v4110 = vpop.f32.mrb[0].mxu0
    %v4111 = vpop.f32.mrb[0].mxu0
    %v4112 = vadd.f32 %v2804, %v4111
    %v4113 = vpop.f32.mrb[0].mxu0
    %4114 = vmatprep.mubr.bf16.mxu0 0
    %4115 = vmatmul.mubr.bf16.gmra.mrb[0].mxu0 %v4001
    %v4116 = vpop.f32.mrb[0].mxu0
    %v4117 = vadd.f32 %v2809, %v4116
    %v4118 = vpop.f32.mrb[0].mxu0
    %v4119 = vpop.f32.mrb[0].mxu0
    %v4120 = vadd.f32 %v2812, %v4119
    %v4121 = vpop.f32.mrb[0].mxu0
    %4122 = vmatprep.mubr.bf16.mxu0 0
    %4123 = vmatmul.mubr.bf16.gmra.mrb[0].mxu0 %v4003
    %v4124 = vpop.f32.mrb[0].mxu0
    %v4125 = vadd.f32 %v2817, %v4124
    %v4126 = vpop.f32.mrb[0].mxu0
    %v4127 = vpop.f32.mrb[0].mxu0
    %v4128 = vadd.f32 %v2820, %v4127
    %v4129 = vpop.f32.mrb[0].mxu0
    %4130 = vmatprep.mubr.bf16.mxu0 0
    %4131 = vmatmul.mubr.bf16.gmra.mrb[0].mxu0 %v4005
    %v4132 = vpop.f32.mrb[0].mxu0
    %v4133 = vadd.f32 %v2825, %v4132
    %v4134 = vpop.f32.mrb[0].mxu0
    %v4135 = vpop.f32.mrb[0].mxu0
    %v4136 = vadd.f32 %v2828, %v4135
    %v4137 = vpop.f32.mrb[0].mxu0
    %4138 = vmatprep.mubr.bf16.mxu0 0
    %4139 = vmatmul.mubr.bf16.gmra.mrb[0].mxu0 %v4007
    %v4140 = vpop.f32.mrb[0].mxu0
    %v4141 = vadd.f32 %v2833, %v4140
    %v4142 = vpop.f32.mrb[0].mxu0
    %v4143 = vpop.f32.mrb[0].mxu0
    %v4144 = vadd.f32 %v2836, %v4143
    %v4145 = vpop.f32.mrb[0].mxu0
    %4146 = vmatprep.mubr.bf16.mxu0 0
    %4147 = vmatmul.mubr.bf16.gmra.mrb[0].mxu0 %v4009
    %v4148 = vpop.f32.mrb[0].mxu0
    %v4149 = vadd.f32 %v2841, %v4148
    %v4150 = vpop.f32.mrb[0].mxu0
    %v4151 = vpop.f32.mrb[0].mxu0
    %v4152 = vadd.f32 %v2844, %v4151
    %v4153 = vpop.f32.mrb[0].mxu0
    %4154 = vmatprep.mubr.bf16.mxu0 0
    %4155 = vmatmul.mubr.bf16.gmra.mrb[0].mxu0 %v4011
    %v4156 = vpop.f32.mrb[0].mxu0
    %v4157 = vadd.f32 %v2849, %v4156
    %v4158 = vpop.f32.mrb[0].mxu0
    %v4159 = vpop.f32.mrb[0].mxu0
    %v4160 = vadd.f32 %v2852, %v4159
    %v4161 = vpop.f32.mrb[0].mxu0
    %4162 = vmatprep.mubr.bf16.mxu0 0
    %4163 = vmatmul.mubr.bf16.gmra.mrb[0].mxu0 %v4013
    %v4164 = vpop.f32.mrb[0].mxu0
    %v4165 = vadd.f32 %v2857, %v4164
    %v4166 = vpop.f32.mrb[0].mxu0
    %v4167 = vpop.f32.mrb[0].mxu0
    %v4168 = vadd.f32 %v2860, %v4167
    %v4169 = vpop.f32.mrb[0].mxu0
    %4170 = vmatprep.mubr.bf16.mxu0 0
    %4171 = vmatmul.mubr.bf16.gmra.mrb[0].mxu0 %v4015
    %v4172 = vpop.f32.mrb[0].mxu0
    %v4173 = vadd.f32 %v2865, %v4172
    %v4174 = vpop.f32.mrb[0].mxu0
    %v4175 = vpop.f32.mrb[0].mxu0
    %v4176 = vadd.f32 %v2868, %v4175
    %v4177 = vpop.f32.mrb[0].mxu0
    %4178 = vmatprep.mubr.bf16.mxu0 0
    %4179 = vmatmul.mubr.bf16.gmra.mrb[0].mxu0 %v4017
    %v4180 = vpop.f32.mrb[0].mxu0
    %v4181 = vadd.f32 %v2873, %v4180
    %v4182 = vpop.f32.mrb[0].mxu0
    %v4183 = vpop.f32.mrb[0].mxu0
    %v4184 = vadd.f32 %v2876, %v4183
    %v4185 = vpop.f32.mrb[0].mxu0
    %4186 = vmatprep.mubr.bf16.mxu0 0
    %4187 = vmatmul.mubr.bf16.gmra.mrb[0].mxu0 %v4019
    %v4188 = vpop.f32.mrb[0].mxu0
    %v4189 = vadd.f32 %v2881, %v4188
    %v4190 = vpop.f32.mrb[0].mxu0
    %v4191 = vpop.f32.mrb[0].mxu0
    %v4192 = vadd.f32 %v2884, %v4191
    %v4193 = vpop.f32.mrb[0].mxu0
    %4194 = vmatprep.mubr.bf16.mxu0 0
    %4195 = vmatmul.mubr.bf16.gmra.mrb[0].mxu0 %v4021
    %v4196 = vpop.f32.mrb[0].mxu0
    %v4197 = vadd.f32 %v2889, %v4196
    %v4198 = vpop.f32.mrb[0].mxu0
    %v4199 = vpop.f32.mrb[0].mxu0
    %v4200 = vadd.f32 %v2892, %v4199
    %v4201 = vpop.f32.mrb[0].mxu0
    %4202 = vdwg.mxu0
    %v4203 = vadd.f32 %v3242, %v3530
    %v4204 = vadd.f32 %v3245, %v3533
    %v4205 = vadd.f32 %v3250, %v3538
    %v4206 = vadd.f32 %v3253, %v3541
    %v4207 = vadd.f32 %v3258, %v3546
    %v4208 = vadd.f32 %v3261, %v3549
    %v4209 = vadd.f32 %v3266, %v3554
    %v4210 = vadd.f32 %v3269, %v3557
    %v4211 = vadd.f32 %v3274, %v3562
    %v4212 = vadd.f32 %v3277, %v3565
    %v4213 = vadd.f32 %v3282, %v3570
    %v4214 = vadd.f32 %v3285, %v3573
    %v4215 = vadd.f32 %v3290, %v3578
    %v4216 = vadd.f32 %v3293, %v3581
    %v4217 = vadd.f32 %v3298, %v3586
    %v4218 = vadd.f32 %v3301, %v3589
    %v4219 = vadd.f32 %v3306, %v3594
    %v4220 = vadd.f32 %v3309, %v3597
    %v4221 = vadd.f32 %v3314, %v3602
    %v4222 = vadd.f32 %v3317, %v3605
    %v4223 = vadd.f32 %v3322, %v3610
    %v4224 = vadd.f32 %v3325, %v3613
    %v4225 = vadd.f32 %v3330, %v3618
    %v4226 = vadd.f32 %v3333, %v3621
    %v4227 = vadd.f32 %v3338, %v3626
    %v4228 = vadd.f32 %v3341, %v3629
    %v4229 = vadd.f32 %v3346, %v3634
    %v4230 = vadd.f32 %v3349, %v3637
    %v4231 = vadd.f32 %v3354, %v3642
    %v4232 = vadd.f32 %v3357, %v3645
    %v4233 = vadd.f32 %v3362, %v3650
    %v4234 = vadd.f32 %v3365, %v3653
    %v4235 = vadd.f32 %v3370, %v3658
    %v4236 = vadd.f32 %v3373, %v3661
    %v4237 = vadd.f32 %v3378, %v3666
    %v4238 = vadd.f32 %v3381, %v3669
    %v4239 = vadd.f32 %v3845, %v4061
    %v4240 = vadd.f32 %v3848, %v4064
    %v4241 = vadd.f32 %v3853, %v4069
    %v4242 = vadd.f32 %v3856, %v4072
    %v4243 = vadd.f32 %v3861, %v4077
    %v4244 = vadd.f32 %v3864, %v4080
    %v4245 = vadd.f32 %v3869, %v4085
    %v4246 = vadd.f32 %v3872, %v4088
    %v4247 = vadd.f32 %v3877, %v4093
    %v4248 = vadd.f32 %v3880, %v4096
    %v4249 = vadd.f32 %v3885, %v4101
    %v4250 = vadd.f32 %v3888, %v4104
    %v4251 = vadd.f32 %v3893, %v4109
    %v4252 = vadd.f32 %v3896, %v4112
    %v4253 = vadd.f32 %v3901, %v4117
    %v4254 = vadd.f32 %v3904, %v4120
    %v4255 = vadd.f32 %v3909, %v4125
    %v4256 = vadd.f32 %v3912, %v4128
    %v4257 = vadd.f32 %v3917, %v4133
    %v4258 = vadd.f32 %v3920, %v4136
    %v4259 = vadd.f32 %v3925, %v4141
    %v4260 = vadd.f32 %v3928, %v4144
    %v4261 = vadd.f32 %v3933, %v4149
    %v4262 = vadd.f32 %v3936, %v4152
    %v4263 = vadd.f32 %v3941, %v4157
    %v4264 = vadd.f32 %v3944, %v4160
    %v4265 = vadd.f32 %v3949, %v4165
    %v4266 = vadd.f32 %v3952, %v4168
    %v4267 = vadd.f32 %v3957, %v4173
    %v4268 = vadd.f32 %v3960, %v4176
    %v4269 = vadd.f32 %v3965, %v4181
    %v4270 = vadd.f32 %v3968, %v4184
    %v4271 = vadd.f32 %v3973, %v4189
    %v4272 = vadd.f32 %v3976, %v4192
    %v4273 = vadd.f32 %v3981, %v4197
    %v4274 = vadd.f32 %v3984, %v4200
    %v4275 = vadd.f32 %v4203, %v4239
    %v4276 = vadd.f32 %v4204, %v4240
    %v4277 = vadd.f32 %v4205, %v4241
    %v4278 = vadd.f32 %v4206, %v4242
    %v4279 = vadd.f32 %v4207, %v4243
    %v4280 = vadd.f32 %v4208, %v4244
    %v4281 = vadd.f32 %v4209, %v4245
    %v4282 = vadd.f32 %v4210, %v4246
    %v4283 = vadd.f32 %v4211, %v4247
    %v4284 = vadd.f32 %v4212, %v4248
    %v4285 = vadd.f32 %v4213, %v4249
    %v4286 = vadd.f32 %v4214, %v4250
    %v4287 = vadd.f32 %v4215, %v4251
    %v4288 = vadd.f32 %v4216, %v4252
    %v4289 = vadd.f32 %v4217, %v4253
    %v4290 = vadd.f32 %v4218, %v4254
    %v4291 = vadd.f32 %v4219, %v4255
    %v4292 = vadd.f32 %v4220, %v4256
    %v4293 = vadd.f32 %v4221, %v4257
    %v4294 = vadd.f32 %v4222, %v4258
    %v4295 = vadd.f32 %v4223, %v4259
    %v4296 = vadd.f32 %v4224, %v4260
    %v4297 = vadd.f32 %v4225, %v4261
    %v4298 = vadd.f32 %v4226, %v4262
    %v4299 = vadd.f32 %v4227, %v4263
    %v4300 = vadd.f32 %v4228, %v4264
    %v4301 = vadd.f32 %v4229, %v4265
    %v4302 = vadd.f32 %v4230, %v4266
    %v4303 = vadd.f32 %v4231, %v4267
    %v4304 = vadd.f32 %v4232, %v4268
    %v4305 = vadd.f32 %v4233, %v4269
    %v4306 = vadd.f32 %v4234, %v4270
    %v4307 = vadd.f32 %v4235, %v4271
    %v4308 = vadd.f32 %v4236, %v4272
    %v4309 = vadd.f32 %v4237, %v4273
    %v4310 = vadd.f32 %v4238, %v4274
    %v4311 = vadd.f32 %v4275, %v3026
    %v4312 = vadd.f32 %v4276, %v3029
    %v4313 = vadd.f32 %v4277, %v3034
    %v4314 = vadd.f32 %v4278, %v3037
    %v4315 = vadd.f32 %v4279, %v3042
    %v4316 = vadd.f32 %v4280, %v3045
    %v4317 = vadd.f32 %v4281, %v3050
    %v4318 = vadd.f32 %v4282, %v3053
    %v4319 = vadd.f32 %v4283, %v3058
    %v4320 = vadd.f32 %v4284, %v3061
    %v4321 = vadd.f32 %v4285, %v3066
    %v4322 = vadd.f32 %v4286, %v3069
    %v4323 = vadd.f32 %v4287, %v3074
    %v4324 = vadd.f32 %v4288, %v3077
    %v4325 = vadd.f32 %v4289, %v3082
    %v4326 = vadd.f32 %v4290, %v3085
    %v4327 = vadd.f32 %v4291, %v3090
    %v4328 = vadd.f32 %v4292, %v3093
    %v4329 = vadd.f32 %v4293, %v3098
    %v4330 = vadd.f32 %v4294, %v3101
    %v4331 = vadd.f32 %v4295, %v3106
    %v4332 = vadd.f32 %v4296, %v3109
    %v4333 = vadd.f32 %v4297, %v3114
    %v4334 = vadd.f32 %v4298, %v3117
    %v4335 = vadd.f32 %v4299, %v3122
    %v4336 = vadd.f32 %v4300, %v3125
    %v4337 = vadd.f32 %v4301, %v3130
    %v4338 = vadd.f32 %v4302, %v3133
    %v4339 = vadd.f32 %v4303, %v3138
    %v4340 = vadd.f32 %v4304, %v3141
    %v4341 = vadd.f32 %v4305, %v3146
    %v4342 = vadd.f32 %v4306, %v3149
    %v4343 = vadd.f32 %v4307, %v3154
    %v4344 = vadd.f32 %v4308, %v3157
    %v4345 = vadd.f32 %v4309, %v3162
    %v4346 = vadd.f32 %v4310, %v3165
    %v4347 = vld [vmem:[%s6 + $0x3] sm:$0x1]
    %v4348 = vlaneseq
    %v4349 = vshrl.u32 %v4348, 7
    %v4350 = vsub.s32 0, %v4349
    %v4351 = vrot.slane %v4347, %v4350
    %v4352 = vadd.f32 %v4311, %v4351
    %v4353 = vadd.f32 %v4312, %v4351
    %v4354 = vadd.f32 %v4313, %v4351
    %v4355 = vadd.f32 %v4314, %v4351
    %v4356 = vadd.f32 %v4315, %v4351
    %v4357 = vadd.f32 %v4316, %v4351
    %v4358 = vadd.f32 %v4317, %v4351
    %v4359 = vadd.f32 %v4318, %v4351
    %v4360 = vadd.f32 %v4319, %v4351
    %v4361 = vadd.f32 %v4320, %v4351
    %v4362 = vadd.f32 %v4321, %v4351
    %v4363 = vadd.f32 %v4322, %v4351
    %v4364 = vadd.f32 %v4323, %v4351
    %v4365 = vadd.f32 %v4324, %v4351
    %v4366 = vadd.f32 %v4325, %v4351
    %v4367 = vadd.f32 %v4326, %v4351
    %v4368 = vadd.f32 %v4327, %v4351
    %v4369 = vadd.f32 %v4328, %v4351
    %v4370 = vadd.f32 %v4329, %v4351
    %v4371 = vadd.f32 %v4330, %v4351
    %v4372 = vadd.f32 %v4331, %v4351
    %v4373 = vadd.f32 %v4332, %v4351
    %v4374 = vadd.f32 %v4333, %v4351
    %v4375 = vadd.f32 %v4334, %v4351
    %v4376 = vadd.f32 %v4335, %v4351
    %v4377 = vadd.f32 %v4336, %v4351
    %v4378 = vadd.f32 %v4337, %v4351
    %v4379 = vadd.f32 %v4338, %v4351
    %v4380 = vadd.f32 %v4339, %v4351
    %v4381 = vadd.f32 %v4340, %v4351
    %v4382 = vadd.f32 %v4341, %v4351
    %v4383 = vadd.f32 %v4342, %v4351
    %v4384 = vadd.f32 %v4343, %v4351
    %v4385 = vadd.f32 %v4344, %v4351
    %v4386 = vadd.f32 %v4345, %v4351
    %v4387 = vadd.f32 %v4346, %v4351
    %v4388 = vmax.f32 %v4352, 0.0
    %v4389 = vmax.f32 %v4353, 0.0
    %v4390 = vmax.f32 %v4354, 0.0
    %v4391 = vmax.f32 %v4355, 0.0
    %v4392 = vmax.f32 %v4356, 0.0
    %v4393 = vmax.f32 %v4357, 0.0
    %v4394 = vmax.f32 %v4358, 0.0
    %v4395 = vmax.f32 %v4359, 0.0
    %v4396 = vmax.f32 %v4360, 0.0
    %v4397 = vmax.f32 %v4361, 0.0
    %v4398 = vmax.f32 %v4362, 0.0
    %v4399 = vmax.f32 %v4363, 0.0
    %v4400 = vmax.f32 %v4364, 0.0
    %v4401 = vmax.f32 %v4365, 0.0
    %v4402 = vmax.f32 %v4366, 0.0
    %v4403 = vmax.f32 %v4367, 0.0
    %v4404 = vmax.f32 %v4368, 0.0
    %v4405 = vmax.f32 %v4369, 0.0
    %v4406 = vmax.f32 %v4370, 0.0
    %v4407 = vmax.f32 %v4371, 0.0
    %v4408 = vmax.f32 %v4372, 0.0
    %v4409 = vmax.f32 %v4373, 0.0
    %v4410 = vmax.f32 %v4374, 0.0
    %v4411 = vmax.f32 %v4375, 0.0
    %v4412 = vmax.f32 %v4376, 0.0
    %v4413 = vmax.f32 %v4377, 0.0
    %v4414 = vmax.f32 %v4378, 0.0
    %v4415 = vmax.f32 %v4379, 0.0
    %v4416 = vmax.f32 %v4380, 0.0
    %v4417 = vmax.f32 %v4381, 0.0
    %v4418 = vmax.f32 %v4382, 0.0
    %v4419 = vmax.f32 %v4383, 0.0
    %v4420 = vmax.f32 %v4384, 0.0
    %v4421 = vmax.f32 %v4385, 0.0
    %v4422 = vmax.f32 %v4386, 0.0
    %v4423 = vmax.f32 %v4387, 0.0
    %vm4461 = vcmask 1046528
    %v4462 = vrot.slane %v4388, 1
    %v4463 = vrot.slane %v4389, 1
    %v4464 = vsel %vm4461, %v4462, %v4463
    %v4465 = vrot.slane %v4390, 1
    %v4466 = vsel %vm4461, %v4463, %v4465
    %v4467 = vrot.slane %v4391, 1
    %v4468 = vsel %vm4461, %v4465, %v4467
    %v4469 = vrot.slane %v4392, 1
    %v4470 = vsel %vm4461, %v4467, %v4469
    %v4471 = vrot.slane %v4393, 1
    %v4472 = vsel %vm4461, %v4469, %v4471
    %v4473 = vrot.slane %v4394, 1
    %v4474 = vsel %vm4461, %v4471, %v4473
    %v4475 = vrot.slane %v4395, 1
    %v4476 = vsel %vm4461, %v4473, %v4475
    %v4477 = vrot.slane %v4396, 1
    %v4478 = vsel %vm4461, %v4475, %v4477
    %v4479 = vrot.slane %v4397, 1
    %v4480 = vsel %vm4461, %v4477, %v4479
    %v4481 = vrot.slane %v4398, 1
    %v4482 = vsel %vm4461, %v4479, %v4481
    %v4483 = vrot.slane %v4399, 1
    %v4484 = vsel %vm4461, %v4481, %v4483
    %v4485 = vrot.slane %v4400, 1
    %v4486 = vsel %vm4461, %v4483, %v4485
    %v4487 = vrot.slane %v4401, 1
    %v4488 = vsel %vm4461, %v4485, %v4487
    %v4489 = vrot.slane %v4402, 1
    %v4490 = vsel %vm4461, %v4487, %v4489
    %v4491 = vrot.slane %v4403, 1
    %v4492 = vsel %vm4461, %v4489, %v4491
    %v4493 = vrot.slane %v4404, 1
    %v4494 = vsel %vm4461, %v4491, %v4493
    %v4495 = vrot.slane %v4405, 1
    %v4496 = vsel %vm4461, %v4493, %v4495
    %v4497 = vrot.slane %v4406, 1
    %v4498 = vsel %vm4461, %v4495, %v4497
    %v4499 = vrot.slane %v4407, 1
    %v4500 = vsel %vm4461, %v4497, %v4499
    %v4501 = vrot.slane %v4408, 1
    %v4502 = vsel %vm4461, %v4499, %v4501
    %v4503 = vrot.slane %v4409, 1
    %v4504 = vsel %vm4461, %v4501, %v4503
    %v4505 = vrot.slane %v4410, 1
    %v4506 = vsel %vm4461, %v4503, %v4505
    %v4507 = vrot.slane %v4411, 1
    %v4508 = vsel %vm4461, %v4505, %v4507
    %v4509 = vrot.slane %v4412, 1
    %v4510 = vsel %vm4461, %v4507, %v4509
    %v4511 = vrot.slane %v4413, 1
    %v4512 = vsel %vm4461, %v4509, %v4511
    %v4513 = vrot.slane %v4414, 1
    %v4514 = vsel %vm4461, %v4511, %v4513
    %v4515 = vrot.slane %v4415, 1
    %v4516 = vsel %vm4461, %v4513, %v4515
    %v4517 = vrot.slane %v4416, 1
    %v4518 = vsel %vm4461, %v4515, %v4517
    %v4519 = vrot.slane %v4417, 1
    %v4520 = vsel %vm4461, %v4517, %v4519
    %v4521 = vrot.slane %v4418, 1
    %v4522 = vsel %vm4461, %v4519, %v4521
    %v4523 = vrot.slane %v4419, 1
    %v4524 = vsel %vm4461, %v4521, %v4523
    %v4525 = vrot.slane %v4420, 1
    %v4526 = vsel %vm4461, %v4523, %v4525
    %v4527 = vrot.slane %v4421, 1
    %v4528 = vsel %vm4461, %v4525, %v4527
    %v4529 = vrot.slane %v4422, 1
    %v4530 = vsel %vm4461, %v4527, %v4529
    %v4531 = vrot.slane %v4423, 1
    %v4532 = vsel %vm4461, %v4529, %v4531
    %v4533 = vrot.slane 0.0, 1
    %v4534 = vsel %vm4461, %v4531, %v4533
    %v4571 = vmax.f32 %v4388, %v4464
    %v4572 = vmax.f32 %v4389, %v4466
    %v4573 = vmax.f32 %v4390, %v4468
    %v4574 = vmax.f32 %v4391, %v4470
    %v4575 = vmax.f32 %v4392, %v4472
    %v4576 = vmax.f32 %v4393, %v4474
    %v4577 = vmax.f32 %v4394, %v4476
    %v4578 = vmax.f32 %v4395, %v4478
    %v4579 = vmax.f32 %v4396, %v4480
    %v4580 = vmax.f32 %v4397, %v4482
    %v4581 = vmax.f32 %v4398, %v4484
    %v4582 = vmax.f32 %v4399, %v4486
    %v4583 = vmax.f32 %v4400, %v4488
    %v4584 = vmax.f32 %v4401, %v4490
    %v4585 = vmax.f32 %v4402, %v4492
    %v4586 = vmax.f32 %v4403, %v4494
    %v4587 = vmax.f32 %v4404, %v4496
    %v4588 = vmax.f32 %v4405, %v4498
    %v4589 = vmax.f32 %v4406, %v4500
    %v4590 = vmax.f32 %v4407, %v4502
    %v4591 = vmax.f32 %v4408, %v4504
    %v4592 = vmax.f32 %v4409, %v4506
    %v4593 = vmax.f32 %v4410, %v4508
    %v4594 = vmax.f32 %v4411, %v4510
    %v4595 = vmax.f32 %v4412, %v4512
    %v4596 = vmax.f32 %v4413, %v4514
    %v4597 = vmax.f32 %v4414, %v4516
    %v4598 = vmax.f32 %v4415, %v4518
    %v4599 = vmax.f32 %v4416, %v4520
    %v4600 = vmax.f32 %v4417, %v4522
    %v4601 = vmax.f32 %v4418, %v4524
    %v4602 = vmax.f32 %v4419, %v4526
    %v4603 = vmax.f32 %v4420, %v4528
    %v4604 = vmax.f32 %v4421, %v4530
    %v4605 = vmax.f32 %v4422, %v4532
    %v4606 = vmax.f32 %v4423, %v4534
    %v4607 = vsel %vm4461, %v4533, %v4533
    %v4610 = vmax.f32 %v4607, 0.0
    %v4611 = vmax.f32 %v4533, 0.0
    %vm4649 = vcmask 1043456
    %v4650 = vrot.slane %v4572, 4
    %v4651 = vrot.slane %v4573, 4
    %v4652 = vsel %vm4649, %v4650, %v4651
    %v4653 = vrot.slane %v4574, 4
    %v4654 = vsel %vm4649, %v4651, %v4653
    %v4655 = vrot.slane %v4575, 4
    %v4656 = vsel %vm4649, %v4653, %v4655
    %v4657 = vrot.slane %v4576, 4
    %v4658 = vsel %vm4649, %v4655, %v4657
    %v4659 = vrot.slane %v4577, 4
    %v4660 = vsel %vm4649, %v4657, %v4659
    %v4661 = vrot.slane %v4578, 4
    %v4662 = vsel %vm4649, %v4659, %v4661
    %v4663 = vrot.slane %v4579, 4
    %v4664 = vsel %vm4649, %v4661, %v4663
    %v4665 = vrot.slane %v4580, 4
    %v4666 = vsel %vm4649, %v4663, %v4665
    %v4667 = vrot.slane %v4581, 4
    %v4668 = vsel %vm4649, %v4665, %v4667
    %v4669 = vrot.slane %v4582, 4
    %v4670 = vsel %vm4649, %v4667, %v4669
    %v4671 = vrot.slane %v4583, 4
    %v4672 = vsel %vm4649, %v4669, %v4671
    %v4673 = vrot.slane %v4584, 4
    %v4674 = vsel %vm4649, %v4671, %v4673
    %v4675 = vrot.slane %v4585, 4
    %v4676 = vsel %vm4649, %v4673, %v4675
    %v4677 = vrot.slane %v4586, 4
    %v4678 = vsel %vm4649, %v4675, %v4677
    %v4679 = vrot.slane %v4587, 4
    %v4680 = vsel %vm4649, %v4677, %v4679
    %v4681 = vrot.slane %v4588, 4
    %v4682 = vsel %vm4649, %v4679, %v4681
    %v4683 = vrot.slane %v4589, 4
    %v4684 = vsel %vm4649, %v4681, %v4683
    %v4685 = vrot.slane %v4590, 4
    %v4686 = vsel %vm4649, %v4683, %v4685
    %v4687 = vrot.slane %v4591, 4
    %v4688 = vsel %vm4649, %v4685, %v4687
    %v4689 = vrot.slane %v4592, 4
    %v4690 = vsel %vm4649, %v4687, %v4689
    %v4691 = vrot.slane %v4593, 4
    %v4692 = vsel %vm4649, %v4689, %v4691
    %v4693 = vrot.slane %v4594, 4
    %v4694 = vsel %vm4649, %v4691, %v4693
    %v4695 = vrot.slane %v4595, 4
    %v4696 = vsel %vm4649, %v4693, %v4695
    %v4697 = vrot.slane %v4596, 4
    %v4698 = vsel %vm4649, %v4695, %v4697
    %v4699 = vrot.slane %v4597, 4
    %v4700 = vsel %vm4649, %v4697, %v4699
    %v4701 = vrot.slane %v4598, 4
    %v4702 = vsel %vm4649, %v4699, %v4701
    %v4703 = vrot.slane %v4599, 4
    %v4704 = vsel %vm4649, %v4701, %v4703
    %v4705 = vrot.slane %v4600, 4
    %v4706 = vsel %vm4649, %v4703, %v4705
    %v4707 = vrot.slane %v4601, 4
    %v4708 = vsel %vm4649, %v4705, %v4707
    %v4709 = vrot.slane %v4602, 4
    %v4710 = vsel %vm4649, %v4707, %v4709
    %v4711 = vrot.slane %v4603, 4
    %v4712 = vsel %vm4649, %v4709, %v4711
    %v4713 = vrot.slane %v4604, 4
    %v4714 = vsel %vm4649, %v4711, %v4713
    %v4715 = vrot.slane %v4605, 4
    %v4716 = vsel %vm4649, %v4713, %v4715
    %v4717 = vrot.slane %v4606, 4
    %v4718 = vsel %vm4649, %v4715, %v4717
    %v4719 = vrot.slane %v4610, 4
    %v4720 = vsel %vm4649, %v4717, %v4719
    %v4721 = vrot.slane %v4611, 4
    %v4722 = vsel %vm4649, %v4719, %v4721
    %v4759 = vmax.f32 %v4571, %v4652
    %v4760 = vmax.f32 %v4572, %v4654
    %v4761 = vmax.f32 %v4573, %v4656
    %v4762 = vmax.f32 %v4574, %v4658
    %v4763 = vmax.f32 %v4575, %v4660
    %v4764 = vmax.f32 %v4576, %v4662
    %v4765 = vmax.f32 %v4577, %v4664
    %v4766 = vmax.f32 %v4578, %v4666
    %v4767 = vmax.f32 %v4579, %v4668
    %v4768 = vmax.f32 %v4580, %v4670
    %v4769 = vmax.f32 %v4581, %v4672
    %v4770 = vmax.f32 %v4582, %v4674
    %v4771 = vmax.f32 %v4583, %v4676
    %v4772 = vmax.f32 %v4584, %v4678
    %v4773 = vmax.f32 %v4585, %v4680
    %v4774 = vmax.f32 %v4586, %v4682
    %v4775 = vmax.f32 %v4587, %v4684
    %v4776 = vmax.f32 %v4588, %v4686
    %v4777 = vmax.f32 %v4589, %v4688
    %v4778 = vmax.f32 %v4590, %v4690
    %v4779 = vmax.f32 %v4591, %v4692
    %v4780 = vmax.f32 %v4592, %v4694
    %v4781 = vmax.f32 %v4593, %v4696
    %v4782 = vmax.f32 %v4594, %v4698
    %v4783 = vmax.f32 %v4595, %v4700
    %v4784 = vmax.f32 %v4596, %v4702
    %v4785 = vmax.f32 %v4597, %v4704
    %v4786 = vmax.f32 %v4598, %v4706
    %v4787 = vmax.f32 %v4599, %v4708
    %v4788 = vmax.f32 %v4600, %v4710
    %v4789 = vmax.f32 %v4601, %v4712
    %v4790 = vmax.f32 %v4602, %v4714
    %v4791 = vmax.f32 %v4603, %v4716
    %v4792 = vmax.f32 %v4604, %v4718
    %v4793 = vmax.f32 %v4605, %v4720
    %v4794 = vmax.f32 %v4606, %v4722
    %vm4795 = vcmask 130048
    %4796 = vst.msk [vmem:[#allocation2] sm:$0xff] %vm4795, %v4759
    %4797 = vst.msk [vmem:[#allocation2 + $0x8] sm:$0xff] %vm4795, %v4760
    %4798 = vst.msk [vmem:[#allocation2 + $0x10] sm:$0xff] %vm4795, %v4761
    %4799 = vst.msk [vmem:[#allocation2 + $0x18] sm:$0xff] %vm4795, %v4762
    %4800 = vst.msk [vmem:[#allocation2 + $0x20] sm:$0xff] %vm4795, %v4763
    %4801 = vst.msk [vmem:[#allocation2 + $0x28] sm:$0xff] %vm4795, %v4764
    %4802 = vst.msk [vmem:[#allocation2 + $0x30] sm:$0xff] %vm4795, %v4765
    %4803 = vst.msk [vmem:[#allocation2 + $0x38] sm:$0xff] %vm4795, %v4766
    %4804 = vst.msk [vmem:[#allocation2 + $0x40] sm:$0xff] %vm4795, %v4767
    %4805 = vst.msk [vmem:[#allocation2 + $0x48] sm:$0xff] %vm4795, %v4768
    %4806 = vst.msk [vmem:[#allocation2 + $0x50] sm:$0xff] %vm4795, %v4769
    %4807 = vst.msk [vmem:[#allocation2 + $0x58] sm:$0xff] %vm4795, %v4770
    %4808 = vst.msk [vmem:[#allocation2 + $0x60] sm:$0xff] %vm4795, %v4771
    %4809 = vst.msk [vmem:[#allocation2 + $0x68] sm:$0xff] %vm4795, %v4772
    %4810 = vst.msk [vmem:[#allocation2 + $0x70] sm:$0xff] %vm4795, %v4773
    %4811 = vst.msk [vmem:[#allocation2 + $0x78] sm:$0xff] %vm4795, %v4774
    %4812 = vst.msk [vmem:[#allocation2 + $0x80] sm:$0xff] %vm4795, %v4775
    %4813 = vst.msk [vmem:[#allocation2 + $0x88] sm:$0xff] %vm4795, %v4776
    %4814 = vst.msk [vmem:[#allocation2 + $0x90] sm:$0xff] %vm4795, %v4777
    %4815 = vst.msk [vmem:[#allocation2 + $0x98] sm:$0xff] %vm4795, %v4778
    %4816 = vst.msk [vmem:[#allocation2 + $0xa0] sm:$0xff] %vm4795, %v4779
    %4817 = vst.msk [vmem:[#allocation2 + $0xa8] sm:$0xff] %vm4795, %v4780
    %4818 = vst.msk [vmem:[#allocation2 + $0xb0] sm:$0xff] %vm4795, %v4781
    %4819 = vst.msk [vmem:[#allocation2 + $0xb8] sm:$0xff] %vm4795, %v4782
    %4820 = vst.msk [vmem:[#allocation2 + $0xc0] sm:$0xff] %vm4795, %v4783
    %4821 = vst.msk [vmem:[#allocation2 + $0xc8] sm:$0xff] %vm4795, %v4784
    %4822 = vst.msk [vmem:[#allocation2 + $0xd0] sm:$0xff] %vm4795, %v4785
    %4823 = vst.msk [vmem:[#allocation2 + $0xd8] sm:$0xff] %vm4795, %v4786
    %4824 = vst.msk [vmem:[#allocation2 + $0xe0] sm:$0xff] %vm4795, %v4787
    %4825 = vst.msk [vmem:[#allocation2 + $0xe8] sm:$0xff] %vm4795, %v4788
    %4826 = vst.msk [vmem:[#allocation2 + $0xf0] sm:$0xff] %vm4795, %v4789
    %4827 = vst.msk [vmem:[#allocation2 + $0xf8] sm:$0xff] %vm4795, %v4790
    %4828 = vst.msk [vmem:[#allocation2 + $0x100] sm:$0xff] %vm4795, %v4791
    %4829 = vst.msk [vmem:[#allocation2 + $0x108] sm:$0xff] %vm4795, %v4792
    %4830 = vst.msk [vmem:[#allocation2 + $0x110] sm:$0xff] %vm4795, %v4793
    %4831 = vst.msk [vmem:[#allocation2 + $0x118] sm:$0xff] %vm4795, %v4794
    %v4832 = vld [vmem:[#allocation2] ss:$144 sm:$0x3]
    %v4833 = vpack.c.bf16 %v4832, %v4832
    %v4834 = vld [vmem:[%s3] sm:$0xf]
    %v4835 = vld [vmem:[%s3 + $0x4] sm:$0xf]
    %s4836 = scalar_lea.vmem [#allocation2], 2
    %v4837 = vld [vmem:[%s4836] ss:$144 sm:$0x3]
    %v4838 = vpack.c.bf16 %v4837, %v4837
    %s4839 = scalar_lea.vmem %s3, 8
    %v4840 = vld [vmem:[%s4839] sm:$0xf]
    %v4841 = vld [vmem:[%s4839 + $0x4] sm:$0xf]
    %v4844 = vunpack.c.l.b16 %v4840
    %v4845 = vunpack.c.l.b16 %v4841
    %v4846 = vpack.c.b16 %v4845, %v4844
    %v4849 = vsel %vm4795, %v4838, 0
    %4851 = vmatprep.subr.bf16.mxu0 0
    %4852 = vmatpush1.bf16.msra.mxu0 %v4846
    %4853 = vmatprep.subr.bf16.mxu0 0
    %4854 = vmatpush1.bf16.msra.mxu0 0
    %4855 = vmatprep.subr.bf16.mxu0 0
    %4856 = vmatpush1.bf16.msra.mxu0 0
    %4857 = vmatprep.subr.bf16.mxu0 0
    %4858 = vmatpush1.bf16.msra.mxu0 0
    %4859 = vmatprep.subr.bf16.mxu0 0
    %4860 = vmatpush1.bf16.msra.mxu0 0
    %4861 = vmatprep.subr.bf16.mxu0 0
    %4862 = vmatpush1.bf16.msra.mxu0 0
    %4863 = vmatprep.subr.bf16.mxu0 0
    %4864 = vmatpush1.bf16.msra.mxu0 0
    %4865 = vmatprep.subr.bf16.mxu0 0
    %4866 = vmatpush1.bf16.msra.mxu0 0
    %4867 = vmatprep.subr.bf16.mxu0 0
    %4868 = vmatpush1.bf16.msra.mxu0 0
    %4869 = vmatprep.subr.bf16.mxu0 0
    %4870 = vmatpush1.bf16.msra.mxu0 0
    %4871 = vmatprep.subr.bf16.mxu0 0
    %4872 = vmatpush1.bf16.msra.mxu0 0
    %4873 = vmatprep.subr.bf16.mxu0 0
    %4874 = vmatpush1.bf16.msra.mxu0 0
    %4875 = vmatprep.subr.bf16.mxu0 0
    %4876 = vmatpush1.bf16.msra.mxu0 0
    %4877 = vmatprep.subr.bf16.mxu0 0
    %4878 = vmatpush1.bf16.msra.mxu0 0
    %4879 = vmatprep.subr.bf16.mxu0 0
    %4880 = vmatpush1.bf16.msra.mxu0 0
    %4881 = vmatprep.subr.bf16.mxu0 0
    %4882 = vmatpush1.bf16.msra.mxu0 0
    %4883 = vmatprep.mubr.bf16.mxu0 0
    %4884 = vmatmul.mubr.bf16.gmra.mrb[0].mxu0 %v4849
    %v4885 = vpop.f32.mrb[0].mxu0
    %v4886 = vadd.f32 0.0, %v4885
    %v4887 = vpop.f32.mrb[0].mxu0
    %v4888 = vpop.f32.mrb[0].mxu0
    %v4889 = vpop.f32.mrb[0].mxu0
    %4890 = vdwg.mxu0
    %s4891 = scalar_lea.vmem [#allocation2], 4
    %v4892 = vld [vmem:[%s4891] ss:$144 sm:$0x3]
    %v4893 = vpack.c.bf16 %v4892, %v4892
    %s4894 = scalar_lea.vmem %s3, 16
    %v4895 = vld [vmem:[%s4894] sm:$0xf]
    %v4896 = vld [vmem:[%s4894 + $0x4] sm:$0xf]
    %s4897 = scalar_lea.vmem [#allocation2], 6
    %v4898 = vld [vmem:[%s4897] ss:$144 sm:$0x3]
    %v4899 = vpack.c.bf16 %v4898, %v4898
    %s4900 = scalar_lea.vmem %s3, 24
    %v4901 = vld [vmem:[%s4900] sm:$0xf]
    %v4902 = vld [vmem:[%s4900 + $0x4] sm:$0xf]
    %v4905 = vunpack.c.l.b16 %v4901
    %v4906 = vunpack.c.l.b16 %v4902
    %v4907 = vpack.c.b16 %v4906, %v4905
    %v4910 = vsel %vm4795, %v4899, 0
    %4912 = vmatprep.subr.bf16.mxu0 0
    %4913 = vmatpush1.bf16.msra.mxu0 %v4907
    %4914 = vmatprep.subr.bf16.mxu0 0
    %4915 = vmatpush1.bf16.msra.mxu0 0
    %4916 = vmatprep.subr.bf16.mxu0 0
    %4917 = vmatpush1.bf16.msra.mxu0 0
    %4918 = vmatprep.subr.bf16.mxu0 0
    %4919 = vmatpush1.bf16.msra.mxu0 0
    %4920 = vmatprep.subr.bf16.mxu0 0
    %4921 = vmatpush1.bf16.msra.mxu0 0
    %4922 = vmatprep.subr.bf16.mxu0 0
    %4923 = vmatpush1.bf16.msra.mxu0 0
    %4924 = vmatprep.subr.bf16.mxu0 0
    %4925 = vmatpush1.bf16.msra.mxu0 0
    %4926 = vmatprep.subr.bf16.mxu0 0
    %4927 = vmatpush1.bf16.msra.mxu0 0
    %4928 = vmatprep.subr.bf16.mxu0 0
    %4929 = vmatpush1.bf16.msra.mxu0 0
    %4930 = vmatprep.subr.bf16.mxu0 0
    %4931 = vmatpush1.bf16.msra.mxu0 0
    %4932 = vmatprep.subr.bf16.mxu0 0
    %4933 = vmatpush1.bf16.msra.mxu0 0
    %4934 = vmatprep.subr.bf16.mxu0 0
    %4935 = vmatpush1.bf16.msra.mxu0 0
    %4936 = vmatprep.subr.bf16.mxu0 0
    %4937 = vmatpush1.bf16.msra.mxu0 0
    %4938 = vmatprep.subr.bf16.mxu0 0
    %4939 = vmatpush1.bf16.msra.mxu0 0
    %4940 = vmatprep.subr.bf16.mxu0 0
    %4941 = vmatpush1.bf16.msra.mxu0 0
    %4942 = vmatprep.subr.bf16.mxu0 0
    %4943 = vmatpush1.bf16.msra.mxu0 0
    %4944 = vmatprep.mubr.bf16.mxu0 0
    %4945 = vmatmul.mubr.bf16.gmra.mrb[0].mxu0 %v4910
    %v4946 = vpop.f32.mrb[0].mxu0
    %v4947 = vadd.f32 0.0, %v4946
    %v4948 = vpop.f32.mrb[0].mxu0
    %v4949 = vpop.f32.mrb[0].mxu0
    %v4950 = vpop.f32.mrb[0].mxu0
    %4951 = vdwg.mxu0
    %s4952 = scalar_lea.vmem [#allocation2], 8
    %v4953 = vld [vmem:[%s4952] ss:$144 sm:$0x3]
    %v4954 = vpack.c.bf16 %v4953, %v4953
    %s4955 = scalar_lea.vmem %s3, 32
    %v4956 = vld [vmem:[%s4955] sm:$0xf]
    %v4957 = vld [vmem:[%s4955 + $0x4] sm:$0xf]
    %s4958 = scalar_lea.vmem [#allocation2], 24
    %v4959 = vld [vmem:[%s4958] ss:$144 sm:$0x3]
    %v4960 = vpack.c.bf16 %v4959, %v4959
    %s4961 = scalar_lea.vmem %s3, 40
    %v4962 = vld [vmem:[%s4961] sm:$0xf]
    %v4963 = vld [vmem:[%s4961 + $0x4] sm:$0xf]
    %v4966 = vunpack.c.l.b16 %v4962
    %v4967 = vunpack.c.l.b16 %v4963
    %v4968 = vpack.c.b16 %v4967, %v4966
    %v4971 = vsel %vm4795, %v4960, 0
    %4973 = vmatprep.subr.bf16.mxu0 0
    %4974 = vmatpush1.bf16.msra.mxu0 %v4968
    %4975 = vmatprep.subr.bf16.mxu0 0
    %4976 = vmatpush1.bf16.msra.mxu0 0
    %4977 = vmatprep.subr.bf16.mxu0 0
    %4978 = vmatpush1.bf16.msra.mxu0 0
    %4979 = vmatprep.subr.bf16.mxu0 0
    %4980 = vmatpush1.bf16.msra.mxu0 0
    %4981 = vmatprep.subr.bf16.mxu0 0
    %4982 = vmatpush1.bf16.msra.mxu0 0
    %4983 = vmatprep.subr.bf16.mxu0 0
    %4984 = vmatpush1.bf16.msra.mxu0 0
    %4985 = vmatprep.subr.bf16.mxu0 0
    %4986 = vmatpush1.bf16.msra.mxu0 0
    %4987 = vmatprep.subr.bf16.mxu0 0
    %4988 = vmatpush1.bf16.msra.mxu0 0
    %4989 = vmatprep.subr.bf16.mxu0 0
    %4990 = vmatpush1.bf16.msra.mxu0 0
    %4991 = vmatprep.subr.bf16.mxu0 0
    %4992 = vmatpush1.bf16.msra.mxu0 0
    %4993 = vmatprep.subr.bf16.mxu0 0
    %4994 = vmatpush1.bf16.msra.mxu0 0
    %4995 = vmatprep.subr.bf16.mxu0 0
    %4996 = vmatpush1.bf16.msra.mxu0 0
    %4997 = vmatprep.subr.bf16.mxu0 0
    %4998 = vmatpush1.bf16.msra.mxu0 0
    %4999 = vmatprep.subr.bf16.mxu0 0
    %5000 = vmatpush1.bf16.msra.mxu0 0
    %5001 = vmatprep.subr.bf16.mxu0 0
    %5002 = vmatpush1.bf16.msra.mxu0 0
    %5003 = vmatprep.subr.bf16.mxu0 0
    %5004 = vmatpush1.bf16.msra.mxu0 0
    %5005 = vmatprep.mubr.bf16.mxu0 0
    %5006 = vmatmul.mubr.bf16.gmra.mrb[0].mxu0 %v4971
    %v5007 = vpop.f32.mrb[0].mxu0
    %v5008 = vadd.f32 0.0, %v5007
    %v5009 = vpop.f32.mrb[0].mxu0
    %v5010 = vpop.f32.mrb[0].mxu0
    %v5011 = vpop.f32.mrb[0].mxu0
    %5012 = vdwg.mxu0
    %s5013 = scalar_lea.vmem [#allocation2], 26
    %v5014 = vld [vmem:[%s5013] ss:$144 sm:$0x3]
    %v5015 = vpack.c.bf16 %v5014, %v5014
    %s5016 = scalar_lea.vmem %s3, 48
    %v5017 = vld [vmem:[%s5016] sm:$0xf]
    %v5018 = vld [vmem:[%s5016 + $0x4] sm:$0xf]
    %s5019 = scalar_lea.vmem [#allocation2], 28
    %v5020 = vld [vmem:[%s5019] ss:$144 sm:$0x3]
    %v5021 = vpack.c.bf16 %v5020, %v5020
    %s5022 = scalar_lea.vmem %s3, 56
    %v5023 = vld [vmem:[%s5022] sm:$0xf]
    %v5024 = vld [vmem:[%s5022 + $0x4] sm:$0xf]
    %v5027 = vunpack.c.l.b16 %v5023
    %v5028 = vunpack.c.l.b16 %v5024
    %v5029 = vpack.c.b16 %v5028, %v5027
    %v5032 = vsel %vm4795, %v5021, 0
    %5034 = vmatprep.subr.bf16.mxu0 0
    %5035 = vmatpush1.bf16.msra.mxu0 %v5029
    %5036 = vmatprep.subr.bf16.mxu0 0
    %5037 = vmatpush1.bf16.msra.mxu0 0
    %5038 = vmatprep.subr.bf16.mxu0 0
    %5039 = vmatpush1.bf16.msra.mxu0 0
    %5040 = vmatprep.subr.bf16.mxu0 0
    %5041 = vmatpush1.bf16.msra.mxu0 0
    %5042 = vmatprep.subr.bf16.mxu0 0
    %5043 = vmatpush1.bf16.msra.mxu0 0
    %5044 = vmatprep.subr.bf16.mxu0 0
    %5045 = vmatpush1.bf16.msra.mxu0 0
    %5046 = vmatprep.subr.bf16.mxu0 0
    %5047 = vmatpush1.bf16.msra.mxu0 0
    %5048 = vmatprep.subr.bf16.mxu0 0
    %5049 = vmatpush1.bf16.msra.mxu0 0
    %5050 = vmatprep.subr.bf16.mxu0 0
    %5051 = vmatpush1.bf16.msra.mxu0 0
    %5052 = vmatprep.subr.bf16.mxu0 0
    %5053 = vmatpush1.bf16.msra.mxu0 0
    %5054 = vmatprep.subr.bf16.mxu0 0
    %5055 = vmatpush1.bf16.msra.mxu0 0
    %5056 = vmatprep.subr.bf16.mxu0 0
    %5057 = vmatpush1.bf16.msra.mxu0 0
    %5058 = vmatprep.subr.bf16.mxu0 0
    %5059 = vmatpush1.bf16.msra.mxu0 0
    %5060 = vmatprep.subr.bf16.mxu0 0
    %5061 = vmatpush1.bf16.msra.mxu0 0
    %5062 = vmatprep.subr.bf16.mxu0 0
    %5063 = vmatpush1.bf16.msra.mxu0 0
    %5064 = vmatprep.subr.bf16.mxu0 0
    %5065 = vmatpush1.bf16.msra.mxu0 0
    %5066 = vmatprep.mubr.bf16.mxu0 0
    %5067 = vmatmul.mubr.bf16.gmra.mrb[0].mxu0 %v5032
    %v5068 = vpop.f32.mrb[0].mxu0
    %v5069 = vadd.f32 0.0, %v5068
    %v5070 = vpop.f32.mrb[0].mxu0
    %v5071 = vpop.f32.mrb[0].mxu0
    %v5072 = vpop.f32.mrb[0].mxu0
    %5073 = vdwg.mxu0
    %s5074 = scalar_lea.vmem [#allocation2], 30
    %v5075 = vld [vmem:[%s5074] ss:$144 sm:$0x3]
    %v5076 = vpack.c.bf16 %v5075, %v5075
    %s5077 = scalar_lea.vmem %s3, 64
    %v5078 = vld [vmem:[%s5077] sm:$0xf]
    %v5079 = vld [vmem:[%s5077 + $0x4] sm:$0xf]
    %s5080 = scalar_lea.vmem [#allocation2], 32
    %v5081 = vld [vmem:[%s5080] ss:$144 sm:$0x3]
    %v5082 = vpack.c.bf16 %v5081, %v5081
    %s5083 = scalar_lea.vmem %s3, 72
    %v5084 = vld [vmem:[%s5083] sm:$0xf]
    %v5085 = vld [vmem:[%s5083 + $0x4] sm:$0xf]
    %v5088 = vunpack.c.l.b16 %v5084
    %v5089 = vunpack.c.l.b16 %v5085
    %v5090 = vpack.c.b16 %v5089, %v5088
    %v5093 = vsel %vm4795, %v5082, 0
    %5095 = vmatprep.subr.bf16.mxu0 0
    %5096 = vmatpush1.bf16.msra.mxu0 %v5090
    %5097 = vmatprep.subr.bf16.mxu0 0
    %5098 = vmatpush1.bf16.msra.mxu0 0
    %5099 = vmatprep.subr.bf16.mxu0 0
    %5100 = vmatpush1.bf16.msra.mxu0 0
    %5101 = vmatprep.subr.bf16.mxu0 0
    %5102 = vmatpush1.bf16.msra.mxu0 0
    %5103 = vmatprep.subr.bf16.mxu0 0
    %5104 = vmatpush1.bf16.msra.mxu0 0
    %5105 = vmatprep.subr.bf16.mxu0 0
    %5106 = vmatpush1.bf16.msra.mxu0 0
    %5107 = vmatprep.subr.bf16.mxu0 0
    %5108 = vmatpush1.bf16.msra.mxu0 0
    %5109 = vmatprep.subr.bf16.mxu0 0
    %5110 = vmatpush1.bf16.msra.mxu0 0
    %5111 = vmatprep.subr.bf16.mxu0 0
    %5112 = vmatpush1.bf16.msra.mxu0 0
    %5113 = vmatprep.subr.bf16.mxu0 0
    %5114 = vmatpush1.bf16.msra.mxu0 0
    %5115 = vmatprep.subr.bf16.mxu0 0
    %5116 = vmatpush1.bf16.msra.mxu0 0
    %5117 = vmatprep.subr.bf16.mxu0 0
    %5118 = vmatpush1.bf16.msra.mxu0 0
    %5119 = vmatprep.subr.bf16.mxu0 0
    %5120 = vmatpush1.bf16.msra.mxu0 0
    %5121 = vmatprep.subr.bf16.mxu0 0
    %5122 = vmatpush1.bf16.msra.mxu0 0
    %5123 = vmatprep.subr.bf16.mxu0 0
    %5124 = vmatpush1.bf16.msra.mxu0 0
    %5125 = vmatprep.subr.bf16.mxu0 0
    %5126 = vmatpush1.bf16.msra.mxu0 0
    %5127 = vmatprep.mubr.bf16.mxu0 0
    %5128 = vmatmul.mubr.bf16.gmra.mrb[0].mxu0 %v5093
    %v5129 = vpop.f32.mrb[0].mxu0
    %v5130 = vadd.f32 0.0, %v5129
    %v5131 = vpop.f32.mrb[0].mxu0
    %v5132 = vpop.f32.mrb[0].mxu0
    %v5133 = vpop.f32.mrb[0].mxu0
    %5134 = vdwg.mxu0
    %s5135 = scalar_lea.vmem [#allocation2], 48
    %v5136 = vld [vmem:[%s5135] ss:$144 sm:$0x3]
    %v5137 = vpack.c.bf16 %v5136, %v5136
    %s5138 = scalar_lea.vmem %s3, 80
    %v5139 = vld [vmem:[%s5138] sm:$0xf]
    %v5140 = vld [vmem:[%s5138 + $0x4] sm:$0xf]
    %s5141 = scalar_lea.vmem [#allocation2], 50
    %v5142 = vld [vmem:[%s5141] ss:$144 sm:$0x3]
    %v5143 = vpack.c.bf16 %v5142, %v5142
    %s5144 = scalar_lea.vmem %s3, 88
    %v5145 = vld [vmem:[%s5144] sm:$0xf]
    %v5146 = vld [vmem:[%s5144 + $0x4] sm:$0xf]
    %v5149 = vunpack.c.l.b16 %v5145
    %v5150 = vunpack.c.l.b16 %v5146
    %v5151 = vpack.c.b16 %v5150, %v5149
    %v5154 = vsel %vm4795, %v5143, 0
    %5156 = vmatprep.subr.bf16.mxu0 0
    %5157 = vmatpush1.bf16.msra.mxu0 %v5151
    %5158 = vmatprep.subr.bf16.mxu0 0
    %5159 = vmatpush1.bf16.msra.mxu0 0
    %5160 = vmatprep.subr.bf16.mxu0 0
    %5161 = vmatpush1.bf16.msra.mxu0 0
    %5162 = vmatprep.subr.bf16.mxu0 0
    %5163 = vmatpush1.bf16.msra.mxu0 0
    %5164 = vmatprep.subr.bf16.mxu0 0
    %5165 = vmatpush1.bf16.msra.mxu0 0
    %5166 = vmatprep.subr.bf16.mxu0 0
    %5167 = vmatpush1.bf16.msra.mxu0 0
    %5168 = vmatprep.subr.bf16.mxu0 0
    %5169 = vmatpush1.bf16.msra.mxu0 0
    %5170 = vmatprep.subr.bf16.mxu0 0
    %5171 = vmatpush1.bf16.msra.mxu0 0
    %5172 = vmatprep.subr.bf16.mxu0 0
    %5173 = vmatpush1.bf16.msra.mxu0 0
    %5174 = vmatprep.subr.bf16.mxu0 0
    %5175 = vmatpush1.bf16.msra.mxu0 0
    %5176 = vmatprep.subr.bf16.mxu0 0
    %5177 = vmatpush1.bf16.msra.mxu0 0
    %5178 = vmatprep.subr.bf16.mxu0 0
    %5179 = vmatpush1.bf16.msra.mxu0 0
    %5180 = vmatprep.subr.bf16.mxu0 0
    %5181 = vmatpush1.bf16.msra.mxu0 0
    %5182 = vmatprep.subr.bf16.mxu0 0
    %5183 = vmatpush1.bf16.msra.mxu0 0
    %5184 = vmatprep.subr.bf16.mxu0 0
    %5185 = vmatpush1.bf16.msra.mxu0 0
    %5186 = vmatprep.subr.bf16.mxu0 0
    %5187 = vmatpush1.bf16.msra.mxu0 0
    %5188 = vmatprep.mubr.bf16.mxu0 0
    %5189 = vmatmul.mubr.bf16.gmra.mrb[0].mxu0 %v5154
    %v5190 = vpop.f32.mrb[0].mxu0
    %v5191 = vadd.f32 0.0, %v5190
    %v5192 = vpop.f32.mrb[0].mxu0
    %v5193 = vpop.f32.mrb[0].mxu0
    %v5194 = vpop.f32.mrb[0].mxu0
    %5195 = vdwg.mxu0
    %s5196 = scalar_lea.vmem [#allocation2], 52
    %v5197 = vld [vmem:[%s5196] ss:$144 sm:$0x3]
    %v5198 = vpack.c.bf16 %v5197, %v5197
    %s5199 = scalar_lea.vmem %s3, 96
    %v5200 = vld [vmem:[%s5199] sm:$0xf]
    %v5201 = vld [vmem:[%s5199 + $0x4] sm:$0xf]
    %s5202 = scalar_lea.vmem [#allocation2], 54
    %v5203 = vld [vmem:[%s5202] ss:$144 sm:$0x3]
    %v5204 = vpack.c.bf16 %v5203, %v5203
    %s5205 = scalar_lea.vmem %s3, 104
    %v5206 = vld [vmem:[%s5205] sm:$0xf]
    %v5207 = vld [vmem:[%s5205 + $0x4] sm:$0xf]
    %v5210 = vunpack.c.l.b16 %v5206
    %v5211 = vunpack.c.l.b16 %v5207
    %v5212 = vpack.c.b16 %v5211, %v5210
    %v5215 = vsel %vm4795, %v5204, 0
    %5217 = vmatprep.subr.bf16.mxu0 0
    %5218 = vmatpush1.bf16.msra.mxu0 %v5212
    %5219 = vmatprep.subr.bf16.mxu0 0
    %5220 = vmatpush1.bf16.msra.mxu0 0
    %5221 = vmatprep.subr.bf16.mxu0 0
    %5222 = vmatpush1.bf16.msra.mxu0 0
    %5223 = vmatprep.subr.bf16.mxu0 0
    %5224 = vmatpush1.bf16.msra.mxu0 0
    %5225 = vmatprep.subr.bf16.mxu0 0
    %5226 = vmatpush1.bf16.msra.mxu0 0
    %5227 = vmatprep.subr.bf16.mxu0 0
    %5228 = vmatpush1.bf16.msra.mxu0 0
    %5229 = vmatprep.subr.bf16.mxu0 0
    %5230 = vmatpush1.bf16.msra.mxu0 0
    %5231 = vmatprep.subr.bf16.mxu0 0
    %5232 = vmatpush1.bf16.msra.mxu0 0
    %5233 = vmatprep.subr.bf16.mxu0 0
    %5234 = vmatpush1.bf16.msra.mxu0 0
    %5235 = vmatprep.subr.bf16.mxu0 0
    %5236 = vmatpush1.bf16.msra.mxu0 0
    %5237 = vmatprep.subr.bf16.mxu0 0
    %5238 = vmatpush1.bf16.msra.mxu0 0
    %5239 = vmatprep.subr.bf16.mxu0 0
    %5240 = vmatpush1.bf16.msra.mxu0 0
    %5241 = vmatprep.subr.bf16.mxu0 0
    %5242 = vmatpush1.bf16.msra.mxu0 0
    %5243 = vmatprep.subr.bf16.mxu0 0
    %5244 = vmatpush1.bf16.msra.mxu0 0
    %5245 = vmatprep.subr.bf16.mxu0 0
    %5246 = vmatpush1.bf16.msra.mxu0 0
    %5247 = vmatprep.subr.bf16.mxu0 0
    %5248 = vmatpush1.bf16.msra.mxu0 0
    %5249 = vmatprep.mubr.bf16.mxu0 0
    %5250 = vmatmul.mubr.bf16.gmra.mrb[0].mxu0 %v5215
    %v5251 = vpop.f32.mrb[0].mxu0
    %v5252 = vadd.f32 0.0, %v5251
    %v5253 = vpop.f32.mrb[0].mxu0
    %v5254 = vpop.f32.mrb[0].mxu0
    %v5255 = vpop.f32.mrb[0].mxu0
    %5256 = vdwg.mxu0
    %s5257 = scalar_lea.vmem [#allocation2], 56
    %v5258 = vld [vmem:[%s5257] ss:$144 sm:$0x3]
    %v5259 = vpack.c.bf16 %v5258, %v5258
    %s5260 = scalar_lea.vmem %s3, 112
    %v5261 = vld [vmem:[%s5260] sm:$0xf]
    %v5262 = vld [vmem:[%s5260 + $0x4] sm:$0xf]
    %s5263 = scalar_lea.vmem [#allocation2], 72
    %v5264 = vld [vmem:[%s5263] ss:$144 sm:$0x3]
    %v5265 = vpack.c.bf16 %v5264, %v5264
    %s5266 = scalar_lea.vmem %s3, 120
    %v5267 = vld [vmem:[%s5266] sm:$0xf]
    %v5268 = vld [vmem:[%s5266 + $0x4] sm:$0xf]
    %v5271 = vunpack.c.l.b16 %v5267
    %v5272 = vunpack.c.l.b16 %v5268
    %v5273 = vpack.c.b16 %v5272, %v5271
    %v5276 = vsel %vm4795, %v5265, 0
    %5278 = vmatprep.subr.bf16.mxu0 0
    %5279 = vmatpush1.bf16.msra.mxu0 %v5273
    %5280 = vmatprep.subr.bf16.mxu0 0
    %5281 = vmatpush1.bf16.msra.mxu0 0
    %5282 = vmatprep.subr.bf16.mxu0 0
    %5283 = vmatpush1.bf16.msra.mxu0 0
    %5284 = vmatprep.subr.bf16.mxu0 0
    %5285 = vmatpush1.bf16.msra.mxu0 0
    %5286 = vmatprep.subr.bf16.mxu0 0
    %5287 = vmatpush1.bf16.msra.mxu0 0
    %5288 = vmatprep.subr.bf16.mxu0 0
    %5289 = vmatpush1.bf16.msra.mxu0 0
    %5290 = vmatprep.subr.bf16.mxu0 0
    %5291 = vmatpush1.bf16.msra.mxu0 0
    %5292 = vmatprep.subr.bf16.mxu0 0
    %5293 = vmatpush1.bf16.msra.mxu0 0
    %5294 = vmatprep.subr.bf16.mxu0 0
    %5295 = vmatpush1.bf16.msra.mxu0 0
    %5296 = vmatprep.subr.bf16.mxu0 0
    %5297 = vmatpush1.bf16.msra.mxu0 0
    %5298 = vmatprep.subr.bf16.mxu0 0
    %5299 = vmatpush1.bf16.msra.mxu0 0
    %5300 = vmatprep.subr.bf16.mxu0 0
    %5301 = vmatpush1.bf16.msra.mxu0 0
    %5302 = vmatprep.subr.bf16.mxu0 0
    %5303 = vmatpush1.bf16.msra.mxu0 0
    %5304 = vmatprep.subr.bf16.mxu0 0
    %5305 = vmatpush1.bf16.msra.mxu0 0
    %5306 = vmatprep.subr.bf16.mxu0 0
    %5307 = vmatpush1.bf16.msra.mxu0 0
    %5308 = vmatprep.subr.bf16.mxu0 0
    %5309 = vmatpush1.bf16.msra.mxu0 0
    %5310 = vmatprep.mubr.bf16.mxu0 0
    %5311 = vmatmul.mubr.bf16.gmra.mrb[0].mxu0 %v5276
    %v5312 = vpop.f32.mrb[0].mxu0
    %v5313 = vadd.f32 0.0, %v5312
    %v5314 = vpop.f32.mrb[0].mxu0
    %v5315 = vpop.f32.mrb[0].mxu0
    %v5316 = vpop.f32.mrb[0].mxu0
    %5317 = vdwg.mxu0
    %s5318 = scalar_lea.vmem [#allocation2], 74
    %v5319 = vld [vmem:[%s5318] ss:$144 sm:$0x3]
    %v5320 = vpack.c.bf16 %v5319, %v5319
    %s5321 = scalar_lea.vmem %s3, 128
    %v5322 = vld [vmem:[%s5321] sm:$0xf]
    %v5323 = vld [vmem:[%s5321 + $0x4] sm:$0xf]
    %s5324 = scalar_lea.vmem [#allocation2], 76
    %v5325 = vld [vmem:[%s5324] ss:$144 sm:$0x3]
    %v5326 = vpack.c.bf16 %v5325, %v5325
    %s5327 = scalar_lea.vmem %s3, 136
    %v5328 = vld [vmem:[%s5327] sm:$0xf]
    %v5329 = vld [vmem:[%s5327 + $0x4] sm:$0xf]
    %v5332 = vunpack.c.l.b16 %v5328
    %v5333 = vunpack.c.l.b16 %v5329
    %v5334 = vpack.c.b16 %v5333, %v5332
    %v5337 = vsel %vm4795, %v5326, 0
    %5339 = vmatprep.subr.bf16.mxu0 0
    %5340 = vmatpush1.bf16.msra.mxu0 %v5334
    %5341 = vmatprep.subr.bf16.mxu0 0
    %5342 = vmatpush1.bf16.msra.mxu0 0
    %5343 = vmatprep.subr.bf16.mxu0 0
    %5344 = vmatpush1.bf16.msra.mxu0 0
    %5345 = vmatprep.subr.bf16.mxu0 0
    %5346 = vmatpush1.bf16.msra.mxu0 0
    %5347 = vmatprep.subr.bf16.mxu0 0
    %5348 = vmatpush1.bf16.msra.mxu0 0
    %5349 = vmatprep.subr.bf16.mxu0 0
    %5350 = vmatpush1.bf16.msra.mxu0 0
    %5351 = vmatprep.subr.bf16.mxu0 0
    %5352 = vmatpush1.bf16.msra.mxu0 0
    %5353 = vmatprep.subr.bf16.mxu0 0
    %5354 = vmatpush1.bf16.msra.mxu0 0
    %5355 = vmatprep.subr.bf16.mxu0 0
    %5356 = vmatpush1.bf16.msra.mxu0 0
    %5357 = vmatprep.subr.bf16.mxu0 0
    %5358 = vmatpush1.bf16.msra.mxu0 0
    %5359 = vmatprep.subr.bf16.mxu0 0
    %5360 = vmatpush1.bf16.msra.mxu0 0
    %5361 = vmatprep.subr.bf16.mxu0 0
    %5362 = vmatpush1.bf16.msra.mxu0 0
    %5363 = vmatprep.subr.bf16.mxu0 0
    %5364 = vmatpush1.bf16.msra.mxu0 0
    %5365 = vmatprep.subr.bf16.mxu0 0
    %5366 = vmatpush1.bf16.msra.mxu0 0
    %5367 = vmatprep.subr.bf16.mxu0 0
    %5368 = vmatpush1.bf16.msra.mxu0 0
    %5369 = vmatprep.subr.bf16.mxu0 0
    %5370 = vmatpush1.bf16.msra.mxu0 0
    %5371 = vmatprep.mubr.bf16.mxu0 0
    %5372 = vmatmul.mubr.bf16.gmra.mrb[0].mxu0 %v5337
    %v5373 = vpop.f32.mrb[0].mxu0
    %v5374 = vadd.f32 0.0, %v5373
    %v5375 = vpop.f32.mrb[0].mxu0
    %v5376 = vpop.f32.mrb[0].mxu0
    %v5377 = vpop.f32.mrb[0].mxu0
    %5378 = vdwg.mxu0
    %s5379 = scalar_lea.vmem [#allocation2], 78
    %v5380 = vld [vmem:[%s5379] ss:$144 sm:$0x3]
    %v5381 = vpack.c.bf16 %v5380, %v5380
    %s5382 = scalar_lea.vmem %s3, 144
    %v5383 = vld [vmem:[%s5382] sm:$0xf]
    %v5384 = vld [vmem:[%s5382 + $0x4] sm:$0xf]
    %s5385 = scalar_lea.vmem [#allocation2], 80
    %v5386 = vld [vmem:[%s5385] ss:$144 sm:$0x3]
    %v5387 = vpack.c.bf16 %v5386, %v5386
    %s5388 = scalar_lea.vmem %s3, 152
    %v5389 = vld [vmem:[%s5388] sm:$0xf]
    %v5390 = vld [vmem:[%s5388 + $0x4] sm:$0xf]
    %v5393 = vunpack.c.l.b16 %v5389
    %v5394 = vunpack.c.l.b16 %v5390
    %v5395 = vpack.c.b16 %v5394, %v5393
    %v5398 = vsel %vm4795, %v5387, 0
    %5400 = vmatprep.subr.bf16.mxu0 0
    %5401 = vmatpush1.bf16.msra.mxu0 %v5395
    %5402 = vmatprep.subr.bf16.mxu0 0
    %5403 = vmatpush1.bf16.msra.mxu0 0
    %5404 = vmatprep.subr.bf16.mxu0 0
    %5405 = vmatpush1.bf16.msra.mxu0 0
    %5406 = vmatprep.subr.bf16.mxu0 0
    %5407 = vmatpush1.bf16.msra.mxu0 0
    %5408 = vmatprep.subr.bf16.mxu0 0
    %5409 = vmatpush1.bf16.msra.mxu0 0
    %5410 = vmatprep.subr.bf16.mxu0 0
    %5411 = vmatpush1.bf16.msra.mxu0 0
    %5412 = vmatprep.subr.bf16.mxu0 0
    %5413 = vmatpush1.bf16.msra.mxu0 0
    %5414 = vmatprep.subr.bf16.mxu0 0
    %5415 = vmatpush1.bf16.msra.mxu0 0
    %5416 = vmatprep.subr.bf16.mxu0 0
    %5417 = vmatpush1.bf16.msra.mxu0 0
    %5418 = vmatprep.subr.bf16.mxu0 0
    %5419 = vmatpush1.bf16.msra.mxu0 0
    %5420 = vmatprep.subr.bf16.mxu0 0
    %5421 = vmatpush1.bf16.msra.mxu0 0
    %5422 = vmatprep.subr.bf16.mxu0 0
    %5423 = vmatpush1.bf16.msra.mxu0 0
    %5424 = vmatprep.subr.bf16.mxu0 0
    %5425 = vmatpush1.bf16.msra.mxu0 0
    %5426 = vmatprep.subr.bf16.mxu0 0
    %5427 = vmatpush1.bf16.msra.mxu0 0
    %5428 = vmatprep.subr.bf16.mxu0 0
    %5429 = vmatpush1.bf16.msra.mxu0 0
    %5430 = vmatprep.subr.bf16.mxu0 0
    %5431 = vmatpush1.bf16.msra.mxu0 0
    %5432 = vmatprep.mubr.bf16.mxu0 0
    %5433 = vmatmul.mubr.bf16.gmra.mrb[0].mxu0 %v5398
    %v5434 = vpop.f32.mrb[0].mxu0
    %v5435 = vadd.f32 0.0, %v5434
    %v5436 = vpop.f32.mrb[0].mxu0
    %v5437 = vpop.f32.mrb[0].mxu0
    %v5438 = vpop.f32.mrb[0].mxu0
    %5439 = vdwg.mxu0
    %s5440 = scalar_lea.vmem [#allocation2], 96
    %v5441 = vld [vmem:[%s5440] ss:$144 sm:$0x3]
    %v5442 = vpack.c.bf16 %v5441, %v5441
    %s5443 = scalar_lea.vmem %s3, 160
    %v5444 = vld [vmem:[%s5443] sm:$0xf]
    %v5445 = vld [vmem:[%s5443 + $0x4] sm:$0xf]
    %s5446 = scalar_lea.vmem [#allocation2], 98
    %v5447 = vld [vmem:[%s5446] ss:$144 sm:$0x3]
    %v5448 = vpack.c.bf16 %v5447, %v5447
    %s5449 = scalar_lea.vmem %s3, 168
    %v5450 = vld [vmem:[%s5449] sm:$0xf]
    %v5451 = vld [vmem:[%s5449 + $0x4] sm:$0xf]
    %v5454 = vunpack.c.l.b16 %v5450
    %v5455 = vunpack.c.l.b16 %v5451
    %v5456 = vpack.c.b16 %v5455, %v5454
    %v5459 = vsel %vm4795, %v5448, 0
    %5461 = vmatprep.subr.bf16.mxu0 0
    %5462 = vmatpush1.bf16.msra.mxu0 %v5456
    %5463 = vmatprep.subr.bf16.mxu0 0
    %5464 = vmatpush1.bf16.msra.mxu0 0
    %5465 = vmatprep.subr.bf16.mxu0 0
    %5466 = vmatpush1.bf16.msra.mxu0 0
    %5467 = vmatprep.subr.bf16.mxu0 0
    %5468 = vmatpush1.bf16.msra.mxu0 0
    %5469 = vmatprep.subr.bf16.mxu0 0
    %5470 = vmatpush1.bf16.msra.mxu0 0
    %5471 = vmatprep.subr.bf16.mxu0 0
    %5472 = vmatpush1.bf16.msra.mxu0 0
    %5473 = vmatprep.subr.bf16.mxu0 0
    %5474 = vmatpush1.bf16.msra.mxu0 0
    %5475 = vmatprep.subr.bf16.mxu0 0
    %5476 = vmatpush1.bf16.msra.mxu0 0
    %5477 = vmatprep.subr.bf16.mxu0 0
    %5478 = vmatpush1.bf16.msra.mxu0 0
    %5479 = vmatprep.subr.bf16.mxu0 0
    %5480 = vmatpush1.bf16.msra.mxu0 0
    %5481 = vmatprep.subr.bf16.mxu0 0
    %5482 = vmatpush1.bf16.msra.mxu0 0
    %5483 = vmatprep.subr.bf16.mxu0 0
    %5484 = vmatpush1.bf16.msra.mxu0 0
    %5485 = vmatprep.subr.bf16.mxu0 0
    %5486 = vmatpush1.bf16.msra.mxu0 0
    %5487 = vmatprep.subr.bf16.mxu0 0
    %5488 = vmatpush1.bf16.msra.mxu0 0
    %5489 = vmatprep.subr.bf16.mxu0 0
    %5490 = vmatpush1.bf16.msra.mxu0 0
    %5491 = vmatprep.subr.bf16.mxu0 0
    %5492 = vmatpush1.bf16.msra.mxu0 0
    %5493 = vmatprep.mubr.bf16.mxu0 0
    %5494 = vmatmul.mubr.bf16.gmra.mrb[0].mxu0 %v5459
    %v5495 = vpop.f32.mrb[0].mxu0
    %v5496 = vadd.f32 0.0, %v5495
    %v5497 = vpop.f32.mrb[0].mxu0
    %v5498 = vpop.f32.mrb[0].mxu0
    %v5499 = vpop.f32.mrb[0].mxu0
    %5500 = vdwg.mxu0
    %s5501 = scalar_lea.vmem [#allocation2], 100
    %v5502 = vld [vmem:[%s5501] ss:$144 sm:$0x3]
    %v5503 = vpack.c.bf16 %v5502, %v5502
    %s5504 = scalar_lea.vmem %s3, 176
    %v5505 = vld [vmem:[%s5504] sm:$0xf]
    %v5506 = vld [vmem:[%s5504 + $0x4] sm:$0xf]
    %s5507 = scalar_lea.vmem [#allocation2], 102
    %v5508 = vld [vmem:[%s5507] ss:$144 sm:$0x3]
    %v5509 = vpack.c.bf16 %v5508, %v5508
    %s5510 = scalar_lea.vmem %s3, 184
    %v5511 = vld [vmem:[%s5510] sm:$0xf]
    %v5512 = vld [vmem:[%s5510 + $0x4] sm:$0xf]
    %v5515 = vunpack.c.l.b16 %v5511
    %v5516 = vunpack.c.l.b16 %v5512
    %v5517 = vpack.c.b16 %v5516, %v5515
    %v5520 = vsel %vm4795, %v5509, 0
    %5522 = vmatprep.subr.bf16.mxu0 0
    %5523 = vmatpush1.bf16.msra.mxu0 %v5517
    %5524 = vmatprep.subr.bf16.mxu0 0
    %5525 = vmatpush1.bf16.msra.mxu0 0
    %5526 = vmatprep.subr.bf16.mxu0 0
    %5527 = vmatpush1.bf16.msra.mxu0 0
    %5528 = vmatprep.subr.bf16.mxu0 0
    %5529 = vmatpush1.bf16.msra.mxu0 0
    %5530 = vmatprep.subr.bf16.mxu0 0
    %5531 = vmatpush1.bf16.msra.mxu0 0
    %5532 = vmatprep.subr.bf16.mxu0 0
    %5533 = vmatpush1.bf16.msra.mxu0 0
    %5534 = vmatprep.subr.bf16.mxu0 0
    %5535 = vmatpush1.bf16.msra.mxu0 0
    %5536 = vmatprep.subr.bf16.mxu0 0
    %5537 = vmatpush1.bf16.msra.mxu0 0
    %5538 = vmatprep.subr.bf16.mxu0 0
    %5539 = vmatpush1.bf16.msra.mxu0 0
    %5540 = vmatprep.subr.bf16.mxu0 0
    %5541 = vmatpush1.bf16.msra.mxu0 0
    %5542 = vmatprep.subr.bf16.mxu0 0
    %5543 = vmatpush1.bf16.msra.mxu0 0
    %5544 = vmatprep.subr.bf16.mxu0 0
    %5545 = vmatpush1.bf16.msra.mxu0 0
    %5546 = vmatprep.subr.bf16.mxu0 0
    %5547 = vmatpush1.bf16.msra.mxu0 0
    %5548 = vmatprep.subr.bf16.mxu0 0
    %5549 = vmatpush1.bf16.msra.mxu0 0
    %5550 = vmatprep.subr.bf16.mxu0 0
    %5551 = vmatpush1.bf16.msra.mxu0 0
    %5552 = vmatprep.subr.bf16.mxu0 0
    %5553 = vmatpush1.bf16.msra.mxu0 0
    %5554 = vmatprep.mubr.bf16.mxu0 0
    %5555 = vmatmul.mubr.bf16.gmra.mrb[0].mxu0 %v5520
    %v5556 = vpop.f32.mrb[0].mxu0
    %v5557 = vadd.f32 0.0, %v5556
    %v5558 = vpop.f32.mrb[0].mxu0
    %v5559 = vpop.f32.mrb[0].mxu0
    %v5560 = vpop.f32.mrb[0].mxu0
    %5561 = vdwg.mxu0
    %s5562 = scalar_lea.vmem [#allocation2], 104
    %v5563 = vld [vmem:[%s5562] ss:$144 sm:$0x3]
    %v5564 = vpack.c.bf16 %v5563, %v5563
    %s5565 = scalar_lea.vmem %s3, 192
    %v5566 = vld [vmem:[%s5565] sm:$0xf]
    %v5567 = vld [vmem:[%s5565 + $0x4] sm:$0xf]
    %v5570 = vunpack.c.l.b16 %v5566
    %v5571 = vunpack.c.l.b16 %v5567
    %v5572 = vpack.c.b16 %v5571, %v5570
    %v5575 = vsel %vm4795, %v5564, 0
    %5577 = vmatprep.subr.bf16.mxu0 0
    %5578 = vmatpush1.bf16.msra.mxu0 %v5572
    %5579 = vmatprep.subr.bf16.mxu0 0
    %5580 = vmatpush1.bf16.msra.mxu0 0
    %5581 = vmatprep.subr.bf16.mxu0 0
    %5582 = vmatpush1.bf16.msra.mxu0 0
    %5583 = vmatprep.subr.bf16.mxu0 0
    %5584 = vmatpush1.bf16.msra.mxu0 0
    %5585 = vmatprep.subr.bf16.mxu0 0
    %5586 = vmatpush1.bf16.msra.mxu0 0
    %5587 = vmatprep.subr.bf16.mxu0 0
    %5588 = vmatpush1.bf16.msra.mxu0 0
    %5589 = vmatprep.subr.bf16.mxu0 0
    %5590 = vmatpush1.bf16.msra.mxu0 0
    %5591 = vmatprep.subr.bf16.mxu0 0
    %5592 = vmatpush1.bf16.msra.mxu0 0
    %5593 = vmatprep.subr.bf16.mxu0 0
    %5594 = vmatpush1.bf16.msra.mxu0 0
    %5595 = vmatprep.subr.bf16.mxu0 0
    %5596 = vmatpush1.bf16.msra.mxu0 0
    %5597 = vmatprep.subr.bf16.mxu0 0
    %5598 = vmatpush1.bf16.msra.mxu0 0
    %5599 = vmatprep.subr.bf16.mxu0 0
    %5600 = vmatpush1.bf16.msra.mxu0 0
    %5601 = vmatprep.subr.bf16.mxu0 0
    %5602 = vmatpush1.bf16.msra.mxu0 0
    %5603 = vmatprep.subr.bf16.mxu0 0
    %5604 = vmatpush1.bf16.msra.mxu0 0
    %5605 = vmatprep.subr.bf16.mxu0 0
    %5606 = vmatpush1.bf16.msra.mxu0 0
    %5607 = vmatprep.subr.bf16.mxu0 0
    %5608 = vmatpush1.bf16.msra.mxu0 0
    %5609 = vmatprep.mubr.bf16.mxu0 0
    %5610 = vmatmul.mubr.bf16.gmra.mrb[0].mxu0 %v5575
    %v5611 = vpop.f32.mrb[0].mxu0
    %v5612 = vadd.f32 0.0, %v5611
    %v5613 = vpop.f32.mrb[0].mxu0
    %v5614 = vpop.f32.mrb[0].mxu0
    %v5615 = vpop.f32.mrb[0].mxu0
    %5616 = vdwg.mxu0
    %v5619 = vunpack.c.l.b16 %v4834
    %v5620 = vunpack.c.l.b16 %v4835
    %v5621 = vpack.c.b16 %v5620, %v5619
    %v5624 = vsel %vm4795, %v4833, 0
    %5626 = vmatprep.subr.bf16.mxu0 0
    %5627 = vmatpush1.bf16.msra.mxu0 %v5621
    %5628 = vmatprep.subr.bf16.mxu0 0
    %5629 = vmatpush1.bf16.msra.mxu0 0
    %5630 = vmatprep.subr.bf16.mxu0 0
    %5631 = vmatpush1.bf16.msra.mxu0 0
    %5632 = vmatprep.subr.bf16.mxu0 0
    %5633 = vmatpush1.bf16.msra.mxu0 0
    %5634 = vmatprep.subr.bf16.mxu0 0
    %5635 = vmatpush1.bf16.msra.mxu0 0
    %5636 = vmatprep.subr.bf16.mxu0 0
    %5637 = vmatpush1.bf16.msra.mxu0 0
    %5638 = vmatprep.subr.bf16.mxu0 0
    %5639 = vmatpush1.bf16.msra.mxu0 0
    %5640 = vmatprep.subr.bf16.mxu0 0
    %5641 = vmatpush1.bf16.msra.mxu0 0
    %5642 = vmatprep.subr.bf16.mxu0 0
    %5643 = vmatpush1.bf16.msra.mxu0 0
    %5644 = vmatprep.subr.bf16.mxu0 0
    %5645 = vmatpush1.bf16.msra.mxu0 0
    %5646 = vmatprep.subr.bf16.mxu0 0
    %5647 = vmatpush1.bf16.msra.mxu0 0
    %5648 = vmatprep.subr.bf16.mxu0 0
    %5649 = vmatpush1.bf16.msra.mxu0 0
    %5650 = vmatprep.subr.bf16.mxu0 0
    %5651 = vmatpush1.bf16.msra.mxu0 0
    %5652 = vmatprep.subr.bf16.mxu0 0
    %5653 = vmatpush1.bf16.msra.mxu0 0
    %5654 = vmatprep.subr.bf16.mxu0 0
    %5655 = vmatpush1.bf16.msra.mxu0 0
    %5656 = vmatprep.subr.bf16.mxu0 0
    %5657 = vmatpush1.bf16.msra.mxu0 0
    %5658 = vmatprep.mubr.bf16.mxu0 0
    %5659 = vmatmul.mubr.bf16.gmra.mrb[0].mxu0 %v5624
    %v5660 = vpop.f32.mrb[0].mxu0
    %v5661 = vadd.f32 %v4886, %v5660
    %v5662 = vpop.f32.mrb[0].mxu0
    %v5663 = vpop.f32.mrb[0].mxu0
    %v5664 = vpop.f32.mrb[0].mxu0
    %5665 = vdwg.mxu0
    %v5668 = vunpack.c.l.b16 %v4895
    %v5669 = vunpack.c.l.b16 %v4896
    %v5670 = vpack.c.b16 %v5669, %v5668
    %v5673 = vsel %vm4795, %v4893, 0
    %5675 = vmatprep.subr.bf16.mxu0 0
    %5676 = vmatpush1.bf16.msra.mxu0 %v5670
    %5677 = vmatprep.subr.bf16.mxu0 0
    %5678 = vmatpush1.bf16.msra.mxu0 0
    %5679 = vmatprep.subr.bf16.mxu0 0
    %5680 = vmatpush1.bf16.msra.mxu0 0
    %5681 = vmatprep.subr.bf16.mxu0 0
    %5682 = vmatpush1.bf16.msra.mxu0 0
    %5683 = vmatprep.subr.bf16.mxu0 0
    %5684 = vmatpush1.bf16.msra.mxu0 0
    %5685 = vmatprep.subr.bf16.mxu0 0
    %5686 = vmatpush1.bf16.msra.mxu0 0
    %5687 = vmatprep.subr.bf16.mxu0 0
    %5688 = vmatpush1.bf16.msra.mxu0 0
    %5689 = vmatprep.subr.bf16.mxu0 0
    %5690 = vmatpush1.bf16.msra.mxu0 0
    %5691 = vmatprep.subr.bf16.mxu0 0
    %5692 = vmatpush1.bf16.msra.mxu0 0
    %5693 = vmatprep.subr.bf16.mxu0 0
    %5694 = vmatpush1.bf16.msra.mxu0 0
    %5695 = vmatprep.subr.bf16.mxu0 0
    %5696 = vmatpush1.bf16.msra.mxu0 0
    %5697 = vmatprep.subr.bf16.mxu0 0
    %5698 = vmatpush1.bf16.msra.mxu0 0
    %5699 = vmatprep.subr.bf16.mxu0 0
    %5700 = vmatpush1.bf16.msra.mxu0 0
    %5701 = vmatprep.subr.bf16.mxu0 0
    %5702 = vmatpush1.bf16.msra.mxu0 0
    %5703 = vmatprep.subr.bf16.mxu0 0
    %5704 = vmatpush1.bf16.msra.mxu0 0
    %5705 = vmatprep.subr.bf16.mxu0 0
    %5706 = vmatpush1.bf16.msra.mxu0 0
    %5707 = vmatprep.mubr.bf16.mxu0 0
    %5708 = vmatmul.mubr.bf16.gmra.mrb[0].mxu0 %v5673
    %v5709 = vpop.f32.mrb[0].mxu0
    %v5710 = vadd.f32 %v4947, %v5709
    %v5711 = vpop.f32.mrb[0].mxu0
    %v5712 = vpop.f32.mrb[0].mxu0
    %v5713 = vpop.f32.mrb[0].mxu0
    %5714 = vdwg.mxu0
    %v5717 = vunpack.c.l.b16 %v4956
    %v5718 = vunpack.c.l.b16 %v4957
    %v5719 = vpack.c.b16 %v5718, %v5717
    %v5722 = vsel %vm4795, %v4954, 0
    %5724 = vmatprep.subr.bf16.mxu0 0
    %5725 = vmatpush1.bf16.msra.mxu0 %v5719
    %5726 = vmatprep.subr.bf16.mxu0 0
    %5727 = vmatpush1.bf16.msra.mxu0 0
    %5728 = vmatprep.subr.bf16.mxu0 0
    %5729 = vmatpush1.bf16.msra.mxu0 0
    %5730 = vmatprep.subr.bf16.mxu0 0
    %5731 = vmatpush1.bf16.msra.mxu0 0
    %5732 = vmatprep.subr.bf16.mxu0 0
    %5733 = vmatpush1.bf16.msra.mxu0 0
    %5734 = vmatprep.subr.bf16.mxu0 0
    %5735 = vmatpush1.bf16.msra.mxu0 0
    %5736 = vmatprep.subr.bf16.mxu0 0
    %5737 = vmatpush1.bf16.msra.mxu0 0
    %5738 = vmatprep.subr.bf16.mxu0 0
    %5739 = vmatpush1.bf16.msra.mxu0 0
    %5740 = vmatprep.subr.bf16.mxu0 0
    %5741 = vmatpush1.bf16.msra.mxu0 0
    %5742 = vmatprep.subr.bf16.mxu0 0
    %5743 = vmatpush1.bf16.msra.mxu0 0
    %5744 = vmatprep.subr.bf16.mxu0 0
    %5745 = vmatpush1.bf16.msra.mxu0 0
    %5746 = vmatprep.subr.bf16.mxu0 0
    %5747 = vmatpush1.bf16.msra.mxu0 0
    %5748 = vmatprep.subr.bf16.mxu0 0
    %5749 = vmatpush1.bf16.msra.mxu0 0
    %5750 = vmatprep.subr.bf16.mxu0 0
    %5751 = vmatpush1.bf16.msra.mxu0 0
    %5752 = vmatprep.subr.bf16.mxu0 0
    %5753 = vmatpush1.bf16.msra.mxu0 0
    %5754 = vmatprep.subr.bf16.mxu0 0
    %5755 = vmatpush1.bf16.msra.mxu0 0
    %5756 = vmatprep.mubr.bf16.mxu0 0
    %5757 = vmatmul.mubr.bf16.gmra.mrb[0].mxu0 %v5722
    %v5758 = vpop.f32.mrb[0].mxu0
    %v5759 = vadd.f32 %v5008, %v5758
    %v5760 = vpop.f32.mrb[0].mxu0
    %v5761 = vpop.f32.mrb[0].mxu0
    %v5762 = vpop.f32.mrb[0].mxu0
    %5763 = vdwg.mxu0
    %v5766 = vunpack.c.l.b16 %v5017
    %v5767 = vunpack.c.l.b16 %v5018
    %v5768 = vpack.c.b16 %v5767, %v5766
    %v5771 = vsel %vm4795, %v5015, 0
    %5773 = vmatprep.subr.bf16.mxu0 0
    %5774 = vmatpush1.bf16.msra.mxu0 %v5768
    %5775 = vmatprep.subr.bf16.mxu0 0
    %5776 = vmatpush1.bf16.msra.mxu0 0
    %5777 = vmatprep.subr.bf16.mxu0 0
    %5778 = vmatpush1.bf16.msra.mxu0 0
    %5779 = vmatprep.subr.bf16.mxu0 0
    %5780 = vmatpush1.bf16.msra.mxu0 0
    %5781 = vmatprep.subr.bf16.mxu0 0
    %5782 = vmatpush1.bf16.msra.mxu0 0
    %5783 = vmatprep.subr.bf16.mxu0 0
    %5784 = vmatpush1.bf16.msra.mxu0 0
    %5785 = vmatprep.subr.bf16.mxu0 0
    %5786 = vmatpush1.bf16.msra.mxu0 0
    %5787 = vmatprep.subr.bf16.mxu0 0
    %5788 = vmatpush1.bf16.msra.mxu0 0
    %5789 = vmatprep.subr.bf16.mxu0 0
    %5790 = vmatpush1.bf16.msra.mxu0 0
    %5791 = vmatprep.subr.bf16.mxu0 0
    %5792 = vmatpush1.bf16.msra.mxu0 0
    %5793 = vmatprep.subr.bf16.mxu0 0
    %5794 = vmatpush1.bf16.msra.mxu0 0
    %5795 = vmatprep.subr.bf16.mxu0 0
    %5796 = vmatpush1.bf16.msra.mxu0 0
    %5797 = vmatprep.subr.bf16.mxu0 0
    %5798 = vmatpush1.bf16.msra.mxu0 0
    %5799 = vmatprep.subr.bf16.mxu0 0
    %5800 = vmatpush1.bf16.msra.mxu0 0
    %5801 = vmatprep.subr.bf16.mxu0 0
    %5802 = vmatpush1.bf16.msra.mxu0 0
    %5803 = vmatprep.subr.bf16.mxu0 0
    %5804 = vmatpush1.bf16.msra.mxu0 0
    %5805 = vmatprep.mubr.bf16.mxu0 0
    %5806 = vmatmul.mubr.bf16.gmra.mrb[0].mxu0 %v5771
    %v5807 = vpop.f32.mrb[0].mxu0
    %v5808 = vadd.f32 %v5069, %v5807
    %v5809 = vpop.f32.mrb[0].mxu0
    %v5810 = vpop.f32.mrb[0].mxu0
    %v5811 = vpop.f32.mrb[0].mxu0
    %5812 = vdwg.mxu0
    %v5815 = vunpack.c.l.b16 %v5078
    %v5816 = vunpack.c.l.b16 %v5079
    %v5817 = vpack.c.b16 %v5816, %v5815
    %v5820 = vsel %vm4795, %v5076, 0
    %5822 = vmatprep.subr.bf16.mxu0 0
    %5823 = vmatpush1.bf16.msra.mxu0 %v5817
    %5824 = vmatprep.subr.bf16.mxu0 0
    %5825 = vmatpush1.bf16.msra.mxu0 0
    %5826 = vmatprep.subr.bf16.mxu0 0
    %5827 = vmatpush1.bf16.msra.mxu0 0
    %5828 = vmatprep.subr.bf16.mxu0 0
    %5829 = vmatpush1.bf16.msra.mxu0 0
    %5830 = vmatprep.subr.bf16.mxu0 0
    %5831 = vmatpush1.bf16.msra.mxu0 0
    %5832 = vmatprep.subr.bf16.mxu0 0
    %5833 = vmatpush1.bf16.msra.mxu0 0
    %5834 = vmatprep.subr.bf16.mxu0 0
    %5835 = vmatpush1.bf16.msra.mxu0 0
    %5836 = vmatprep.subr.bf16.mxu0 0
    %5837 = vmatpush1.bf16.msra.mxu0 0
    %5838 = vmatprep.subr.bf16.mxu0 0
    %5839 = vmatpush1.bf16.msra.mxu0 0
    %5840 = vmatprep.subr.bf16.mxu0 0
    %5841 = vmatpush1.bf16.msra.mxu0 0
    %5842 = vmatprep.subr.bf16.mxu0 0
    %5843 = vmatpush1.bf16.msra.mxu0 0
    %5844 = vmatprep.subr.bf16.mxu0 0
    %5845 = vmatpush1.bf16.msra.mxu0 0
    %5846 = vmatprep.subr.bf16.mxu0 0
    %5847 = vmatpush1.bf16.msra.mxu0 0
    %5848 = vmatprep.subr.bf16.mxu0 0
    %5849 = vmatpush1.bf16.msra.mxu0 0
    %5850 = vmatprep.subr.bf16.mxu0 0
    %5851 = vmatpush1.bf16.msra.mxu0 0
    %5852 = vmatprep.subr.bf16.mxu0 0
    %5853 = vmatpush1.bf16.msra.mxu0 0
    %5854 = vmatprep.mubr.bf16.mxu0 0
    %5855 = vmatmul.mubr.bf16.gmra.mrb[0].mxu0 %v5820
    %v5856 = vpop.f32.mrb[0].mxu0
    %v5857 = vadd.f32 %v5130, %v5856
    %v5858 = vpop.f32.mrb[0].mxu0
    %v5859 = vpop.f32.mrb[0].mxu0
    %v5860 = vpop.f32.mrb[0].mxu0
    %5861 = vdwg.mxu0
    %v5864 = vunpack.c.l.b16 %v5139
    %v5865 = vunpack.c.l.b16 %v5140
    %v5866 = vpack.c.b16 %v5865, %v5864
    %v5869 = vsel %vm4795, %v5137, 0
    %5871 = vmatprep.subr.bf16.mxu0 0
    %5872 = vmatpush1.bf16.msra.mxu0 %v5866
    %5873 = vmatprep.subr.bf16.mxu0 0
    %5874 = vmatpush1.bf16.msra.mxu0 0
    %5875 = vmatprep.subr.bf16.mxu0 0
    %5876 = vmatpush1.bf16.msra.mxu0 0
    %5877 = vmatprep.subr.bf16.mxu0 0
    %5878 = vmatpush1.bf16.msra.mxu0 0
    %5879 = vmatprep.subr.bf16.mxu0 0
    %5880 = vmatpush1.bf16.msra.mxu0 0
    %5881 = vmatprep.subr.bf16.mxu0 0
    %5882 = vmatpush1.bf16.msra.mxu0 0
    %5883 = vmatprep.subr.bf16.mxu0 0
    %5884 = vmatpush1.bf16.msra.mxu0 0
    %5885 = vmatprep.subr.bf16.mxu0 0
    %5886 = vmatpush1.bf16.msra.mxu0 0
    %5887 = vmatprep.subr.bf16.mxu0 0
    %5888 = vmatpush1.bf16.msra.mxu0 0
    %5889 = vmatprep.subr.bf16.mxu0 0
    %5890 = vmatpush1.bf16.msra.mxu0 0
    %5891 = vmatprep.subr.bf16.mxu0 0
    %5892 = vmatpush1.bf16.msra.mxu0 0
    %5893 = vmatprep.subr.bf16.mxu0 0
    %5894 = vmatpush1.bf16.msra.mxu0 0
    %5895 = vmatprep.subr.bf16.mxu0 0
    %5896 = vmatpush1.bf16.msra.mxu0 0
    %5897 = vmatprep.subr.bf16.mxu0 0
    %5898 = vmatpush1.bf16.msra.mxu0 0
    %5899 = vmatprep.subr.bf16.mxu0 0
    %5900 = vmatpush1.bf16.msra.mxu0 0
    %5901 = vmatprep.subr.bf16.mxu0 0
    %5902 = vmatpush1.bf16.msra.mxu0 0
    %5903 = vmatprep.mubr.bf16.mxu0 0
    %5904 = vmatmul.mubr.bf16.gmra.mrb[0].mxu0 %v5869
    %v5905 = vpop.f32.mrb[0].mxu0
    %v5906 = vadd.f32 %v5191, %v5905
    %v5907 = vpop.f32.mrb[0].mxu0
    %v5908 = vpop.f32.mrb[0].mxu0
    %v5909 = vpop.f32.mrb[0].mxu0
    %5910 = vdwg.mxu0
    %v5913 = vunpack.c.l.b16 %v5200
    %v5914 = vunpack.c.l.b16 %v5201
    %v5915 = vpack.c.b16 %v5914, %v5913
    %v5918 = vsel %vm4795, %v5198, 0
    %5920 = vmatprep.subr.bf16.mxu0 0
    %5921 = vmatpush1.bf16.msra.mxu0 %v5915
    %5922 = vmatprep.subr.bf16.mxu0 0
    %5923 = vmatpush1.bf16.msra.mxu0 0
    %5924 = vmatprep.subr.bf16.mxu0 0
    %5925 = vmatpush1.bf16.msra.mxu0 0
    %5926 = vmatprep.subr.bf16.mxu0 0
    %5927 = vmatpush1.bf16.msra.mxu0 0
    %5928 = vmatprep.subr.bf16.mxu0 0
    %5929 = vmatpush1.bf16.msra.mxu0 0
    %5930 = vmatprep.subr.bf16.mxu0 0
    %5931 = vmatpush1.bf16.msra.mxu0 0
    %5932 = vmatprep.subr.bf16.mxu0 0
    %5933 = vmatpush1.bf16.msra.mxu0 0
    %5934 = vmatprep.subr.bf16.mxu0 0
    %5935 = vmatpush1.bf16.msra.mxu0 0
    %5936 = vmatprep.subr.bf16.mxu0 0
    %5937 = vmatpush1.bf16.msra.mxu0 0
    %5938 = vmatprep.subr.bf16.mxu0 0
    %5939 = vmatpush1.bf16.msra.mxu0 0
    %5940 = vmatprep.subr.bf16.mxu0 0
    %5941 = vmatpush1.bf16.msra.mxu0 0
    %5942 = vmatprep.subr.bf16.mxu0 0
    %5943 = vmatpush1.bf16.msra.mxu0 0
    %5944 = vmatprep.subr.bf16.mxu0 0
    %5945 = vmatpush1.bf16.msra.mxu0 0
    %5946 = vmatprep.subr.bf16.mxu0 0
    %5947 = vmatpush1.bf16.msra.mxu0 0
    %5948 = vmatprep.subr.bf16.mxu0 0
    %5949 = vmatpush1.bf16.msra.mxu0 0
    %5950 = vmatprep.subr.bf16.mxu0 0
    %5951 = vmatpush1.bf16.msra.mxu0 0
    %5952 = vmatprep.mubr.bf16.mxu0 0
    %5953 = vmatmul.mubr.bf16.gmra.mrb[0].mxu0 %v5918
    %v5954 = vpop.f32.mrb[0].mxu0
    %v5955 = vadd.f32 %v5252, %v5954
    %v5956 = vpop.f32.mrb[0].mxu0
    %v5957 = vpop.f32.mrb[0].mxu0
    %v5958 = vpop.f32.mrb[0].mxu0
    %5959 = vdwg.mxu0
    %v5962 = vunpack.c.l.b16 %v5261
    %v5963 = vunpack.c.l.b16 %v5262
    %v5964 = vpack.c.b16 %v5963, %v5962
    %v5967 = vsel %vm4795, %v5259, 0
    %5969 = vmatprep.subr.bf16.mxu0 0
    %5970 = vmatpush1.bf16.msra.mxu0 %v5964
    %5971 = vmatprep.subr.bf16.mxu0 0
    %5972 = vmatpush1.bf16.msra.mxu0 0
    %5973 = vmatprep.subr.bf16.mxu0 0
    %5974 = vmatpush1.bf16.msra.mxu0 0
    %5975 = vmatprep.subr.bf16.mxu0 0
    %5976 = vmatpush1.bf16.msra.mxu0 0
    %5977 = vmatprep.subr.bf16.mxu0 0
    %5978 = vmatpush1.bf16.msra.mxu0 0
    %5979 = vmatprep.subr.bf16.mxu0 0
    %5980 = vmatpush1.bf16.msra.mxu0 0
    %5981 = vmatprep.subr.bf16.mxu0 0
    %5982 = vmatpush1.bf16.msra.mxu0 0
    %5983 = vmatprep.subr.bf16.mxu0 0
    %5984 = vmatpush1.bf16.msra.mxu0 0
    %5985 = vmatprep.subr.bf16.mxu0 0
    %5986 = vmatpush1.bf16.msra.mxu0 0
    %5987 = vmatprep.subr.bf16.mxu0 0
    %5988 = vmatpush1.bf16.msra.mxu0 0
    %5989 = vmatprep.subr.bf16.mxu0 0
    %5990 = vmatpush1.bf16.msra.mxu0 0
    %5991 = vmatprep.subr.bf16.mxu0 0
    %5992 = vmatpush1.bf16.msra.mxu0 0
    %5993 = vmatprep.subr.bf16.mxu0 0
    %5994 = vmatpush1.bf16.msra.mxu0 0
    %5995 = vmatprep.subr.bf16.mxu0 0
    %5996 = vmatpush1.bf16.msra.mxu0 0
    %5997 = vmatprep.subr.bf16.mxu0 0
    %5998 = vmatpush1.bf16.msra.mxu0 0
    %5999 = vmatprep.subr.bf16.mxu0 0
    %6000 = vmatpush1.bf16.msra.mxu0 0
    %6001 = vmatprep.mubr.bf16.mxu0 0
    %6002 = vmatmul.mubr.bf16.gmra.mrb[0].mxu0 %v5967
    %v6003 = vpop.f32.mrb[0].mxu0
    %v6004 = vadd.f32 %v5313, %v6003
    %v6005 = vpop.f32.mrb[0].mxu0
    %v6006 = vpop.f32.mrb[0].mxu0
    %v6007 = vpop.f32.mrb[0].mxu0
    %6008 = vdwg.mxu0
    %v6011 = vunpack.c.l.b16 %v5322
    %v6012 = vunpack.c.l.b16 %v5323
    %v6013 = vpack.c.b16 %v6012, %v6011
    %v6016 = vsel %vm4795, %v5320, 0
    %6018 = vmatprep.subr.bf16.mxu0 0
    %6019 = vmatpush1.bf16.msra.mxu0 %v6013
    %6020 = vmatprep.subr.bf16.mxu0 0
    %6021 = vmatpush1.bf16.msra.mxu0 0
    %6022 = vmatprep.subr.bf16.mxu0 0
    %6023 = vmatpush1.bf16.msra.mxu0 0
    %6024 = vmatprep.subr.bf16.mxu0 0
    %6025 = vmatpush1.bf16.msra.mxu0 0
    %6026 = vmatprep.subr.bf16.mxu0 0
    %6027 = vmatpush1.bf16.msra.mxu0 0
    %6028 = vmatprep.subr.bf16.mxu0 0
    %6029 = vmatpush1.bf16.msra.mxu0 0
    %6030 = vmatprep.subr.bf16.mxu0 0
    %6031 = vmatpush1.bf16.msra.mxu0 0
    %6032 = vmatprep.subr.bf16.mxu0 0
    %6033 = vmatpush1.bf16.msra.mxu0 0
    %6034 = vmatprep.subr.bf16.mxu0 0
    %6035 = vmatpush1.bf16.msra.mxu0 0
    %6036 = vmatprep.subr.bf16.mxu0 0
    %6037 = vmatpush1.bf16.msra.mxu0 0
    %6038 = vmatprep.subr.bf16.mxu0 0
    %6039 = vmatpush1.bf16.msra.mxu0 0
    %6040 = vmatprep.subr.bf16.mxu0 0
    %6041 = vmatpush1.bf16.msra.mxu0 0
    %6042 = vmatprep.subr.bf16.mxu0 0
    %6043 = vmatpush1.bf16.msra.mxu0 0
    %6044 = vmatprep.subr.bf16.mxu0 0
    %6045 = vmatpush1.bf16.msra.mxu0 0
    %6046 = vmatprep.subr.bf16.mxu0 0
    %6047 = vmatpush1.bf16.msra.mxu0 0
    %6048 = vmatprep.subr.bf16.mxu0 0
    %6049 = vmatpush1.bf16.msra.mxu0 0
    %6050 = vmatprep.mubr.bf16.mxu0 0
    %6051 = vmatmul.mubr.bf16.gmra.mrb[0].mxu0 %v6016
    %v6052 = vpop.f32.mrb[0].mxu0
    %v6053 = vadd.f32 %v5374, %v6052
    %v6054 = vpop.f32.mrb[0].mxu0
    %v6055 = vpop.f32.mrb[0].mxu0
    %v6056 = vpop.f32.mrb[0].mxu0
    %6057 = vdwg.mxu0
    %v6060 = vunpack.c.l.b16 %v5383
    %v6061 = vunpack.c.l.b16 %v5384
    %v6062 = vpack.c.b16 %v6061, %v6060
    %v6065 = vsel %vm4795, %v5381, 0
    %6067 = vmatprep.subr.bf16.mxu0 0
    %6068 = vmatpush1.bf16.msra.mxu0 %v6062
    %6069 = vmatprep.subr.bf16.mxu0 0
    %6070 = vmatpush1.bf16.msra.mxu0 0
    %6071 = vmatprep.subr.bf16.mxu0 0
    %6072 = vmatpush1.bf16.msra.mxu0 0
    %6073 = vmatprep.subr.bf16.mxu0 0
    %6074 = vmatpush1.bf16.msra.mxu0 0
    %6075 = vmatprep.subr.bf16.mxu0 0
    %6076 = vmatpush1.bf16.msra.mxu0 0
    %6077 = vmatprep.subr.bf16.mxu0 0
    %6078 = vmatpush1.bf16.msra.mxu0 0
    %6079 = vmatprep.subr.bf16.mxu0 0
    %6080 = vmatpush1.bf16.msra.mxu0 0
    %6081 = vmatprep.subr.bf16.mxu0 0
    %6082 = vmatpush1.bf16.msra.mxu0 0
    %6083 = vmatprep.subr.bf16.mxu0 0
    %6084 = vmatpush1.bf16.msra.mxu0 0
    %6085 = vmatprep.subr.bf16.mxu0 0
    %6086 = vmatpush1.bf16.msra.mxu0 0
    %6087 = vmatprep.subr.bf16.mxu0 0
    %6088 = vmatpush1.bf16.msra.mxu0 0
    %6089 = vmatprep.subr.bf16.mxu0 0
    %6090 = vmatpush1.bf16.msra.mxu0 0
    %6091 = vmatprep.subr.bf16.mxu0 0
    %6092 = vmatpush1.bf16.msra.mxu0 0
    %6093 = vmatprep.subr.bf16.mxu0 0
    %6094 = vmatpush1.bf16.msra.mxu0 0
    %6095 = vmatprep.subr.bf16.mxu0 0
    %6096 = vmatpush1.bf16.msra.mxu0 0
    %6097 = vmatprep.subr.bf16.mxu0 0
    %6098 = vmatpush1.bf16.msra.mxu0 0
    %6099 = vmatprep.mubr.bf16.mxu0 0
    %6100 = vmatmul.mubr.bf16.gmra.mrb[0].mxu0 %v6065
    %v6101 = vpop.f32.mrb[0].mxu0
    %v6102 = vadd.f32 %v5435, %v6101
    %v6103 = vpop.f32.mrb[0].mxu0
    %v6104 = vpop.f32.mrb[0].mxu0
    %v6105 = vpop.f32.mrb[0].mxu0
    %6106 = vdwg.mxu0
    %v6109 = vunpack.c.l.b16 %v5444
    %v6110 = vunpack.c.l.b16 %v5445
    %v6111 = vpack.c.b16 %v6110, %v6109
    %v6114 = vsel %vm4795, %v5442, 0
    %6116 = vmatprep.subr.bf16.mxu0 0
    %6117 = vmatpush1.bf16.msra.mxu0 %v6111
    %6118 = vmatprep.subr.bf16.mxu0 0
    %6119 = vmatpush1.bf16.msra.mxu0 0
    %6120 = vmatprep.subr.bf16.mxu0 0
    %6121 = vmatpush1.bf16.msra.mxu0 0
    %6122 = vmatprep.subr.bf16.mxu0 0
    %6123 = vmatpush1.bf16.msra.mxu0 0
    %6124 = vmatprep.subr.bf16.mxu0 0
    %6125 = vmatpush1.bf16.msra.mxu0 0
    %6126 = vmatprep.subr.bf16.mxu0 0
    %6127 = vmatpush1.bf16.msra.mxu0 0
    %6128 = vmatprep.subr.bf16.mxu0 0
    %6129 = vmatpush1.bf16.msra.mxu0 0
    %6130 = vmatprep.subr.bf16.mxu0 0
    %6131 = vmatpush1.bf16.msra.mxu0 0
    %6132 = vmatprep.subr.bf16.mxu0 0
    %6133 = vmatpush1.bf16.msra.mxu0 0
    %6134 = vmatprep.subr.bf16.mxu0 0
    %6135 = vmatpush1.bf16.msra.mxu0 0
    %6136 = vmatprep.subr.bf16.mxu0 0
    %6137 = vmatpush1.bf16.msra.mxu0 0
    %6138 = vmatprep.subr.bf16.mxu0 0
    %6139 = vmatpush1.bf16.msra.mxu0 0
    %6140 = vmatprep.subr.bf16.mxu0 0
    %6141 = vmatpush1.bf16.msra.mxu0 0
    %6142 = vmatprep.subr.bf16.mxu0 0
    %6143 = vmatpush1.bf16.msra.mxu0 0
    %6144 = vmatprep.subr.bf16.mxu0 0
    %6145 = vmatpush1.bf16.msra.mxu0 0
    %6146 = vmatprep.subr.bf16.mxu0 0
    %6147 = vmatpush1.bf16.msra.mxu0 0
    %6148 = vmatprep.mubr.bf16.mxu0 0
    %6149 = vmatmul.mubr.bf16.gmra.mrb[0].mxu0 %v6114
    %v6150 = vpop.f32.mrb[0].mxu0
    %v6151 = vadd.f32 %v5496, %v6150
    %v6152 = vpop.f32.mrb[0].mxu0
    %v6153 = vpop.f32.mrb[0].mxu0
    %v6154 = vpop.f32.mrb[0].mxu0
    %6155 = vdwg.mxu0
    %v6158 = vunpack.c.l.b16 %v5505
    %v6159 = vunpack.c.l.b16 %v5506
    %v6160 = vpack.c.b16 %v6159, %v6158
    %v6163 = vsel %vm4795, %v5503, 0
    %6165 = vmatprep.subr.bf16.mxu0 0
    %6166 = vmatpush1.bf16.msra.mxu0 %v6160
    %6167 = vmatprep.subr.bf16.mxu0 0
    %6168 = vmatpush1.bf16.msra.mxu0 0
    %6169 = vmatprep.subr.bf16.mxu0 0
    %6170 = vmatpush1.bf16.msra.mxu0 0
    %6171 = vmatprep.subr.bf16.mxu0 0
    %6172 = vmatpush1.bf16.msra.mxu0 0
    %6173 = vmatprep.subr.bf16.mxu0 0
    %6174 = vmatpush1.bf16.msra.mxu0 0
    %6175 = vmatprep.subr.bf16.mxu0 0
    %6176 = vmatpush1.bf16.msra.mxu0 0
    %6177 = vmatprep.subr.bf16.mxu0 0
    %6178 = vmatpush1.bf16.msra.mxu0 0
    %6179 = vmatprep.subr.bf16.mxu0 0
    %6180 = vmatpush1.bf16.msra.mxu0 0
    %6181 = vmatprep.subr.bf16.mxu0 0
    %6182 = vmatpush1.bf16.msra.mxu0 0
    %6183 = vmatprep.subr.bf16.mxu0 0
    %6184 = vmatpush1.bf16.msra.mxu0 0
    %6185 = vmatprep.subr.bf16.mxu0 0
    %6186 = vmatpush1.bf16.msra.mxu0 0
    %6187 = vmatprep.subr.bf16.mxu0 0
    %6188 = vmatpush1.bf16.msra.mxu0 0
    %6189 = vmatprep.subr.bf16.mxu0 0
    %6190 = vmatpush1.bf16.msra.mxu0 0
    %6191 = vmatprep.subr.bf16.mxu0 0
    %6192 = vmatpush1.bf16.msra.mxu0 0
    %6193 = vmatprep.subr.bf16.mxu0 0
    %6194 = vmatpush1.bf16.msra.mxu0 0
    %6195 = vmatprep.subr.bf16.mxu0 0
    %6196 = vmatpush1.bf16.msra.mxu0 0
    %6197 = vmatprep.mubr.bf16.mxu0 0
    %6198 = vmatmul.mubr.bf16.gmra.mrb[0].mxu0 %v6163
    %v6199 = vpop.f32.mrb[0].mxu0
    %v6200 = vadd.f32 %v5557, %v6199
    %v6201 = vpop.f32.mrb[0].mxu0
    %v6202 = vpop.f32.mrb[0].mxu0
    %v6203 = vpop.f32.mrb[0].mxu0
    %6204 = vdwg.mxu0
    %v6205 = vadd.f32 %v5661, %v5710
    %v6206 = vadd.f32 %v5759, %v5808
    %v6207 = vadd.f32 %v5857, %v5906
    %v6208 = vadd.f32 %v5955, %v6004
    %v6209 = vadd.f32 %v6053, %v6102
    %v6210 = vadd.f32 %v6151, %v6200
    %v6211 = vadd.f32 %v6205, %v6206
    %v6212 = vadd.f32 %v6207, %v6208
    %v6213 = vadd.f32 %v6209, %v6210
    %v6214 = vadd.f32 %v6211, %v6212
    %v6215 = vadd.f32 %v6213, %v5612
    %v6216 = vadd.f32 %v6214, %v6215
    %v6217 = vld [vmem:[%s6] sm:$0x1]
    %v6218 = vlaneseq
    %v6219 = vshrl.u32 %v6218, 7
    %v6220 = vsub.s32 0, %v6219
    %v6221 = vrot.slane %v6217, %v6220
    %v6222 = vadd.f32 %v6216, %v6221
    %v6223 = vmax.f32 %v6222, 0.0
    %v6224 = vpack.c.bf16 %v6223, %v6223
    %v6225 = vld [vmem:[%s4] sm:$0xf]
    %v6226 = vld [vmem:[%s4 + $0x4] sm:$0xf]
    %v6227 = vld [vmem:[%s4 + $0x8] sm:$0xf]
    %v6228 = vld [vmem:[%s4 + $0xc] sm:$0xf]
    %v6229 = vld [vmem:[%s4 + $0x10] sm:$0xf]
    %v6230 = vld [vmem:[%s4 + $0x14] sm:$0xf]
    %v6231 = vld [vmem:[%s4 + $0x18] sm:$0xf]
    %v6232 = vld [vmem:[%s4 + $0x1c] sm:$0xf]
    %v6233 = vld [vmem:[%s4 + $0x20] sm:$0xf]
    %v6234 = vld [vmem:[%s4 + $0x24] sm:$0xf]
    %v6235 = vld [vmem:[%s4 + $0x28] sm:$0xf]
    %v6236 = vld [vmem:[%s4 + $0x2c] sm:$0xf]
    %v6237 = vld [vmem:[%s4 + $0x30] sm:$0xf]
    %v6238 = vld [vmem:[%s4 + $0x34] sm:$0xf]
    %v6239 = vld [vmem:[%s4 + $0x38] sm:$0xf]
    %v6240 = vld [vmem:[%s4 + $0x3c] sm:$0xf]
    %v6241 = vld [vmem:[%s6 + $0x1] sm:$0x1]
    %v6242 = vlaneseq
    %v6243 = vshrl.u32 %v6242, 7
    %v6244 = vsub.s32 0, %v6243
    %v6245 = vrot.slane %v6241, %v6244
    %v6262 = vunpack.c.l.b16 %v6225
    %v6263 = vunpack.c.l.b16 %v6226
    %v6264 = vunpack.c.l.b16 %v6227
    %v6265 = vunpack.c.l.b16 %v6228
    %v6266 = vunpack.c.l.b16 %v6229
    %v6267 = vunpack.c.l.b16 %v6230
    %v6268 = vunpack.c.l.b16 %v6231
    %v6269 = vunpack.c.l.b16 %v6232
    %v6270 = vunpack.c.l.b16 %v6233
    %v6271 = vunpack.c.l.b16 %v6234
    %v6272 = vunpack.c.l.b16 %v6235
    %v6273 = vunpack.c.l.b16 %v6236
    %v6274 = vunpack.c.l.b16 %v6237
    %v6275 = vunpack.c.l.b16 %v6238
    %v6276 = vunpack.c.l.b16 %v6239
    %v6277 = vunpack.c.l.b16 %v6240
    %v6278 = vpack.c.b16 %v6263, %v6262
    %v6279 = vpack.c.b16 %v6265, %v6264
    %v6280 = vpack.c.b16 %v6267, %v6266
    %v6281 = vpack.c.b16 %v6269, %v6268
    %v6282 = vpack.c.b16 %v6271, %v6270
    %v6283 = vpack.c.b16 %v6273, %v6272
    %v6284 = vpack.c.b16 %v6275, %v6274
    %v6285 = vpack.c.b16 %v6277, %v6276
    %6294 = vmatprep.subr.bf16.mxu0 0
    %6295 = vmatpush1.bf16.msra.mxu0 %v6278
    %6296 = vmatprep.subr.bf16.mxu0 0
    %6297 = vmatpush1.bf16.msra.mxu0 %v6279
    %6298 = vmatprep.subr.bf16.mxu0 0
    %6299 = vmatpush1.bf16.msra.mxu0 %v6280
    %6300 = vmatprep.subr.bf16.mxu0 0
    %6301 = vmatpush1.bf16.msra.mxu0 %v6281
    %6302 = vmatprep.subr.bf16.mxu0 0
    %6303 = vmatpush1.bf16.msra.mxu0 %v6282
    %6304 = vmatprep.subr.bf16.mxu0 0
    %6305 = vmatpush1.bf16.msra.mxu0 %v6283
    %6306 = vmatprep.subr.bf16.mxu0 0
    %6307 = vmatpush1.bf16.msra.mxu0 %v6284
    %6308 = vmatprep.subr.bf16.mxu0 0
    %6309 = vmatpush1.bf16.msra.mxu0 %v6285
    %6310 = vmatprep.subr.bf16.mxu0 0
    %6311 = vmatpush1.bf16.msra.mxu0 0
    %6312 = vmatprep.subr.bf16.mxu0 0
    %6313 = vmatpush1.bf16.msra.mxu0 0
    %6314 = vmatprep.subr.bf16.mxu0 0
    %6315 = vmatpush1.bf16.msra.mxu0 0
    %6316 = vmatprep.subr.bf16.mxu0 0
    %6317 = vmatpush1.bf16.msra.mxu0 0
    %6318 = vmatprep.subr.bf16.mxu0 0
    %6319 = vmatpush1.bf16.msra.mxu0 0
    %6320 = vmatprep.subr.bf16.mxu0 0
    %6321 = vmatpush1.bf16.msra.mxu0 0
    %6322 = vmatprep.subr.bf16.mxu0 0
    %6323 = vmatpush1.bf16.msra.mxu0 0
    %6324 = vmatprep.subr.bf16.mxu0 0
    %6325 = vmatpush1.bf16.msra.mxu0 0
    %6326 = vmatprep.mubr.bf16.mxu0 0
    %6327 = vmatmul.mubr.bf16.gmra.mrb[0].mxu0 %v6224
    %v6328 = vpop.f32.mrb[0].mxu0
    %v6329 = vadd.f32 %v6245, %v6328
    %v6330 = vpop.f32.mrb[0].mxu0
    %v6331 = vpop.f32.mrb[0].mxu0
    %v6332 = vpop.f32.mrb[0].mxu0
    %6333 = vdwg.mxu0
    %v6334 = vmax.f32 %v6329, 0.0
    %v6335 = vpack.c.bf16 %v6334, %v6334
    %v6336 = vld [vmem:[%s5] sm:$0xf]
    %v6337 = vld [vmem:[%s5 + $0x4] sm:$0xf]
    %v6338 = vld [vmem:[%s5 + $0x8] sm:$0xf]
    %v6339 = vld [vmem:[%s5 + $0xc] sm:$0xf]
    %v6340 = vld [vmem:[%s5 + $0x10] sm:$0xf]
    %v6341 = vld [vmem:[%s5 + $0x14] sm:$0xf]
    %v6342 = vld [vmem:[%s5 + $0x18] sm:$0xf]
    %v6343 = vld [vmem:[%s5 + $0x1c] sm:$0xf]
    %v6344 = vld [vmem:[%s5 + $0x20] sm:$0xf]
    %v6345 = vld [vmem:[%s5 + $0x24] sm:$0xf]
    %v6346 = vld [vmem:[%s5 + $0x28] sm:$0xf]
    %v6347 = vld [vmem:[%s5 + $0x2c] sm:$0xf]
    %v6348 = vld [vmem:[%s5 + $0x30] sm:$0xf]
    %v6349 = vld [vmem:[%s5 + $0x34] sm:$0xf]
    %v6350 = vld [vmem:[%s5 + $0x38] sm:$0xf]
    %v6351 = vld [vmem:[%s5 + $0x3c] sm:$0xf]
    %v6352 = vld [vmem:[%s6 + $0x2] sm:$0x1]
    %v6353 = vlaneseq
    %v6354 = vshrl.u32 %v6353, 7
    %v6355 = vsub.s32 0, %v6354
    %v6356 = vrot.slane %v6352, %v6355
    %v6373 = vunpack.c.l.b16 %v6336
    %v6374 = vunpack.c.l.b16 %v6337
    %v6375 = vunpack.c.l.b16 %v6338
    %v6376 = vunpack.c.l.b16 %v6339
    %v6377 = vunpack.c.l.b16 %v6340
    %v6378 = vunpack.c.l.b16 %v6341
    %v6379 = vunpack.c.l.b16 %v6342
    %v6380 = vunpack.c.l.b16 %v6343
    %v6381 = vunpack.c.l.b16 %v6344
    %v6382 = vunpack.c.l.b16 %v6345
    %v6383 = vunpack.c.l.b16 %v6346
    %v6384 = vunpack.c.l.b16 %v6347
    %v6385 = vunpack.c.l.b16 %v6348
    %v6386 = vunpack.c.l.b16 %v6349
    %v6387 = vunpack.c.l.b16 %v6350
    %v6388 = vunpack.c.l.b16 %v6351
    %v6389 = vpack.c.b16 %v6374, %v6373
    %v6390 = vpack.c.b16 %v6376, %v6375
    %v6391 = vpack.c.b16 %v6378, %v6377
    %v6392 = vpack.c.b16 %v6380, %v6379
    %v6393 = vpack.c.b16 %v6382, %v6381
    %v6394 = vpack.c.b16 %v6384, %v6383
    %v6395 = vpack.c.b16 %v6386, %v6385
    %v6396 = vpack.c.b16 %v6388, %v6387
    %6405 = vmatprep.subr.bf16.mxu0 0
    %6406 = vmatpush1.bf16.msra.mxu0 %v6389
    %6407 = vmatprep.subr.bf16.mxu0 0
    %6408 = vmatpush1.bf16.msra.mxu0 %v6390
    %6409 = vmatprep.subr.bf16.mxu0 0
    %6410 = vmatpush1.bf16.msra.mxu0 %v6391
    %6411 = vmatprep.subr.bf16.mxu0 0
    %6412 = vmatpush1.bf16.msra.mxu0 %v6392
    %6413 = vmatprep.subr.bf16.mxu0 0
    %6414 = vmatpush1.bf16.msra.mxu0 %v6393
    %6415 = vmatprep.subr.bf16.mxu0 0
    %6416 = vmatpush1.bf16.msra.mxu0 %v6394
    %6417 = vmatprep.subr.bf16.mxu0 0
    %6418 = vmatpush1.bf16.msra.mxu0 %v6395
    %6419 = vmatprep.subr.bf16.mxu0 0
    %6420 = vmatpush1.bf16.msra.mxu0 %v6396
    %6421 = vmatprep.subr.bf16.mxu0 0
    %6422 = vmatpush1.bf16.msra.mxu0 0
    %6423 = vmatprep.subr.bf16.mxu0 0
    %6424 = vmatpush1.bf16.msra.mxu0 0
    %6425 = vmatprep.subr.bf16.mxu0 0
    %6426 = vmatpush1.bf16.msra.mxu0 0
    %6427 = vmatprep.subr.bf16.mxu0 0
    %6428 = vmatpush1.bf16.msra.mxu0 0
    %6429 = vmatprep.subr.bf16.mxu0 0
    %6430 = vmatpush1.bf16.msra.mxu0 0
    %6431 = vmatprep.subr.bf16.mxu0 0
    %6432 = vmatpush1.bf16.msra.mxu0 0
    %6433 = vmatprep.subr.bf16.mxu0 0
    %6434 = vmatpush1.bf16.msra.mxu0 0
    %6435 = vmatprep.subr.bf16.mxu0 0
    %6436 = vmatpush1.bf16.msra.mxu0 0
    %6437 = vmatprep.mubr.bf16.mxu0 0
    %6438 = vmatmul.mubr.bf16.gmra.mrb[0].mxu0 %v6335
    %v6439 = vpop.f32.mrb[0].mxu0
    %v6440 = vadd.f32 %v6356, %v6439
    %v6441 = vpop.f32.mrb[0].mxu0
    %v6442 = vpop.f32.mrb[0].mxu0
    %v6443 = vpop.f32.mrb[0].mxu0
    %6444 = vdwg.mxu0
    %6445 = vst [vmem:[#allocation3] sm:$0x3] %v6440
    // Predicated region
    $region30: #{forward.1} parent=1 // pred_check
      _
    $region31: #{forward.1} parent=1 // pred_check_branch
      %6447 = sbr.rel (0) target = $region33
    $region32: #{forward.1} parent=1 // pred_region
      %s6449 = ssub.s32 32, 32
      %6450 = vsyncadd [#allocation4], %s6449
      %s6452 = sshll.u32 [#allocation3], 4
      %s6453 = int_to_ptr.vmem [resolvable:$true] %s6452
      %6455 = dma.vmem_to_hbm [thread:$0]  %s6453, 32, %s7, [#allocation4]
    $region33: #{forward.1} parent=1 // pred_fallthru
      _
    // Predicated region
    $region34: #{forward.1} parent=1 // pred_check
      _
    $region35: #{forward.1} parent=1 // pred_check_branch
      %6457 = sbr.rel (0) target = $region37
    $region36: #{forward.1} parent=1 // pred_region
      %6458 = dma.done [#allocation4], 32
    $region37: #{forward.1} parent=1 // pred_fallthru
      _
    %6459 = vsyncpa [#allocation4], 1

</llo_original>
